<compile_context>
chip_gen: v7x
topology: tpu7x:2x2x1
jax: 0.10.0
libtpu: 0.0.40
codegen_flags: <defaults>
</compile_context>

<pallas_src>
import functools

import jax
import jax.numpy as jnp
from jax import lax
from jax.experimental import pallas as pl
from jax.experimental.pallas import tpu as pltpu

_LANE = 128
_SUBLANE = 8


def _round_up(x, m):
    return (x + m - 1) // m * m


def _sigmoid(x):
    # sigmoid(x) == 0.5 * (tanh(x/2) + 1): single EUP tanh, no divide/exp on VPU.
    return 0.5 * (jnp.tanh(0.5 * x) + 1.0)


def mental_state_kernel(
    traj_ref,    # [TT, Bb, D] f32   time-major trajectory block for this grid step
    char_ref,    # [Bb, C]     f32   character embedding block
    w_ih_ref,    # [D, 4Hp]    f32   LSTM input->gates (transposed, gate order i,f,g,o)
    b_lstm_ref,  # [1, 4Hp]    f32   combined LSTM bias (b_ih + b_hh)
    whh_ref,     # [Hp, 4Hp]   f32   LSTM hidden->gates (transposed)
    wc_ref,      # [C, Hp]     f32   char_fc weight (transposed)
    bc_ref,      # [1, Hp]     f32   char_fc bias
    w1a_ref,     # [Hp, Hp]    f32   fc1 block acting on trajectory features
    w1b_ref,     # [Hp, Hp]    f32   fc1 block acting on character features
    b1_ref,      # [1, Hp]     f32   fc1 bias
    w2_ref,      # [Hp, Op]    f32   fc2 weight (transposed)
    b2_ref,      # [1, Op]     f32   fc2 bias
    out_ref,     # [Bb, Op]    f32   mental state output block
    h_scr,       # [Bb, Hp]    f32   VMEM scratch: hidden state (carried across T axis)
    c_scr,       # [Bb, Hp]    f32   VMEM scratch: cell state
    charp_scr,   # [Bb, Hp]    f32   VMEM scratch: char_feat @ W1b + b1 (fc1 char half)
    xg_scr,      # [TT*Bb,4Hp] f32   VMEM scratch: fused input projection of this block
    *, seq_len,
):
    t_blk = pl.program_id(1)
    n_tblk = pl.num_programs(1)

    TT, Bb, _ = traj_ref.shape
    Hp = whh_ref.shape[0]

    @pl.when(t_blk == 0)
    def _init():
        h_scr[...] = jnp.zeros_like(h_scr)
        c_scr[...] = jnp.zeros_like(c_scr)
        # Char branch hoisted before the recurrence (no dependence on h); its fc1
        # half is precomputed so only h @ W1a remains after the last LSTM step.
        char_feat = jnp.maximum(
            jnp.dot(char_ref[...], wc_ref[...], preferred_element_type=jnp.float32)
            + bc_ref[...],
            0.0,
        )
        charp_scr[...] = (
            jnp.dot(char_feat, w1b_ref[...], preferred_element_type=jnp.float32)
            + b1_ref[...]
        )

    # Fused input projection for this time block: one matmul off the sequential
    # critical path, LSTM bias folded in.  Only h @ W_hh stays inside the loop.
    x2d = traj_ref[...].reshape(TT * Bb, traj_ref.shape[-1])
    xg_scr[...] = (
        jnp.dot(x2d, w_ih_ref[...], preferred_element_type=jnp.float32)
        + b_lstm_ref[...]
    )

    base_t = t_blk * TT

    def lstm_step(i, carry):
        h, c = carry  # f32 [Bb, Hp]
        row = pl.multiple_of(i * Bb, Bb)
        gates = xg_scr[pl.ds(row, Bb), :] + jnp.dot(
            h, whh_ref[...], preferred_element_type=jnp.float32
        )  # [Bb, 4Hp], lane-aligned gate blocks
        i_g = _sigmoid(gates[:, 0 * Hp:1 * Hp])
        f_g = _sigmoid(gates[:, 1 * Hp:2 * Hp])
        g_g = jnp.tanh(gates[:, 2 * Hp:3 * Hp])
        o_g = _sigmoid(gates[:, 3 * Hp:4 * Hp])
        c_new = f_g * c + i_g * g_g
        h_new = o_g * jnp.tanh(c_new)
        # Mask timesteps past the true sequence length (T padded to a multiple of TT).
        valid = (base_t + i) < seq_len
        h = jnp.where(valid, h_new, h)
        c = jnp.where(valid, c_new, c)
        return (h, c)

    # TT <= 16 by construction, so fully unrolling the *block* loop keeps code size
    # and vreg pressure bounded even for long trajectories (the T grid axis chunks it).
    h, c = lax.fori_loop(0, TT, lstm_step, (h_scr[...], c_scr[...]), unroll=True)
    h_scr[...] = h
    c_scr[...] = c

    @pl.when(t_blk == n_tblk - 1)
    def _finalize():
        # hidden = relu(concat([h, char_feat]) @ W1^T + b1) == relu(h@W1a + char_part)
        hidden = jnp.maximum(
            jnp.dot(h, w1a_ref[...], preferred_element_type=jnp.float32)
            + charp_scr[...],
            0.0,
        )
        # mental_state = hidden @ W2^T + b2  (single lane-dense store)
        out_ref[...] = (
            jnp.dot(hidden, w2_ref[...], preferred_element_type=jnp.float32)
            + b2_ref[...]
        ).astype(out_ref.dtype)


def prepare_params(params):
    """Pad/cast parameters ONCE, outside the per-call path.

    Zero padding of weights/biases keeps the padded HIDDEN lanes exactly zero
    through the recurrence and the MLP.  (Padded BATCH rows are not zero — they
    still receive the LSTM bias — and are sliced off in the wrapper.)
    """
    H = params["w_hh"].shape[0]
    O = params["w2"].shape[1]
    Hp = _round_up(H, _LANE)
    Op = _round_up(O, _LANE)
    dH, dO = Hp - H, Op - O

    def pad_gate_cols(w):
        # Pad each of the 4 gate blocks along the last (4H) axis to width Hp.
        parts = jnp.split(w, 4, axis=-1)
        pad = ((0, 0),) * (w.ndim - 1) + ((0, dH),)
        return jnp.concatenate([jnp.pad(p, pad) for p in parts], axis=-1)

    f32 = jnp.float32
    return {
        "w_ih": pad_gate_cols(params["w_ih"]).astype(f32),                          # [D, 4Hp]
        "w_hh": pad_gate_cols(jnp.pad(params["w_hh"], ((0, dH), (0, 0)))).astype(f32),  # [Hp, 4Hp]
        "b_lstm": pad_gate_cols(params["b_lstm"]).astype(f32),                      # [1, 4Hp]
        "wc": jnp.pad(params["wc"], ((0, 0), (0, dH))).astype(f32),                 # [C, Hp]
        "bc": jnp.pad(params["bc"], ((0, 0), (0, dH))).astype(f32),                 # [1, Hp]
        "w1a": jnp.pad(params["w1a"], ((0, dH), (0, dH))).astype(f32),              # [Hp, Hp]
        "w1b": jnp.pad(params["w1b"], ((0, dH), (0, dH))).astype(f32),              # [Hp, Hp]
        "b1": jnp.pad(params["b1"], ((0, 0), (0, dH))).astype(f32),                 # [1, Hp]
        "w2": jnp.pad(params["w2"], ((0, dH), (0, dO))).astype(f32),                # [Hp, Op]
        "b2": jnp.pad(params["b2"], ((0, 0), (0, dO))).astype(f32),                 # [1, Op]
    }


def mental_state_network(trajectory, character, pp, out_dim):
    """trajectory: [B, T, D] (batch_first); character: [B, C]; pp: prepare_params output."""
    B, T, D = trajectory.shape
    Hp = pp["w_hh"].shape[0]
    Op = pp["w2"].shape[1]
    C = pp["wc"].shape[0]

    # Batch block (grid axis 0, "parallel" -> sharded across v7x's 2 TensorCores).
    Bb = min(_round_up(B, _SUBLANE), 128)
    Bp = _round_up(B, Bb)
    # Timesteps per grid step (grid axis 1, "arbitrary"): bounds VMEM + unroll size.
    TT = min(T, 16)
    Tp = _round_up(T, TT)
    nB, nT = Bp // Bb, Tp // TT

    traj = jnp.pad(trajectory.astype(jnp.float32), ((0, Bp - B), (0, Tp - T), (0, 0)))
    traj = jnp.transpose(traj, (1, 0, 2))                        # time-major [Tp, Bp, D]
    char = jnp.pad(character.astype(jnp.float32), ((0, Bp - B), (0, 0)))  # [Bp, C]

    kernel = functools.partial(mental_state_kernel, seq_len=T)

    full2d = lambda b, t: (0, 0)   # weights resident (constant block index)
    in_specs = [
        pl.BlockSpec((TT, Bb, D), lambda b, t: (t, b, 0)),       # trajectory block
        pl.BlockSpec((Bb, C), lambda b, t: (b, 0)),              # character block
        pl.BlockSpec(pp["w_ih"].shape, full2d),
        pl.BlockSpec(pp["b_lstm"].shape, full2d),
        pl.BlockSpec(pp["w_hh"].shape, full2d),
        pl.BlockSpec(pp["wc"].shape, full2d),
        pl.BlockSpec(pp["bc"].shape, full2d),
        pl.BlockSpec(pp["w1a"].shape, full2d),
        pl.BlockSpec(pp["w1b"].shape, full2d),
        pl.BlockSpec(pp["b1"].shape, full2d),
        pl.BlockSpec(pp["w2"].shape, full2d),
        pl.BlockSpec(pp["b2"].shape, full2d),
    ]

    flops = (
        2 * Tp * Bp * D * 4 * Hp          # fused input projection
        + 2 * Tp * Bp * Hp * 4 * Hp       # recurrent matmul
        + 2 * Bp * C * Hp                 # char_fc
        + 2 * Bp * Hp * Hp * 2            # fc1 (both halves)
        + 2 * Bp * Hp * Op                # fc2
    )
    transcendentals = 5 * Tp * Bp * Hp    # 4 gate tanh + tanh(c) per step
    bytes_accessed = 4 * (
        traj.size + char.size + sum(int(v.size) for v in pp.values()) + Bp * Op
    )

    out_p = pl.pallas_call(
        kernel,
        out_shape=jax.ShapeDtypeStruct((Bp, Op), jnp.float32),
        grid_spec=pltpu.PrefetchScalarGridSpec(
            num_scalar_prefetch=0,
            grid=(nB, nT),
            in_specs=in_specs,
            out_specs=pl.BlockSpec((Bb, Op), lambda b, t: (b, 0)),
            scratch_shapes=[
                pltpu.VMEM((Bb, Hp), jnp.float32),           # h (carried across T)
                pltpu.VMEM((Bb, Hp), jnp.float32),           # c
                pltpu.VMEM((Bb, Hp), jnp.float32),           # char fc1-half partial
                pltpu.VMEM((TT * Bb, 4 * Hp), jnp.float32),  # xg for current block
            ],
        ),
        compiler_params=pltpu.CompilerParams(
            dimension_semantics=("parallel", "arbitrary"),
            vmem_limit_bytes=32 * 1024 * 1024,
        ),
        cost_estimate=pl.CostEstimate(
            flops=flops, transcendentals=transcendentals, bytes_accessed=bytes_accessed
        ),
    )(traj, char, pp["w_ih"], pp["b_lstm"], pp["w_hh"], pp["wc"], pp["bc"],
      pp["w1a"], pp["w1b"], pp["b1"], pp["w2"], pp["b2"])

    # Padded batch rows / output lanes are garbage by construction; slice them off.
    return out_p[:B, :out_dim]


def init_params(key, input_dim, hidden_dim, output_dim, char_dim):
    """Deterministic synthetic parameters (no checkpoint load)."""
    ks = jax.random.split(key, 10)
    s = 0.1
    H = hidden_dim
    return {
        # LSTM: PyTorch stores weight_ih_l0 [4H, D]; we keep the transposed form [D, 4H].
        "w_ih": s * jax.random.normal(ks[0], (input_dim, 4 * H), jnp.float32),
        "w_hh": s * jax.random.normal(ks[1], (H, 4 * H), jnp.float32),
        "b_lstm": s * jax.random.normal(ks[2], (1, 4 * H), jnp.float32),  # b_ih + b_hh combined
        # char_fc: [H, C] in torch -> transposed [C, H]
        "wc": s * jax.random.normal(ks[3], (char_dim, H), jnp.float32),
        "bc": s * jax.random.normal(ks[4], (1, H), jnp.float32),
        # fc1: [H, 2H] in torch -> split transposed blocks [H, H] (traj half, char half)
        "w1a": s * jax.random.normal(ks[5], (H, H), jnp.float32),
        "w1b": s * jax.random.normal(ks[6], (H, H), jnp.float32),
        "b1": s * jax.random.normal(ks[7], (1, H), jnp.float32),
        # fc2: [O, H] in torch -> transposed [H, O]
        "w2": s * jax.random.normal(ks[8], (H, output_dim), jnp.float32),
        "b2": s * jax.random.normal(ks[9], (1, output_dim), jnp.float32),
    }


def _reference(trajectory, character, params):
    """Pure-JAX f32 reference for a sanity check."""
    x = jnp.transpose(trajectory, (1, 0, 2))  # [T, B, D]
    T, B, _ = x.shape
    H = params["w_hh"].shape[0]
    h = jnp.zeros((B, H), jnp.float32)
    c = jnp.zeros((B, H), jnp.float32)
    for t in range(T):
        gates = x[t] @ params["w_ih"] + h @ params["w_hh"] + params["b_lstm"]
        i = jax.nn.sigmoid(gates[:, :H])
        f = jax.nn.sigmoid(gates[:, H:2 * H])
        g = jnp.tanh(gates[:, 2 * H:3 * H])
        o = jax.nn.sigmoid(gates[:, 3 * H:])
        c = f * c + i * g
        h = o * jnp.tanh(c)
    char_feat = jax.nn.relu(character @ params["wc"] + params["bc"])
    hidden = jax.nn.relu(h @ params["w1a"] + char_feat @ params["w1b"] + params["b1"])
    return hidden @ params["w2"] + params["b2"]


if __name__ == "__main__":
    # Small shapes consistent with the module's forward signature.
    B, T = 2, 8
    input_dim, hidden_dim, output_dim, char_dim = 16, 32, 16, 8

    key = jax.random.PRNGKey(0)
    k_traj, k_char, k_params = jax.random.split(key, 3)

    trajectory = jax.random.normal(k_traj, (B, T, input_dim), jnp.float32)
    character = jax.random.normal(k_char, (B, char_dim), jnp.float32)
    params = init_params(k_params, input_dim, hidden_dim, output_dim, char_dim)

    # Pad/cast parameters ONCE; they are captured as constants by jit, so the
    # per-call path contains no pad/split/concat HLO.
    pp = jax.tree_util.tree_map(jax.block_until_ready, prepare_params(params))

    run = jax.jit(functools.partial(mental_state_network, pp=pp, out_dim=output_dim))
    out = jax.block_until_ready(run(trajectory, character))

    ref = _reference(trajectory, character, params)
    assert out.shape == (B, output_dim)
    assert jnp.allclose(out, ref, atol=2e-3, rtol=2e-3), "mismatch vs pure-JAX reference"

    print("KERNEL_OK")
</pallas_src>

<mosaic_0001>
module attributes {stable_mosaic.version = 11 : i64} {
  func.func @mental_state_kernel(%arg0: i32, %arg1: i32, %arg2: memref<8x8x16xf32, #tpu.memory_space<vmem>>, %arg3: memref<8x8xf32, #tpu.memory_space<vmem>>, %arg4: memref<16x512xf32, #tpu.memory_space<vmem>>, %arg5: memref<1x512xf32, #tpu.memory_space<vmem>>, %arg6: memref<128x512xf32, #tpu.memory_space<vmem>>, %arg7: memref<8x128xf32, #tpu.memory_space<vmem>>, %arg8: memref<1x128xf32, #tpu.memory_space<vmem>>, %arg9: memref<128x128xf32, #tpu.memory_space<vmem>>, %arg10: memref<128x128xf32, #tpu.memory_space<vmem>>, %arg11: memref<1x128xf32, #tpu.memory_space<vmem>>, %arg12: memref<128x128xf32, #tpu.memory_space<vmem>>, %arg13: memref<1x128xf32, #tpu.memory_space<vmem>>, %arg14: memref<8x128xf32, #tpu.memory_space<vmem>>, %arg15: memref<8x128xf32, #tpu.memory_space<vmem>>, %arg16: memref<8x128xf32, #tpu.memory_space<vmem>>, %arg17: memref<8x128xf32, #tpu.memory_space<vmem>>, %arg18: memref<64x512xf32, #tpu.memory_space<vmem>>) attributes {dimension_semantics = [#tpu.dimension_semantics<parallel>, #tpu.dimension_semantics<arbitrary>], iteration_bounds = array<i64: 1, 1>, scalar_prefetch = 0 : i64, scratch_operands = 4 : i64, tpu.core_type = #tpu.core_type<tc>, window_params = [{transform_indices = @transform_0, window_bounds = array<i64: 8, 8, 16>}, {transform_indices = @transform_1, window_bounds = array<i64: 8, 8>}, {pipeline_mode = #tpu.pipeline_mode<synchronous>, transform_indices = @transform_2, window_bounds = array<i64: 16, 512>}, {pipeline_mode = #tpu.pipeline_mode<synchronous>, transform_indices = @transform_3, window_bounds = array<i64: 1, 512>}, {pipeline_mode = #tpu.pipeline_mode<synchronous>, transform_indices = @transform_4, window_bounds = array<i64: 128, 512>}, {pipeline_mode = #tpu.pipeline_mode<synchronous>, transform_indices = @transform_5, window_bounds = array<i64: 8, 128>}, {pipeline_mode = #tpu.pipeline_mode<synchronous>, transform_indices = @transform_6, window_bounds = array<i64: 1, 128>}, {pipeline_mode = #tpu.pipeline_mode<synchronous>, transform_indices = @transform_7, window_bounds = array<i64: 128, 128>}, {pipeline_mode = #tpu.pipeline_mode<synchronous>, transform_indices = @transform_8, window_bounds = array<i64: 128, 128>}, {pipeline_mode = #tpu.pipeline_mode<synchronous>, transform_indices = @transform_9, window_bounds = array<i64: 1, 128>}, {pipeline_mode = #tpu.pipeline_mode<synchronous>, transform_indices = @transform_10, window_bounds = array<i64: 128, 128>}, {pipeline_mode = #tpu.pipeline_mode<synchronous>, transform_indices = @transform_11, window_bounds = array<i64: 1, 128>}, {transform_indices = @transform_12, window_bounds = array<i64: 8, 128>}]} {
    %c0_i32 = arith.constant 0 : i32
    %0 = arith.cmpi eq, %arg1, %c0_i32 : i32
    %1 = arith.extui %0 : i1 to i32
    %c0_i32_0 = arith.constant 0 : i32
    %2 = arith.cmpi ne, %1, %c0_i32_0 : i32
    scf.if %2 {
      %cst_141 = arith.constant 0.000000e+00 : f32
      %355 = vector.broadcast %cst_141 : f32 to vector<8x128xf32>
      %c0_142 = arith.constant 0 : index
      %c0_143 = arith.constant 0 : index
      %356 = vector.load %arg15[%c0_142, %c0_143] : memref<8x128xf32, #tpu.memory_space<vmem>>, vector<8x128xf32>
      tpu.vector_store %arg15[%c0_142, %c0_143], %355 {strides = array<i32>} : memref<8x128xf32, #tpu.memory_space<vmem>>, vector<8x128xf32>,
      %cst_144 = arith.constant 0.000000e+00 : f32
      %357 = vector.broadcast %cst_144 : f32 to vector<8x128xf32>
      %c0_145 = arith.constant 0 : index
      %c0_146 = arith.constant 0 : index
      %358 = vector.load %arg16[%c0_145, %c0_146] : memref<8x128xf32, #tpu.memory_space<vmem>>, vector<8x128xf32>
      tpu.vector_store %arg16[%c0_145, %c0_146], %357 {strides = array<i32>} : memref<8x128xf32, #tpu.memory_space<vmem>>, vector<8x128xf32>,
      %c0_147 = arith.constant 0 : index
      %c0_148 = arith.constant 0 : index
      %359 = vector.load %arg3[%c0_147, %c0_148] : memref<8x8xf32, #tpu.memory_space<vmem>>, vector<8x8xf32>
      %c0_149 = arith.constant 0 : index
      %c0_150 = arith.constant 0 : index
      %360 = vector.load %arg7[%c0_149, %c0_150] : memref<8x128xf32, #tpu.memory_space<vmem>>, vector<8x128xf32>
      %cst_151 = arith.constant dense<0.000000e+00> : vector<8x128xf32>
      %361 = tpu.matmul %359, %360, %cst_151 {dimension_numbers = #tpu.dot_dimension_numbers<[1], [0], [0], [1], [0, 0, 1, 1], [], []>} : vector<8x8xf32>, vector<8x128xf32>, vector<8x128xf32> -> vector<8x128xf32>
      %c0_152 = arith.constant 0 : index
      %c0_153 = arith.constant 0 : index
      %362 = vector.load %arg8[%c0_152, %c0_153] : memref<1x128xf32, #tpu.memory_space<vmem>>, vector<1x128xf32>
      %363 = vector.broadcast %362 : vector<1x128xf32> to vector<8x128xf32>
      %364 = arith.addf %361, %363 : vector<8x128xf32>
      %cst_154 = arith.constant 0.000000e+00 : f32
      %365 = vector.broadcast %cst_154 : f32 to vector<8x128xf32>
      %366 = arith.maximumf %364, %365 : vector<8x128xf32>
      %c0_155 = arith.constant 0 : index
      %c0_156 = arith.constant 0 : index
      %367 = vector.load %arg10[%c0_155, %c0_156] : memref<128x128xf32, #tpu.memory_space<vmem>>, vector<128x128xf32>
      %cst_157 = arith.constant dense<0.000000e+00> : vector<8x128xf32>
      %368 = tpu.matmul %366, %367, %cst_157 {dimension_numbers = #tpu.dot_dimension_numbers<[1], [0], [0], [1], [0, 0, 1, 1], [], []>} : vector<8x128xf32>, vector<128x128xf32>, vector<8x128xf32> -> vector<8x128xf32>
      %c0_158 = arith.constant 0 : index
      %c0_159 = arith.constant 0 : index
      %369 = vector.load %arg11[%c0_158, %c0_159] : memref<1x128xf32, #tpu.memory_space<vmem>>, vector<1x128xf32>
      %370 = vector.broadcast %369 : vector<1x128xf32> to vector<8x128xf32>
      %371 = arith.addf %368, %370 : vector<8x128xf32>
      %c0_160 = arith.constant 0 : index
      %c0_161 = arith.constant 0 : index
      %372 = vector.load %arg17[%c0_160, %c0_161] : memref<8x128xf32, #tpu.memory_space<vmem>>, vector<8x128xf32>
      tpu.vector_store %arg17[%c0_160, %c0_161], %371 {strides = array<i32>} : memref<8x128xf32, #tpu.memory_space<vmem>>, vector<8x128xf32>,
    } else {
    }
    %c0 = arith.constant 0 : index
    %c0_1 = arith.constant 0 : index
    %c0_2 = arith.constant 0 : index
    %3 = vector.load %arg2[%c0, %c0_1, %c0_2] : memref<8x8x16xf32, #tpu.memory_space<vmem>>, vector<8x8x16xf32>
    %4 = vector.shape_cast %3 : vector<8x8x16xf32> to vector<64x16xf32>
    %c0_3 = arith.constant 0 : index
    %c0_4 = arith.constant 0 : index
    %5 = vector.load %arg4[%c0_3, %c0_4] : memref<16x512xf32, #tpu.memory_space<vmem>>, vector<16x512xf32>
    %cst = arith.constant dense<0.000000e+00> : vector<64x512xf32>
    %6 = tpu.matmul %4, %5, %cst {dimension_numbers = #tpu.dot_dimension_numbers<[1], [0], [0], [1], [0, 0, 1, 1], [], []>} : vector<64x16xf32>, vector<16x512xf32>, vector<64x512xf32> -> vector<64x512xf32>
    %c0_5 = arith.constant 0 : index
    %c0_6 = arith.constant 0 : index
    %7 = vector.load %arg5[%c0_5, %c0_6] : memref<1x512xf32, #tpu.memory_space<vmem>>, vector<1x512xf32>
    %8 = vector.broadcast %7 : vector<1x512xf32> to vector<64x512xf32>
    %9 = arith.addf %6, %8 : vector<64x512xf32>
    %c0_7 = arith.constant 0 : index
    %c0_8 = arith.constant 0 : index
    %10 = vector.load %arg18[%c0_7, %c0_8] : memref<64x512xf32, #tpu.memory_space<vmem>>, vector<64x512xf32>
    tpu.vector_store %arg18[%c0_7, %c0_8], %9 {strides = array<i32>} : memref<64x512xf32, #tpu.memory_space<vmem>>, vector<64x512xf32>,
    %c8_i32 = arith.constant 8 : i32
    %11 = arith.muli %arg1, %c8_i32 : i32
    %c0_9 = arith.constant 0 : index
    %c0_10 = arith.constant 0 : index
    %12 = vector.load %arg15[%c0_9, %c0_10] : memref<8x128xf32, #tpu.memory_space<vmem>>, vector<8x128xf32>
    %c0_11 = arith.constant 0 : index
    %c0_12 = arith.constant 0 : index
    %13 = vector.load %arg16[%c0_11, %c0_12] : memref<8x128xf32, #tpu.memory_space<vmem>>, vector<8x128xf32>
    %c0_i32_13 = arith.constant 0 : i32
    %c8_i32_14 = arith.constant 8 : i32
    %14 = arith.muli %c0_i32_13, %c8_i32_14 : i32
    %15 = tpu.assume_multiple %14, 8 : i32
    %16 = arith.index_cast %15 : i32 to index
    %c0_15 = arith.constant 0 : index
    %17 = vector.load %arg18[%16, %c0_15] : memref<64x512xf32, #tpu.memory_space<vmem>>, vector<8x512xf32>
    %c0_16 = arith.constant 0 : index
    %c0_17 = arith.constant 0 : index
    %18 = vector.load %arg6[%c0_16, %c0_17] : memref<128x512xf32, #tpu.memory_space<vmem>>, vector<128x512xf32>
    %cst_18 = arith.constant dense<0.000000e+00> : vector<8x512xf32>
    %19 = tpu.matmul %12, %18, %cst_18 {dimension_numbers = #tpu.dot_dimension_numbers<[1], [0], [0], [1], [0, 0, 1, 1], [], []>} : vector<8x128xf32>, vector<128x512xf32>, vector<8x512xf32> -> vector<8x512xf32>
    %20 = arith.addf %17, %19 : vector<8x512xf32>
    %21 = vector.extract_strided_slice %20 {offsets = [0, 0], sizes = [8, 128], strides = [1, 1]} : vector<8x512xf32> to vector<8x128xf32>
    %cst_19 = arith.constant 5.000000e-01 : f32
    %22 = vector.broadcast %cst_19 : f32 to vector<8x128xf32>
    %23 = arith.mulf %22, %21 : vector<8x128xf32>
    %24 = math.tanh %23 : vector<8x128xf32>
    %cst_20 = arith.constant 1.000000e+00 : f32
    %25 = vector.broadcast %cst_20 : f32 to vector<8x128xf32>
    %26 = arith.addf %24, %25 : vector<8x128xf32>
    %cst_21 = arith.constant 5.000000e-01 : f32
    %27 = vector.broadcast %cst_21 : f32 to vector<8x128xf32>
    %28 = arith.mulf %27, %26 : vector<8x128xf32>
    %29 = vector.extract_strided_slice %20 {offsets = [0, 128], sizes = [8, 128], strides = [1, 1]} : vector<8x512xf32> to vector<8x128xf32>
    %cst_22 = arith.constant 5.000000e-01 : f32
    %30 = vector.broadcast %cst_22 : f32 to vector<8x128xf32>
    %31 = arith.mulf %30, %29 : vector<8x128xf32>
    %32 = math.tanh %31 : vector<8x128xf32>
    %cst_23 = arith.constant 1.000000e+00 : f32
    %33 = vector.broadcast %cst_23 : f32 to vector<8x128xf32>
    %34 = arith.addf %32, %33 : vector<8x128xf32>
    %cst_24 = arith.constant 5.000000e-01 : f32
    %35 = vector.broadcast %cst_24 : f32 to vector<8x128xf32>
    %36 = arith.mulf %35, %34 : vector<8x128xf32>
    %37 = vector.extract_strided_slice %20 {offsets = [0, 256], sizes = [8, 128], strides = [1, 1]} : vector<8x512xf32> to vector<8x128xf32>
    %38 = math.tanh %37 : vector<8x128xf32>
    %39 = vector.extract_strided_slice %20 {offsets = [0, 384], sizes = [8, 128], strides = [1, 1]} : vector<8x512xf32> to vector<8x128xf32>
    %cst_25 = arith.constant 5.000000e-01 : f32
    %40 = vector.broadcast %cst_25 : f32 to vector<8x128xf32>
    %41 = arith.mulf %40, %39 : vector<8x128xf32>
    %42 = math.tanh %41 : vector<8x128xf32>
    %cst_26 = arith.constant 1.000000e+00 : f32
    %43 = vector.broadcast %cst_26 : f32 to vector<8x128xf32>
    %44 = arith.addf %42, %43 : vector<8x128xf32>
    %cst_27 = arith.constant 5.000000e-01 : f32
    %45 = vector.broadcast %cst_27 : f32 to vector<8x128xf32>
    %46 = arith.mulf %45, %44 : vector<8x128xf32>
    %47 = arith.mulf %36, %13 : vector<8x128xf32>
    %48 = arith.mulf %28, %38 : vector<8x128xf32>
    %49 = arith.addf %47, %48 : vector<8x128xf32>
    %50 = math.tanh %49 : vector<8x128xf32>
    %51 = arith.mulf %46, %50 : vector<8x128xf32>
    %52 = arith.addi %11, %c0_i32_13 : i32
    %c8_i32_28 = arith.constant 8 : i32
    %53 = arith.cmpi slt, %52, %c8_i32_28 : i32
    %54 = arith.select %53, %51, %12 : vector<8x128xf32>
    %55 = arith.select %53, %49, %13 : vector<8x128xf32>
    %c1_i32 = arith.constant 1 : i32
    %c8_i32_29 = arith.constant 8 : i32
    %56 = arith.muli %c1_i32, %c8_i32_29 : i32
    %57 = tpu.assume_multiple %56, 8 : i32
    %58 = arith.index_cast %57 : i32 to index
    %c0_30 = arith.constant 0 : index
    %59 = vector.load %arg18[%58, %c0_30] : memref<64x512xf32, #tpu.memory_space<vmem>>, vector<8x512xf32>
    %c0_31 = arith.constant 0 : index
    %c0_32 = arith.constant 0 : index
    %60 = vector.load %arg6[%c0_31, %c0_32] : memref<128x512xf32, #tpu.memory_space<vmem>>, vector<128x512xf32>
    %cst_33 = arith.constant dense<0.000000e+00> : vector<8x512xf32>
    %61 = tpu.matmul %54, %60, %cst_33 {dimension_numbers = #tpu.dot_dimension_numbers<[1], [0], [0], [1], [0, 0, 1, 1], [], []>} : vector<8x128xf32>, vector<128x512xf32>, vector<8x512xf32> -> vector<8x512xf32>
    %62 = arith.addf %59, %61 : vector<8x512xf32>
    %63 = vector.extract_strided_slice %62 {offsets = [0, 0], sizes = [8, 128], strides = [1, 1]} : vector<8x512xf32> to vector<8x128xf32>
    %cst_34 = arith.constant 5.000000e-01 : f32
    %64 = vector.broadcast %cst_34 : f32 to vector<8x128xf32>
    %65 = arith.mulf %64, %63 : vector<8x128xf32>
    %66 = math.tanh %65 : vector<8x128xf32>
    %cst_35 = arith.constant 1.000000e+00 : f32
    %67 = vector.broadcast %cst_35 : f32 to vector<8x128xf32>
    %68 = arith.addf %66, %67 : vector<8x128xf32>
    %cst_36 = arith.constant 5.000000e-01 : f32
    %69 = vector.broadcast %cst_36 : f32 to vector<8x128xf32>
    %70 = arith.mulf %69, %68 : vector<8x128xf32>
    %71 = vector.extract_strided_slice %62 {offsets = [0, 128], sizes = [8, 128], strides = [1, 1]} : vector<8x512xf32> to vector<8x128xf32>
    %cst_37 = arith.constant 5.000000e-01 : f32
    %72 = vector.broadcast %cst_37 : f32 to vector<8x128xf32>
    %73 = arith.mulf %72, %71 : vector<8x128xf32>
    %74 = math.tanh %73 : vector<8x128xf32>
    %cst_38 = arith.constant 1.000000e+00 : f32
    %75 = vector.broadcast %cst_38 : f32 to vector<8x128xf32>
    %76 = arith.addf %74, %75 : vector<8x128xf32>
    %cst_39 = arith.constant 5.000000e-01 : f32
    %77 = vector.broadcast %cst_39 : f32 to vector<8x128xf32>
    %78 = arith.mulf %77, %76 : vector<8x128xf32>
    %79 = vector.extract_strided_slice %62 {offsets = [0, 256], sizes = [8, 128], strides = [1, 1]} : vector<8x512xf32> to vector<8x128xf32>
    %80 = math.tanh %79 : vector<8x128xf32>
    %81 = vector.extract_strided_slice %62 {offsets = [0, 384], sizes = [8, 128], strides = [1, 1]} : vector<8x512xf32> to vector<8x128xf32>
    %cst_40 = arith.constant 5.000000e-01 : f32
    %82 = vector.broadcast %cst_40 : f32 to vector<8x128xf32>
    %83 = arith.mulf %82, %81 : vector<8x128xf32>
    %84 = math.tanh %83 : vector<8x128xf32>
    %cst_41 = arith.constant 1.000000e+00 : f32
    %85 = vector.broadcast %cst_41 : f32 to vector<8x128xf32>
    %86 = arith.addf %84, %85 : vector<8x128xf32>
    %cst_42 = arith.constant 5.000000e-01 : f32
    %87 = vector.broadcast %cst_42 : f32 to vector<8x128xf32>
    %88 = arith.mulf %87, %86 : vector<8x128xf32>
    %89 = arith.mulf %78, %55 : vector<8x128xf32>
    %90 = arith.mulf %70, %80 : vector<8x128xf32>
    %91 = arith.addf %89, %90 : vector<8x128xf32>
    %92 = math.tanh %91 : vector<8x128xf32>
    %93 = arith.mulf %88, %92 : vector<8x128xf32>
    %94 = arith.addi %11, %c1_i32 : i32
    %c8_i32_43 = arith.constant 8 : i32
    %95 = arith.cmpi slt, %94, %c8_i32_43 : i32
    %96 = arith.select %95, %93, %54 : vector<8x128xf32>
    %97 = arith.select %95, %91, %55 : vector<8x128xf32>
    %c2_i32 = arith.constant 2 : i32
    %c8_i32_44 = arith.constant 8 : i32
    %98 = arith.muli %c2_i32, %c8_i32_44 : i32
    %99 = tpu.assume_multiple %98, 8 : i32
    %100 = arith.index_cast %99 : i32 to index
    %c0_45 = arith.constant 0 : index
    %101 = vector.load %arg18[%100, %c0_45] : memref<64x512xf32, #tpu.memory_space<vmem>>, vector<8x512xf32>
    %c0_46 = arith.constant 0 : index
    %c0_47 = arith.constant 0 : index
    %102 = vector.load %arg6[%c0_46, %c0_47] : memref<128x512xf32, #tpu.memory_space<vmem>>, vector<128x512xf32>
    %cst_48 = arith.constant dense<0.000000e+00> : vector<8x512xf32>
    %103 = tpu.matmul %96, %102, %cst_48 {dimension_numbers = #tpu.dot_dimension_numbers<[1], [0], [0], [1], [0, 0, 1, 1], [], []>} : vector<8x128xf32>, vector<128x512xf32>, vector<8x512xf32> -> vector<8x512xf32>
    %104 = arith.addf %101, %103 : vector<8x512xf32>
    %105 = vector.extract_strided_slice %104 {offsets = [0, 0], sizes = [8, 128], strides = [1, 1]} : vector<8x512xf32> to vector<8x128xf32>
    %cst_49 = arith.constant 5.000000e-01 : f32
    %106 = vector.broadcast %cst_49 : f32 to vector<8x128xf32>
    %107 = arith.mulf %106, %105 : vector<8x128xf32>
    %108 = math.tanh %107 : vector<8x128xf32>
    %cst_50 = arith.constant 1.000000e+00 : f32
    %109 = vector.broadcast %cst_50 : f32 to vector<8x128xf32>
    %110 = arith.addf %108, %109 : vector<8x128xf32>
    %cst_51 = arith.constant 5.000000e-01 : f32
    %111 = vector.broadcast %cst_51 : f32 to vector<8x128xf32>
    %112 = arith.mulf %111, %110 : vector<8x128xf32>
    %113 = vector.extract_strided_slice %104 {offsets = [0, 128], sizes = [8, 128], strides = [1, 1]} : vector<8x512xf32> to vector<8x128xf32>
    %cst_52 = arith.constant 5.000000e-01 : f32
    %114 = vector.broadcast %cst_52 : f32 to vector<8x128xf32>
    %115 = arith.mulf %114, %113 : vector<8x128xf32>
    %116 = math.tanh %115 : vector<8x128xf32>
    %cst_53 = arith.constant 1.000000e+00 : f32
    %117 = vector.broadcast %cst_53 : f32 to vector<8x128xf32>
    %118 = arith.addf %116, %117 : vector<8x128xf32>
    %cst_54 = arith.constant 5.000000e-01 : f32
    %119 = vector.broadcast %cst_54 : f32 to vector<8x128xf32>
    %120 = arith.mulf %119, %118 : vector<8x128xf32>
    %121 = vector.extract_strided_slice %104 {offsets = [0, 256], sizes = [8, 128], strides = [1, 1]} : vector<8x512xf32> to vector<8x128xf32>
    %122 = math.tanh %121 : vector<8x128xf32>
    %123 = vector.extract_strided_slice %104 {offsets = [0, 384], sizes = [8, 128], strides = [1, 1]} : vector<8x512xf32> to vector<8x128xf32>
    %cst_55 = arith.constant 5.000000e-01 : f32
    %124 = vector.broadcast %cst_55 : f32 to vector<8x128xf32>
    %125 = arith.mulf %124, %123 : vector<8x128xf32>
    %126 = math.tanh %125 : vector<8x128xf32>
    %cst_56 = arith.constant 1.000000e+00 : f32
    %127 = vector.broadcast %cst_56 : f32 to vector<8x128xf32>
    %128 = arith.addf %126, %127 : vector<8x128xf32>
    %cst_57 = arith.constant 5.000000e-01 : f32
    %129 = vector.broadcast %cst_57 : f32 to vector<8x128xf32>
    %130 = arith.mulf %129, %128 : vector<8x128xf32>
    %131 = arith.mulf %120, %97 : vector<8x128xf32>
    %132 = arith.mulf %112, %122 : vector<8x128xf32>
    %133 = arith.addf %131, %132 : vector<8x128xf32>
    %134 = math.tanh %133 : vector<8x128xf32>
    %135 = arith.mulf %130, %134 : vector<8x128xf32>
    %136 = arith.addi %11, %c2_i32 : i32
    %c8_i32_58 = arith.constant 8 : i32
    %137 = arith.cmpi slt, %136, %c8_i32_58 : i32
    %138 = arith.select %137, %135, %96 : vector<8x128xf32>
    %139 = arith.select %137, %133, %97 : vector<8x128xf32>
    %c3_i32 = arith.constant 3 : i32
    %c8_i32_59 = arith.constant 8 : i32
    %140 = arith.muli %c3_i32, %c8_i32_59 : i32
    %141 = tpu.assume_multiple %140, 8 : i32
    %142 = arith.index_cast %141 : i32 to index
    %c0_60 = arith.constant 0 : index
    %143 = vector.load %arg18[%142, %c0_60] : memref<64x512xf32, #tpu.memory_space<vmem>>, vector<8x512xf32>
    %c0_61 = arith.constant 0 : index
    %c0_62 = arith.constant 0 : index
    %144 = vector.load %arg6[%c0_61, %c0_62] : memref<128x512xf32, #tpu.memory_space<vmem>>, vector<128x512xf32>
    %cst_63 = arith.constant dense<0.000000e+00> : vector<8x512xf32>
    %145 = tpu.matmul %138, %144, %cst_63 {dimension_numbers = #tpu.dot_dimension_numbers<[1], [0], [0], [1], [0, 0, 1, 1], [], []>} : vector<8x128xf32>, vector<128x512xf32>, vector<8x512xf32> -> vector<8x512xf32>
    %146 = arith.addf %143, %145 : vector<8x512xf32>
    %147 = vector.extract_strided_slice %146 {offsets = [0, 0], sizes = [8, 128], strides = [1, 1]} : vector<8x512xf32> to vector<8x128xf32>
    %cst_64 = arith.constant 5.000000e-01 : f32
    %148 = vector.broadcast %cst_64 : f32 to vector<8x128xf32>
    %149 = arith.mulf %148, %147 : vector<8x128xf32>
    %150 = math.tanh %149 : vector<8x128xf32>
    %cst_65 = arith.constant 1.000000e+00 : f32
    %151 = vector.broadcast %cst_65 : f32 to vector<8x128xf32>
    %152 = arith.addf %150, %151 : vector<8x128xf32>
    %cst_66 = arith.constant 5.000000e-01 : f32
    %153 = vector.broadcast %cst_66 : f32 to vector<8x128xf32>
    %154 = arith.mulf %153, %152 : vector<8x128xf32>
    %155 = vector.extract_strided_slice %146 {offsets = [0, 128], sizes = [8, 128], strides = [1, 1]} : vector<8x512xf32> to vector<8x128xf32>
    %cst_67 = arith.constant 5.000000e-01 : f32
    %156 = vector.broadcast %cst_67 : f32 to vector<8x128xf32>
    %157 = arith.mulf %156, %155 : vector<8x128xf32>
    %158 = math.tanh %157 : vector<8x128xf32>
    %cst_68 = arith.constant 1.000000e+00 : f32
    %159 = vector.broadcast %cst_68 : f32 to vector<8x128xf32>
    %160 = arith.addf %158, %159 : vector<8x128xf32>
    %cst_69 = arith.constant 5.000000e-01 : f32
    %161 = vector.broadcast %cst_69 : f32 to vector<8x128xf32>
    %162 = arith.mulf %161, %160 : vector<8x128xf32>
    %163 = vector.extract_strided_slice %146 {offsets = [0, 256], sizes = [8, 128], strides = [1, 1]} : vector<8x512xf32> to vector<8x128xf32>
    %164 = math.tanh %163 : vector<8x128xf32>
    %165 = vector.extract_strided_slice %146 {offsets = [0, 384], sizes = [8, 128], strides = [1, 1]} : vector<8x512xf32> to vector<8x128xf32>
    %cst_70 = arith.constant 5.000000e-01 : f32
    %166 = vector.broadcast %cst_70 : f32 to vector<8x128xf32>
    %167 = arith.mulf %166, %165 : vector<8x128xf32>
    %168 = math.tanh %167 : vector<8x128xf32>
    %cst_71 = arith.constant 1.000000e+00 : f32
    %169 = vector.broadcast %cst_71 : f32 to vector<8x128xf32>
    %170 = arith.addf %168, %169 : vector<8x128xf32>
    %cst_72 = arith.constant 5.000000e-01 : f32
    %171 = vector.broadcast %cst_72 : f32 to vector<8x128xf32>
    %172 = arith.mulf %171, %170 : vector<8x128xf32>
    %173 = arith.mulf %162, %139 : vector<8x128xf32>
    %174 = arith.mulf %154, %164 : vector<8x128xf32>
    %175 = arith.addf %173, %174 : vector<8x128xf32>
    %176 = math.tanh %175 : vector<8x128xf32>
    %177 = arith.mulf %172, %176 : vector<8x128xf32>
    %178 = arith.addi %11, %c3_i32 : i32
    %c8_i32_73 = arith.constant 8 : i32
    %179 = arith.cmpi slt, %178, %c8_i32_73 : i32
    %180 = arith.select %179, %177, %138 : vector<8x128xf32>
    %181 = arith.select %179, %175, %139 : vector<8x128xf32>
    %c4_i32 = arith.constant 4 : i32
    %c8_i32_74 = arith.constant 8 : i32
    %182 = arith.muli %c4_i32, %c8_i32_74 : i32
    %183 = tpu.assume_multiple %182, 8 : i32
    %184 = arith.index_cast %183 : i32 to index
    %c0_75 = arith.constant 0 : index
    %185 = vector.load %arg18[%184, %c0_75] : memref<64x512xf32, #tpu.memory_space<vmem>>, vector<8x512xf32>
    %c0_76 = arith.constant 0 : index
    %c0_77 = arith.constant 0 : index
    %186 = vector.load %arg6[%c0_76, %c0_77] : memref<128x512xf32, #tpu.memory_space<vmem>>, vector<128x512xf32>
    %cst_78 = arith.constant dense<0.000000e+00> : vector<8x512xf32>
    %187 = tpu.matmul %180, %186, %cst_78 {dimension_numbers = #tpu.dot_dimension_numbers<[1], [0], [0], [1], [0, 0, 1, 1], [], []>} : vector<8x128xf32>, vector<128x512xf32>, vector<8x512xf32> -> vector<8x512xf32>
    %188 = arith.addf %185, %187 : vector<8x512xf32>
    %189 = vector.extract_strided_slice %188 {offsets = [0, 0], sizes = [8, 128], strides = [1, 1]} : vector<8x512xf32> to vector<8x128xf32>
    %cst_79 = arith.constant 5.000000e-01 : f32
    %190 = vector.broadcast %cst_79 : f32 to vector<8x128xf32>
    %191 = arith.mulf %190, %189 : vector<8x128xf32>
    %192 = math.tanh %191 : vector<8x128xf32>
    %cst_80 = arith.constant 1.000000e+00 : f32
    %193 = vector.broadcast %cst_80 : f32 to vector<8x128xf32>
    %194 = arith.addf %192, %193 : vector<8x128xf32>
    %cst_81 = arith.constant 5.000000e-01 : f32
    %195 = vector.broadcast %cst_81 : f32 to vector<8x128xf32>
    %196 = arith.mulf %195, %194 : vector<8x128xf32>
    %197 = vector.extract_strided_slice %188 {offsets = [0, 128], sizes = [8, 128], strides = [1, 1]} : vector<8x512xf32> to vector<8x128xf32>
    %cst_82 = arith.constant 5.000000e-01 : f32
    %198 = vector.broadcast %cst_82 : f32 to vector<8x128xf32>
    %199 = arith.mulf %198, %197 : vector<8x128xf32>
    %200 = math.tanh %199 : vector<8x128xf32>
    %cst_83 = arith.constant 1.000000e+00 : f32
    %201 = vector.broadcast %cst_83 : f32 to vector<8x128xf32>
    %202 = arith.addf %200, %201 : vector<8x128xf32>
    %cst_84 = arith.constant 5.000000e-01 : f32
    %203 = vector.broadcast %cst_84 : f32 to vector<8x128xf32>
    %204 = arith.mulf %203, %202 : vector<8x128xf32>
    %205 = vector.extract_strided_slice %188 {offsets = [0, 256], sizes = [8, 128], strides = [1, 1]} : vector<8x512xf32> to vector<8x128xf32>
    %206 = math.tanh %205 : vector<8x128xf32>
    %207 = vector.extract_strided_slice %188 {offsets = [0, 384], sizes = [8, 128], strides = [1, 1]} : vector<8x512xf32> to vector<8x128xf32>
    %cst_85 = arith.constant 5.000000e-01 : f32
    %208 = vector.broadcast %cst_85 : f32 to vector<8x128xf32>
    %209 = arith.mulf %208, %207 : vector<8x128xf32>
    %210 = math.tanh %209 : vector<8x128xf32>
    %cst_86 = arith.constant 1.000000e+00 : f32
    %211 = vector.broadcast %cst_86 : f32 to vector<8x128xf32>
    %212 = arith.addf %210, %211 : vector<8x128xf32>
    %cst_87 = arith.constant 5.000000e-01 : f32
    %213 = vector.broadcast %cst_87 : f32 to vector<8x128xf32>
    %214 = arith.mulf %213, %212 : vector<8x128xf32>
    %215 = arith.mulf %204, %181 : vector<8x128xf32>
    %216 = arith.mulf %196, %206 : vector<8x128xf32>
    %217 = arith.addf %215, %216 : vector<8x128xf32>
    %218 = math.tanh %217 : vector<8x128xf32>
    %219 = arith.mulf %214, %218 : vector<8x128xf32>
    %220 = arith.addi %11, %c4_i32 : i32
    %c8_i32_88 = arith.constant 8 : i32
    %221 = arith.cmpi slt, %220, %c8_i32_88 : i32
    %222 = arith.select %221, %219, %180 : vector<8x128xf32>
    %223 = arith.select %221, %217, %181 : vector<8x128xf32>
    %c5_i32 = arith.constant 5 : i32
    %c8_i32_89 = arith.constant 8 : i32
    %224 = arith.muli %c5_i32, %c8_i32_89 : i32
    %225 = tpu.assume_multiple %224, 8 : i32
    %226 = arith.index_cast %225 : i32 to index
    %c0_90 = arith.constant 0 : index
    %227 = vector.load %arg18[%226, %c0_90] : memref<64x512xf32, #tpu.memory_space<vmem>>, vector<8x512xf32>
    %c0_91 = arith.constant 0 : index
    %c0_92 = arith.constant 0 : index
    %228 = vector.load %arg6[%c0_91, %c0_92] : memref<128x512xf32, #tpu.memory_space<vmem>>, vector<128x512xf32>
    %cst_93 = arith.constant dense<0.000000e+00> : vector<8x512xf32>
    %229 = tpu.matmul %222, %228, %cst_93 {dimension_numbers = #tpu.dot_dimension_numbers<[1], [0], [0], [1], [0, 0, 1, 1], [], []>} : vector<8x128xf32>, vector<128x512xf32>, vector<8x512xf32> -> vector<8x512xf32>
    %230 = arith.addf %227, %229 : vector<8x512xf32>
    %231 = vector.extract_strided_slice %230 {offsets = [0, 0], sizes = [8, 128], strides = [1, 1]} : vector<8x512xf32> to vector<8x128xf32>
    %cst_94 = arith.constant 5.000000e-01 : f32
    %232 = vector.broadcast %cst_94 : f32 to vector<8x128xf32>
    %233 = arith.mulf %232, %231 : vector<8x128xf32>
    %234 = math.tanh %233 : vector<8x128xf32>
    %cst_95 = arith.constant 1.000000e+00 : f32
    %235 = vector.broadcast %cst_95 : f32 to vector<8x128xf32>
    %236 = arith.addf %234, %235 : vector<8x128xf32>
    %cst_96 = arith.constant 5.000000e-01 : f32
    %237 = vector.broadcast %cst_96 : f32 to vector<8x128xf32>
    %238 = arith.mulf %237, %236 : vector<8x128xf32>
    %239 = vector.extract_strided_slice %230 {offsets = [0, 128], sizes = [8, 128], strides = [1, 1]} : vector<8x512xf32> to vector<8x128xf32>
    %cst_97 = arith.constant 5.000000e-01 : f32
    %240 = vector.broadcast %cst_97 : f32 to vector<8x128xf32>
    %241 = arith.mulf %240, %239 : vector<8x128xf32>
    %242 = math.tanh %241 : vector<8x128xf32>
    %cst_98 = arith.constant 1.000000e+00 : f32
    %243 = vector.broadcast %cst_98 : f32 to vector<8x128xf32>
    %244 = arith.addf %242, %243 : vector<8x128xf32>
    %cst_99 = arith.constant 5.000000e-01 : f32
    %245 = vector.broadcast %cst_99 : f32 to vector<8x128xf32>
    %246 = arith.mulf %245, %244 : vector<8x128xf32>
    %247 = vector.extract_strided_slice %230 {offsets = [0, 256], sizes = [8, 128], strides = [1, 1]} : vector<8x512xf32> to vector<8x128xf32>
    %248 = math.tanh %247 : vector<8x128xf32>
    %249 = vector.extract_strided_slice %230 {offsets = [0, 384], sizes = [8, 128], strides = [1, 1]} : vector<8x512xf32> to vector<8x128xf32>
    %cst_100 = arith.constant 5.000000e-01 : f32
    %250 = vector.broadcast %cst_100 : f32 to vector<8x128xf32>
    %251 = arith.mulf %250, %249 : vector<8x128xf32>
    %252 = math.tanh %251 : vector<8x128xf32>
    %cst_101 = arith.constant 1.000000e+00 : f32
    %253 = vector.broadcast %cst_101 : f32 to vector<8x128xf32>
    %254 = arith.addf %252, %253 : vector<8x128xf32>
    %cst_102 = arith.constant 5.000000e-01 : f32
    %255 = vector.broadcast %cst_102 : f32 to vector<8x128xf32>
    %256 = arith.mulf %255, %254 : vector<8x128xf32>
    %257 = arith.mulf %246, %223 : vector<8x128xf32>
    %258 = arith.mulf %238, %248 : vector<8x128xf32>
    %259 = arith.addf %257, %258 : vector<8x128xf32>
    %260 = math.tanh %259 : vector<8x128xf32>
    %261 = arith.mulf %256, %260 : vector<8x128xf32>
    %262 = arith.addi %11, %c5_i32 : i32
    %c8_i32_103 = arith.constant 8 : i32
    %263 = arith.cmpi slt, %262, %c8_i32_103 : i32
    %264 = arith.select %263, %261, %222 : vector<8x128xf32>
    %265 = arith.select %263, %259, %223 : vector<8x128xf32>
    %c6_i32 = arith.constant 6 : i32
    %c8_i32_104 = arith.constant 8 : i32
    %266 = arith.muli %c6_i32, %c8_i32_104 : i32
    %267 = tpu.assume_multiple %266, 8 : i32
    %268 = arith.index_cast %267 : i32 to index
    %c0_105 = arith.constant 0 : index
    %269 = vector.load %arg18[%268, %c0_105] : memref<64x512xf32, #tpu.memory_space<vmem>>, vector<8x512xf32>
    %c0_106 = arith.constant 0 : index
    %c0_107 = arith.constant 0 : index
    %270 = vector.load %arg6[%c0_106, %c0_107] : memref<128x512xf32, #tpu.memory_space<vmem>>, vector<128x512xf32>
    %cst_108 = arith.constant dense<0.000000e+00> : vector<8x512xf32>
    %271 = tpu.matmul %264, %270, %cst_108 {dimension_numbers = #tpu.dot_dimension_numbers<[1], [0], [0], [1], [0, 0, 1, 1], [], []>} : vector<8x128xf32>, vector<128x512xf32>, vector<8x512xf32> -> vector<8x512xf32>
    %272 = arith.addf %269, %271 : vector<8x512xf32>
    %273 = vector.extract_strided_slice %272 {offsets = [0, 0], sizes = [8, 128], strides = [1, 1]} : vector<8x512xf32> to vector<8x128xf32>
    %cst_109 = arith.constant 5.000000e-01 : f32
    %274 = vector.broadcast %cst_109 : f32 to vector<8x128xf32>
    %275 = arith.mulf %274, %273 : vector<8x128xf32>
    %276 = math.tanh %275 : vector<8x128xf32>
    %cst_110 = arith.constant 1.000000e+00 : f32
    %277 = vector.broadcast %cst_110 : f32 to vector<8x128xf32>
    %278 = arith.addf %276, %277 : vector<8x128xf32>
    %cst_111 = arith.constant 5.000000e-01 : f32
    %279 = vector.broadcast %cst_111 : f32 to vector<8x128xf32>
    %280 = arith.mulf %279, %278 : vector<8x128xf32>
    %281 = vector.extract_strided_slice %272 {offsets = [0, 128], sizes = [8, 128], strides = [1, 1]} : vector<8x512xf32> to vector<8x128xf32>
    %cst_112 = arith.constant 5.000000e-01 : f32
    %282 = vector.broadcast %cst_112 : f32 to vector<8x128xf32>
    %283 = arith.mulf %282, %281 : vector<8x128xf32>
    %284 = math.tanh %283 : vector<8x128xf32>
    %cst_113 = arith.constant 1.000000e+00 : f32
    %285 = vector.broadcast %cst_113 : f32 to vector<8x128xf32>
    %286 = arith.addf %284, %285 : vector<8x128xf32>
    %cst_114 = arith.constant 5.000000e-01 : f32
    %287 = vector.broadcast %cst_114 : f32 to vector<8x128xf32>
    %288 = arith.mulf %287, %286 : vector<8x128xf32>
    %289 = vector.extract_strided_slice %272 {offsets = [0, 256], sizes = [8, 128], strides = [1, 1]} : vector<8x512xf32> to vector<8x128xf32>
    %290 = math.tanh %289 : vector<8x128xf32>
    %291 = vector.extract_strided_slice %272 {offsets = [0, 384], sizes = [8, 128], strides = [1, 1]} : vector<8x512xf32> to vector<8x128xf32>
    %cst_115 = arith.constant 5.000000e-01 : f32
    %292 = vector.broadcast %cst_115 : f32 to vector<8x128xf32>
    %293 = arith.mulf %292, %291 : vector<8x128xf32>
    %294 = math.tanh %293 : vector<8x128xf32>
    %cst_116 = arith.constant 1.000000e+00 : f32
    %295 = vector.broadcast %cst_116 : f32 to vector<8x128xf32>
    %296 = arith.addf %294, %295 : vector<8x128xf32>
    %cst_117 = arith.constant 5.000000e-01 : f32
    %297 = vector.broadcast %cst_117 : f32 to vector<8x128xf32>
    %298 = arith.mulf %297, %296 : vector<8x128xf32>
    %299 = arith.mulf %288, %265 : vector<8x128xf32>
    %300 = arith.mulf %280, %290 : vector<8x128xf32>
    %301 = arith.addf %299, %300 : vector<8x128xf32>
    %302 = math.tanh %301 : vector<8x128xf32>
    %303 = arith.mulf %298, %302 : vector<8x128xf32>
    %304 = arith.addi %11, %c6_i32 : i32
    %c8_i32_118 = arith.constant 8 : i32
    %305 = arith.cmpi slt, %304, %c8_i32_118 : i32
    %306 = arith.select %305, %303, %264 : vector<8x128xf32>
    %307 = arith.select %305, %301, %265 : vector<8x128xf32>
    %c7_i32 = arith.constant 7 : i32
    %c8_i32_119 = arith.constant 8 : i32
    %308 = arith.muli %c7_i32, %c8_i32_119 : i32
    %309 = tpu.assume_multiple %308, 8 : i32
    %310 = arith.index_cast %309 : i32 to index
    %c0_120 = arith.constant 0 : index
    %311 = vector.load %arg18[%310, %c0_120] : memref<64x512xf32, #tpu.memory_space<vmem>>, vector<8x512xf32>
    %c0_121 = arith.constant 0 : index
    %c0_122 = arith.constant 0 : index
    %312 = vector.load %arg6[%c0_121, %c0_122] : memref<128x512xf32, #tpu.memory_space<vmem>>, vector<128x512xf32>
    %cst_123 = arith.constant dense<0.000000e+00> : vector<8x512xf32>
    %313 = tpu.matmul %306, %312, %cst_123 {dimension_numbers = #tpu.dot_dimension_numbers<[1], [0], [0], [1], [0, 0, 1, 1], [], []>} : vector<8x128xf32>, vector<128x512xf32>, vector<8x512xf32> -> vector<8x512xf32>
    %314 = arith.addf %311, %313 : vector<8x512xf32>
    %315 = vector.extract_strided_slice %314 {offsets = [0, 0], sizes = [8, 128], strides = [1, 1]} : vector<8x512xf32> to vector<8x128xf32>
    %cst_124 = arith.constant 5.000000e-01 : f32
    %316 = vector.broadcast %cst_124 : f32 to vector<8x128xf32>
    %317 = arith.mulf %316, %315 : vector<8x128xf32>
    %318 = math.tanh %317 : vector<8x128xf32>
    %cst_125 = arith.constant 1.000000e+00 : f32
    %319 = vector.broadcast %cst_125 : f32 to vector<8x128xf32>
    %320 = arith.addf %318, %319 : vector<8x128xf32>
    %cst_126 = arith.constant 5.000000e-01 : f32
    %321 = vector.broadcast %cst_126 : f32 to vector<8x128xf32>
    %322 = arith.mulf %321, %320 : vector<8x128xf32>
    %323 = vector.extract_strided_slice %314 {offsets = [0, 128], sizes = [8, 128], strides = [1, 1]} : vector<8x512xf32> to vector<8x128xf32>
    %cst_127 = arith.constant 5.000000e-01 : f32
    %324 = vector.broadcast %cst_127 : f32 to vector<8x128xf32>
    %325 = arith.mulf %324, %323 : vector<8x128xf32>
    %326 = math.tanh %325 : vector<8x128xf32>
    %cst_128 = arith.constant 1.000000e+00 : f32
    %327 = vector.broadcast %cst_128 : f32 to vector<8x128xf32>
    %328 = arith.addf %326, %327 : vector<8x128xf32>
    %cst_129 = arith.constant 5.000000e-01 : f32
    %329 = vector.broadcast %cst_129 : f32 to vector<8x128xf32>
    %330 = arith.mulf %329, %328 : vector<8x128xf32>
    %331 = vector.extract_strided_slice %314 {offsets = [0, 256], sizes = [8, 128], strides = [1, 1]} : vector<8x512xf32> to vector<8x128xf32>
    %332 = math.tanh %331 : vector<8x128xf32>
    %333 = vector.extract_strided_slice %314 {offsets = [0, 384], sizes = [8, 128], strides = [1, 1]} : vector<8x512xf32> to vector<8x128xf32>
    %cst_130 = arith.constant 5.000000e-01 : f32
    %334 = vector.broadcast %cst_130 : f32 to vector<8x128xf32>
    %335 = arith.mulf %334, %333 : vector<8x128xf32>
    %336 = math.tanh %335 : vector<8x128xf32>
    %cst_131 = arith.constant 1.000000e+00 : f32
    %337 = vector.broadcast %cst_131 : f32 to vector<8x128xf32>
    %338 = arith.addf %336, %337 : vector<8x128xf32>
    %cst_132 = arith.constant 5.000000e-01 : f32
    %339 = vector.broadcast %cst_132 : f32 to vector<8x128xf32>
    %340 = arith.mulf %339, %338 : vector<8x128xf32>
    %341 = arith.mulf %330, %307 : vector<8x128xf32>
    %342 = arith.mulf %322, %332 : vector<8x128xf32>
    %343 = arith.addf %341, %342 : vector<8x128xf32>
    %344 = math.tanh %343 : vector<8x128xf32>
    %345 = arith.mulf %340, %344 : vector<8x128xf32>
    %346 = arith.addi %11, %c7_i32 : i32
    %c8_i32_133 = arith.constant 8 : i32
    %347 = arith.cmpi slt, %346, %c8_i32_133 : i32
    %348 = arith.select %347, %345, %306 : vector<8x128xf32>
    %349 = arith.select %347, %343, %307 : vector<8x128xf32>
    %c8_i32_134 = arith.constant 8 : i32
    %c0_135 = arith.constant 0 : index
    %c0_136 = arith.constant 0 : index
    %350 = vector.load %arg15[%c0_135, %c0_136] : memref<8x128xf32, #tpu.memory_space<vmem>>, vector<8x128xf32>
    tpu.vector_store %arg15[%c0_135, %c0_136], %348 {strides = array<i32>} : memref<8x128xf32, #tpu.memory_space<vmem>>, vector<8x128xf32>,
    %c0_137 = arith.constant 0 : index
    %c0_138 = arith.constant 0 : index
    %351 = vector.load %arg16[%c0_137, %c0_138] : memref<8x128xf32, #tpu.memory_space<vmem>>, vector<8x128xf32>
    tpu.vector_store %arg16[%c0_137, %c0_138], %349 {strides = array<i32>} : memref<8x128xf32, #tpu.memory_space<vmem>>, vector<8x128xf32>,
    %c0_i32_139 = arith.constant 0 : i32
    %352 = arith.cmpi eq, %arg1, %c0_i32_139 : i32
    %353 = arith.extui %352 : i1 to i32
    %c0_i32_140 = arith.constant 0 : i32
    %354 = arith.cmpi ne, %353, %c0_i32_140 : i32
    scf.if %354 {
      %c0_141 = arith.constant 0 : index
      %c0_142 = arith.constant 0 : index
      %355 = vector.load %arg9[%c0_141, %c0_142] : memref<128x128xf32, #tpu.memory_space<vmem>>, vector<128x128xf32>
      %cst_143 = arith.constant dense<0.000000e+00> : vector<8x128xf32>
      %356 = tpu.matmul %348, %355, %cst_143 {dimension_numbers = #tpu.dot_dimension_numbers<[1], [0], [0], [1], [0, 0, 1, 1], [], []>} : vector<8x128xf32>, vector<128x128xf32>, vector<8x128xf32> -> vector<8x128xf32>
      %c0_144 = arith.constant 0 : index
      %c0_145 = arith.constant 0 : index
      %357 = vector.load %arg17[%c0_144, %c0_145] : memref<8x128xf32, #tpu.memory_space<vmem>>, vector<8x128xf32>
      %358 = arith.addf %356, %357 : vector<8x128xf32>
      %cst_146 = arith.constant 0.000000e+00 : f32
      %359 = vector.broadcast %cst_146 : f32 to vector<8x128xf32>
      %360 = arith.maximumf %358, %359 : vector<8x128xf32>
      %c0_147 = arith.constant 0 : index
      %c0_148 = arith.constant 0 : index
      %361 = vector.load %arg12[%c0_147, %c0_148] : memref<128x128xf32, #tpu.memory_space<vmem>>, vector<128x128xf32>
      %cst_149 = arith.constant dense<0.000000e+00> : vector<8x128xf32>
      %362 = tpu.matmul %360, %361, %cst_149 {dimension_numbers = #tpu.dot_dimension_numbers<[1], [0], [0], [1], [0, 0, 1, 1], [], []>} : vector<8x128xf32>, vector<128x128xf32>, vector<8x128xf32> -> vector<8x128xf32>
      %c0_150 = arith.constant 0 : index
      %c0_151 = arith.constant 0 : index
      %363 = vector.load %arg13[%c0_150, %c0_151] : memref<1x128xf32, #tpu.memory_space<vmem>>, vector<1x128xf32>
      %364 = vector.broadcast %363 : vector<1x128xf32> to vector<8x128xf32>
      %365 = arith.addf %362, %364 : vector<8x128xf32>
      %c0_152 = arith.constant 0 : index
      %c0_153 = arith.constant 0 : index
      %366 = vector.load %arg14[%c0_152, %c0_153] : memref<8x128xf32, #tpu.memory_space<vmem>>, vector<8x128xf32>
      tpu.vector_store %arg14[%c0_152, %c0_153], %365 {strides = array<i32>} : memref<8x128xf32, #tpu.memory_space<vmem>>, vector<8x128xf32>,
    } else {
    }
    return
  }
  func.func @transform_0(%arg0: i32, %arg1: i32) -> (i32, i32, i32) {
    %c0_i32 = arith.constant 0 : i32
    %c0_i32_0 = arith.constant 0 : i32
    return %arg1, %arg0, %c0_i32 : i32, i32, i32
  }
  func.func @transform_1(%arg0: i32, %arg1: i32) -> (i32, i32) {
    %c0_i32 = arith.constant 0 : i32
    %c0_i32_0 = arith.constant 0 : i32
    return %arg0, %c0_i32 : i32, i32
  }
  func.func @transform_2(%arg0: i32, %arg1: i32) -> (i32, i32) {
    %c0_i32 = arith.constant 0 : i32
    %c0_i32_0 = arith.constant 0 : i32
    %c0_i32_1 = arith.constant 0 : i32
    return %c0_i32, %c0_i32_0 : i32, i32
  }
  func.func @transform_3(%arg0: i32, %arg1: i32) -> (i32, i32) {
    %c0_i32 = arith.constant 0 : i32
    %c0_i32_0 = arith.constant 0 : i32
    %c0_i32_1 = arith.constant 0 : i32
    return %c0_i32, %c0_i32_0 : i32, i32
  }
  func.func @transform_4(%arg0: i32, %arg1: i32) -> (i32, i32) {
    %c0_i32 = arith.constant 0 : i32
    %c0_i32_0 = arith.constant 0 : i32
    %c0_i32_1 = arith.constant 0 : i32
    return %c0_i32, %c0_i32_0 : i32, i32
  }
  func.func @transform_5(%arg0: i32, %arg1: i32) -> (i32, i32) {
    %c0_i32 = arith.constant 0 : i32
    %c0_i32_0 = arith.constant 0 : i32
    %c0_i32_1 = arith.constant 0 : i32
    return %c0_i32, %c0_i32_0 : i32, i32
  }
  func.func @transform_6(%arg0: i32, %arg1: i32) -> (i32, i32) {
    %c0_i32 = arith.constant 0 : i32
    %c0_i32_0 = arith.constant 0 : i32
    %c0_i32_1 = arith.constant 0 : i32
    return %c0_i32, %c0_i32_0 : i32, i32
  }
  func.func @transform_7(%arg0: i32, %arg1: i32) -> (i32, i32) {
    %c0_i32 = arith.constant 0 : i32
    %c0_i32_0 = arith.constant 0 : i32
    %c0_i32_1 = arith.constant 0 : i32
    return %c0_i32, %c0_i32_0 : i32, i32
  }
  func.func @transform_8(%arg0: i32, %arg1: i32) -> (i32, i32) {
    %c0_i32 = arith.constant 0 : i32
    %c0_i32_0 = arith.constant 0 : i32
    %c0_i32_1 = arith.constant 0 : i32
    return %c0_i32, %c0_i32_0 : i32, i32
  }
  func.func @transform_9(%arg0: i32, %arg1: i32) -> (i32, i32) {
    %c0_i32 = arith.constant 0 : i32
    %c0_i32_0 = arith.constant 0 : i32
    %c0_i32_1 = arith.constant 0 : i32
    return %c0_i32, %c0_i32_0 : i32, i32
  }
  func.func @transform_10(%arg0: i32, %arg1: i32) -> (i32, i32) {
    %c0_i32 = arith.constant 0 : i32
    %c0_i32_0 = arith.constant 0 : i32
    %c0_i32_1 = arith.constant 0 : i32
    return %c0_i32, %c0_i32_0 : i32, i32
  }
  func.func @transform_11(%arg0: i32, %arg1: i32) -> (i32, i32) {
    %c0_i32 = arith.constant 0 : i32
    %c0_i32_0 = arith.constant 0 : i32
    %c0_i32_1 = arith.constant 0 : i32
    return %c0_i32, %c0_i32_0 : i32, i32
  }
  func.func @transform_12(%arg0: i32, %arg1: i32) -> (i32, i32) {
    %c0_i32 = arith.constant 0 : i32
    %c0_i32_0 = arith.constant 0 : i32
    return %arg0, %c0_i32 : i32, i32
  }
}

</mosaic_0001>

<llo_original>
// kernel: mental_state_network.1
$region0: #{mental_state_network.1}
  #allocation0 [shape = 'u32[]', space=smem, size = 0x4, offset = 0x4, fixed_abs, tag = 'smem constant byte address 0x4 - core index']
  #allocation1 [shape = 'u32[144,128]{1,0:T(1,128)}', space=vmem, size = 0x12000, scoped, tag = 'internal scratch']
  #allocation2 [shape = 'f32[8,128]{1,0:T(8,128)}', space=vmem, size = 0x1000, scoped, tag = 'scratch operand']
  #allocation3 [shape = 'f32[8,128]{1,0:T(8,128)}', space=vmem, size = 0x1000, scoped, tag = 'scratch operand']
  #allocation4 [shape = 'f32[8,128]{1,0:T(8,128)}', space=vmem, size = 0x1000, scoped, tag = 'scratch operand']
  #allocation5 [shape = 'f32[64,512]{1,0:T(8,128)}', space=vmem, size = 0x20000, scoped, tag = 'scratch operand']
  %s0 = inlined_call_operand.vmem [shape: f32[8,8,16], index: 0, kind: input, shape index: {}]
  %s1 = inlined_call_operand.vmem [shape: f32[8,8], index: 1, kind: input, shape index: {}]
  %s2 = inlined_call_operand.hbm [shape: f32[16,512], index: 2, kind: input, shape index: {}]
  %s3 = inlined_call_operand.vmem [shape: f32[1,512], index: 3, kind: input, shape index: {}]
  %s4 = inlined_call_operand.hbm [shape: f32[128,512], index: 4, kind: input, shape index: {}]
  %s5 = inlined_call_operand.vmem [shape: f32[8,128], index: 5, kind: input, shape index: {}]
  %s6 = inlined_call_operand.vmem [shape: f32[1,128], index: 6, kind: input, shape index: {}]
  %s7 = inlined_call_operand.vmem [shape: f32[128,128], index: 7, kind: input, shape index: {}]
  %s8 = inlined_call_operand.hbm [shape: f32[128,128], index: 8, kind: input, shape index: {}]
  %s9 = inlined_call_operand.vmem [shape: f32[1,128], index: 9, kind: input, shape index: {}]
  %s10 = inlined_call_operand.hbm [shape: f32[128,128], index: 10, kind: input, shape index: {}]
  %s11 = inlined_call_operand.vmem [shape: f32[1,128], index: 11, kind: input, shape index: {}]
  %s12 = inlined_call_operand.vmem [shape: f32[8,128], index: 12, kind: output, shape index: {}]
  %s13 = sld [smem:[#allocation0]]
  $region82: #{mental_state_network.1} parent=0
    _
  %s15 = ssub.s32 1, %s13
  %s16 = scalar_select 0, %s15, %s13
  $region1: #{mental_state_network.1} parent=0
    #allocation6 [shape = 'u8[32768]{0}', space=vmem, size = 0x8000, scoped, tag = 'input window, operand 2, single buffered']
    #allocation7 [shape = 's32[1]{0}', space=sflag, size = 0x4, scoped, tag = 'scoped memory for mental_state_network.1']
    #allocation8 [shape = 'u8[262144]{0}', space=vmem, size = 0x40000, scoped, tag = 'input window, operand 4, single buffered']
    #allocation9 [shape = 's32[1]{0}', space=sflag, size = 0x4, scoped, tag = 'scoped memory for mental_state_network.1']
    #allocation10 [shape = 'u8[65536]{0}', space=vmem, size = 0x10000, scoped, tag = 'input window, operand 8, single buffered']
    #allocation11 [shape = 'u8[65536]{0}', space=vmem, size = 0x10000, scoped, tag = 'input window, operand 10, single buffered']
    #allocation12 [shape = 's32[1]{0}', space=sflag, size = 0x4, scoped, tag = 'scoped memory for mental_state_network.1']
    %17 = vsyncpa [#allocation7], 0
    %18 = vsyncpa [#allocation9], 0
    %19 = vsyncpa [#allocation12], 0
    // Predicated region
    $region2: #{mental_state_network.1} parent=1 // pred_check
      _
    $region3: #{mental_state_network.1} parent=1 // pred_check_branch
      %21 = sbr.rel (0) target = $region5
    $region4: #{mental_state_network.1} parent=1 // pred_region
      _
    $region5: #{mental_state_network.1} parent=1 // pred_fallthru
      _
    // Predicated region
    $region6: #{mental_state_network.1} parent=1 // pred_check
      _
    $region7: #{mental_state_network.1} parent=1 // pred_check_branch
      %23 = sbr.rel (0) target = $region9
    $region8: #{mental_state_network.1} parent=1 // pred_region
      _
    $region9: #{mental_state_network.1} parent=1 // pred_fallthru
      _
    // Predicated region
    $region10: #{mental_state_network.1} parent=1 // pred_check
      _
    $region11: #{mental_state_network.1} parent=1 // pred_check_branch
      %25 = sbr.rel (0) target = $region13
    $region12: #{mental_state_network.1} parent=1 // pred_region
      %s27 = ssub.s32 1024, 1024
      %28 = vsyncadd [#allocation7], %s27
      %s29 = sshll.u32 [#allocation6], 4
      %s30 = int_to_ptr.vmem [resolvable:$true] %s29
      %35 = dma.hbm_to_vmem [thread:$0]  %s2, 1024, %s30, [#allocation7], 512, 512, 32
    $region13: #{mental_state_network.1} parent=1 // pred_fallthru
      _
    // Predicated region
    $region14: #{mental_state_network.1} parent=1 // pred_check
      _
    $region15: #{mental_state_network.1} parent=1 // pred_check_branch
      %37 = sbr.rel (0) target = $region17
    $region16: #{mental_state_network.1} parent=1 // pred_region
      _
    $region17: #{mental_state_network.1} parent=1 // pred_fallthru
      _
    // Predicated region
    $region18: #{mental_state_network.1} parent=1 // pred_check
      _
    $region19: #{mental_state_network.1} parent=1 // pred_check_branch
      %39 = sbr.rel (0) target = $region21
    $region20: #{mental_state_network.1} parent=1 // pred_region
      %s41 = ssub.s32 8192, 8192
      %42 = vsyncadd [#allocation9], %s41
      %s43 = sshll.u32 [#allocation8], 4
      %s44 = int_to_ptr.vmem [resolvable:$true] %s43
      %49 = dma.hbm_to_vmem [thread:$0]  %s4, 8192, %s44, [#allocation9], 512, 512, 32
    $region21: #{mental_state_network.1} parent=1 // pred_fallthru
      _
    // Predicated region
    $region22: #{mental_state_network.1} parent=1 // pred_check
      _
    $region23: #{mental_state_network.1} parent=1 // pred_check_branch
      %51 = sbr.rel (0) target = $region25
    $region24: #{mental_state_network.1} parent=1 // pred_region
      _
    $region25: #{mental_state_network.1} parent=1 // pred_fallthru
      _
    // Predicated region
    $region26: #{mental_state_network.1} parent=1 // pred_check
      _
    $region27: #{mental_state_network.1} parent=1 // pred_check_branch
      %53 = sbr.rel (0) target = $region29
    $region28: #{mental_state_network.1} parent=1 // pred_region
      _
    $region29: #{mental_state_network.1} parent=1 // pred_fallthru
      _
    // Predicated region
    $region30: #{mental_state_network.1} parent=1 // pred_check
      _
    $region31: #{mental_state_network.1} parent=1 // pred_check_branch
      %55 = sbr.rel (0) target = $region33
    $region32: #{mental_state_network.1} parent=1 // pred_region
      _
    $region33: #{mental_state_network.1} parent=1 // pred_fallthru
      _
    // Predicated region
    $region34: #{mental_state_network.1} parent=1 // pred_check
      _
    $region35: #{mental_state_network.1} parent=1 // pred_check_branch
      %57 = sbr.rel (0) target = $region37
    $region36: #{mental_state_network.1} parent=1 // pred_region
      %s59 = ssub.s32 2048, 2048
      %60 = vsyncadd [#allocation9], %s59
      %s61 = sshll.u32 [#allocation10], 4
      %s62 = int_to_ptr.vmem [resolvable:$true] %s61
      %67 = dma.hbm_to_vmem [thread:$0]  %s8, 2048, %s62, [#allocation9], 128, 128, 8
    $region37: #{mental_state_network.1} parent=1 // pred_fallthru
      _
    // Predicated region
    $region38: #{mental_state_network.1} parent=1 // pred_check
      _
    $region39: #{mental_state_network.1} parent=1 // pred_check_branch
      %69 = sbr.rel (0) target = $region41
    $region40: #{mental_state_network.1} parent=1 // pred_region
      _
    $region41: #{mental_state_network.1} parent=1 // pred_fallthru
      _
    // Predicated region
    $region42: #{mental_state_network.1} parent=1 // pred_check
      _
    $region43: #{mental_state_network.1} parent=1 // pred_check_branch
      %71 = sbr.rel (0) target = $region45
    $region44: #{mental_state_network.1} parent=1 // pred_region
      %s73 = ssub.s32 2048, 2048
      %74 = vsyncadd [#allocation12], %s73
      %s75 = sshll.u32 [#allocation11], 4
      %s76 = int_to_ptr.vmem [resolvable:$true] %s75
      %81 = dma.hbm_to_vmem [thread:$0]  %s10, 2048, %s76, [#allocation12], 128, 128, 8
    $region45: #{mental_state_network.1} parent=1 // pred_fallthru
      _
    // Predicated region
    $region46: #{mental_state_network.1} parent=1 // pred_check
      _
    $region47: #{mental_state_network.1} parent=1 // pred_check_branch
      %83 = sbr.rel (0) target = $region49
    $region48: #{mental_state_network.1} parent=1 // pred_region
      _
    $region49: #{mental_state_network.1} parent=1 // pred_fallthru
      _
    // Predicated region
    $region50: #{mental_state_network.1} parent=1 // pred_check
      _
    $region51: #{mental_state_network.1} parent=1 // pred_check_branch
      %85 = sbr.rel (0) target = $region53
    $region52: #{mental_state_network.1} parent=1 // pred_region
      %86 = dma.done [#allocation7], 1024
    $region53: #{mental_state_network.1} parent=1 // pred_fallthru
      _
    // Predicated region
    $region54: #{mental_state_network.1} parent=1 // pred_check
      _
    $region55: #{mental_state_network.1} parent=1 // pred_check_branch
      %88 = sbr.rel (0) target = $region57
    $region56: #{mental_state_network.1} parent=1 // pred_region
      %89 = dma.done [#allocation9], 8192
    $region57: #{mental_state_network.1} parent=1 // pred_fallthru
      _
    // Predicated region
    $region58: #{mental_state_network.1} parent=1 // pred_check
      _
    $region59: #{mental_state_network.1} parent=1 // pred_check_branch
      %91 = sbr.rel (0) target = $region61
    $region60: #{mental_state_network.1} parent=1 // pred_region
      %92 = dma.done [#allocation9], 2048
    $region61: #{mental_state_network.1} parent=1 // pred_fallthru
      _
    // Predicated region
    $region62: #{mental_state_network.1} parent=1 // pred_check
      _
    $region63: #{mental_state_network.1} parent=1 // pred_check_branch
      %94 = sbr.rel (0) target = $region65
    $region64: #{mental_state_network.1} parent=1 // pred_region
      %95 = dma.done [#allocation12], 2048
    $region65: #{mental_state_network.1} parent=1 // pred_fallthru
      _
    %p96 = scmp.eq.s32.totalorder 0, 0
    // Predicated region
    $region66: #{mental_state_network.1} parent=1 // pred_check
      %p97 = pneg %p96
    $region67: #{mental_state_network.1} parent=1 // pred_check_branch
      %99 = sbr.rel (%p97) target = $region69
    $region68: #{mental_state_network.1} parent=1 // pred_region
      %100 = vst [vmem:[#allocation2] sm:$0xff] 0.0
      %101 = vst [vmem:[#allocation3] sm:$0xff] 0.0
      %v102 = vld [vmem:[%s1] sm:$0xff]
      %v103 = vld [vmem:[%s5] sm:$0xff]
      %v104 = vld [vmem:[%s6] sm:$0x1]
      %v106 = vlaneseq
      %v107 = vshrl.u32 %v106, 7
      %v108 = vsub.s32 0, %v107
      %v109 = vrot.slane %v104, %v108
      %vm111 = vcmask 64512
      %v113 = vsel %vm111, %v102, 0
      %115 = vmatprep.subr.mxu0 0.0
      %116 = vmatpush1.msra.mxu0 %v103
      %117 = vmatprep.subr.mxu0 0.0
      %118 = vmatpush1.msra.mxu0 0.0
      %119 = vmatprep.subr.mxu0 0.0
      %120 = vmatpush1.msra.mxu0 0.0
      %121 = vmatprep.subr.mxu0 0.0
      %122 = vmatpush1.msra.mxu0 0.0
      %123 = vmatprep.subr.mxu0 0.0
      %124 = vmatpush1.msra.mxu0 0.0
      %125 = vmatprep.subr.mxu0 0.0
      %126 = vmatpush1.msra.mxu0 0.0
      %127 = vmatprep.subr.mxu0 0.0
      %128 = vmatpush1.msra.mxu0 0.0
      %129 = vmatprep.subr.mxu0 0.0
      %130 = vmatpush1.msra.mxu0 0.0
      %131 = vmatprep.subr.mxu0 0.0
      %132 = vmatpush1.msra.mxu0 0.0
      %133 = vmatprep.subr.mxu0 0.0
      %134 = vmatpush1.msra.mxu0 0.0
      %135 = vmatprep.subr.mxu0 0.0
      %136 = vmatpush1.msra.mxu0 0.0
      %137 = vmatprep.subr.mxu0 0.0
      %138 = vmatpush1.msra.mxu0 0.0
      %139 = vmatprep.subr.mxu0 0.0
      %140 = vmatpush1.msra.mxu0 0.0
      %141 = vmatprep.subr.mxu0 0.0
      %142 = vmatpush1.msra.mxu0 0.0
      %143 = vmatprep.subr.mxu0 0.0
      %144 = vmatpush1.msra.mxu0 0.0
      %145 = vmatprep.subr.mxu0 0.0
      %146 = vmatpush1.msra.mxu0 0.0
      %147 = vmatprep.subr.mxu0 0.0
      %148 = vmatpush1.msra.mxu0 0.0
      %149 = vmatprep.subr.mxu0 0.0
      %150 = vmatpush1.msra.mxu0 0.0
      %151 = vmatprep.subr.mxu0 0.0
      %152 = vmatpush1.msra.mxu0 0.0
      %153 = vmatprep.subr.mxu0 0.0
      %154 = vmatpush1.msra.mxu0 0.0
      %155 = vmatprep.subr.mxu0 0.0
      %156 = vmatpush1.msra.mxu0 0.0
      %157 = vmatprep.subr.mxu0 0.0
      %158 = vmatpush1.msra.mxu0 0.0
      %159 = vmatprep.subr.mxu0 0.0
      %160 = vmatpush1.msra.mxu0 0.0
      %161 = vmatprep.subr.mxu0 0.0
      %162 = vmatpush1.msra.mxu0 0.0
      %163 = vmatprep.subr.mxu0 0.0
      %164 = vmatpush1.msra.mxu0 0.0
      %165 = vmatprep.subr.mxu0 0.0
      %166 = vmatpush1.msra.mxu0 0.0
      %167 = vmatprep.subr.mxu0 0.0
      %168 = vmatpush1.msra.mxu0 0.0
      %169 = vmatprep.subr.mxu0 0.0
      %170 = vmatpush1.msra.mxu0 0.0
      %171 = vmatprep.subr.mxu0 0.0
      %172 = vmatpush1.msra.mxu0 0.0
      %173 = vmatprep.subr.mxu0 0.0
      %174 = vmatpush1.msra.mxu0 0.0
      %175 = vmatprep.subr.mxu0 0.0
      %176 = vmatpush1.msra.mxu0 0.0
      %177 = vmatprep.subr.mxu0 0.0
      %178 = vmatpush1.msra.mxu0 0.0
      %179 = vmatprep.mubr.f32.mxu0 0.0
      %180 = vmatmul.mubr.f32.gmra.mrb[0].mxu0 %v113
      %v181 = vpop.f32.mrb[0].mxu0
      %v182 = vadd.f32 %v109, %v181
      %v183 = vpop.f32.mrb[0].mxu0
      %184 = vdwg.mxu0
      %v185 = vmax.f32 %v182, 0.0
      %v186 = vld [vmem:[#allocation10] sm:$0xff]
      %v187 = vld [vmem:[#allocation10 + $0x8] sm:$0xff]
      %v188 = vld [vmem:[#allocation10 + $0x10] sm:$0xff]
      %v189 = vld [vmem:[#allocation10 + $0x18] sm:$0xff]
      %v190 = vld [vmem:[#allocation10 + $0x20] sm:$0xff]
      %v191 = vld [vmem:[#allocation10 + $0x28] sm:$0xff]
      %v192 = vld [vmem:[#allocation10 + $0x30] sm:$0xff]
      %v193 = vld [vmem:[#allocation10 + $0x38] sm:$0xff]
      %v194 = vld [vmem:[#allocation10 + $0x40] sm:$0xff]
      %v195 = vld [vmem:[#allocation10 + $0x48] sm:$0xff]
      %v196 = vld [vmem:[#allocation10 + $0x50] sm:$0xff]
      %v197 = vld [vmem:[#allocation10 + $0x58] sm:$0xff]
      %v198 = vld [vmem:[#allocation10 + $0x60] sm:$0xff]
      %v199 = vld [vmem:[#allocation10 + $0x68] sm:$0xff]
      %v200 = vld [vmem:[#allocation10 + $0x70] sm:$0xff]
      %v201 = vld [vmem:[#allocation10 + $0x78] sm:$0xff]
      %v202 = vld [vmem:[%s9] sm:$0x1]
      %v204 = vlaneseq
      %v205 = vshrl.u32 %v204, 7
      %v206 = vsub.s32 0, %v205
      %v207 = vrot.slane %v202, %v206
      %209 = vmatprep.subr.mxu0 0.0
      %210 = vmatpush1.msra.mxu0 %v186
      %211 = vmatprep.subr.mxu0 0.0
      %212 = vmatpush1.msra.mxu0 %v187
      %213 = vmatprep.subr.mxu0 0.0
      %214 = vmatpush1.msra.mxu0 %v188
      %215 = vmatprep.subr.mxu0 0.0
      %216 = vmatpush1.msra.mxu0 %v189
      %217 = vmatprep.subr.mxu0 0.0
      %218 = vmatpush1.msra.mxu0 %v190
      %219 = vmatprep.subr.mxu0 0.0
      %220 = vmatpush1.msra.mxu0 %v191
      %221 = vmatprep.subr.mxu0 0.0
      %222 = vmatpush1.msra.mxu0 %v192
      %223 = vmatprep.subr.mxu0 0.0
      %224 = vmatpush1.msra.mxu0 %v193
      %225 = vmatprep.subr.mxu0 0.0
      %226 = vmatpush1.msra.mxu0 %v194
      %227 = vmatprep.subr.mxu0 0.0
      %228 = vmatpush1.msra.mxu0 %v195
      %229 = vmatprep.subr.mxu0 0.0
      %230 = vmatpush1.msra.mxu0 %v196
      %231 = vmatprep.subr.mxu0 0.0
      %232 = vmatpush1.msra.mxu0 %v197
      %233 = vmatprep.subr.mxu0 0.0
      %234 = vmatpush1.msra.mxu0 %v198
      %235 = vmatprep.subr.mxu0 0.0
      %236 = vmatpush1.msra.mxu0 %v199
      %237 = vmatprep.subr.mxu0 0.0
      %238 = vmatpush1.msra.mxu0 %v200
      %239 = vmatprep.subr.mxu0 0.0
      %240 = vmatpush1.msra.mxu0 %v201
      %241 = vmatprep.subr.mxu0 0.0
      %242 = vmatpush1.msra.mxu0 0.0
      %243 = vmatprep.subr.mxu0 0.0
      %244 = vmatpush1.msra.mxu0 0.0
      %245 = vmatprep.subr.mxu0 0.0
      %246 = vmatpush1.msra.mxu0 0.0
      %247 = vmatprep.subr.mxu0 0.0
      %248 = vmatpush1.msra.mxu0 0.0
      %249 = vmatprep.subr.mxu0 0.0
      %250 = vmatpush1.msra.mxu0 0.0
      %251 = vmatprep.subr.mxu0 0.0
      %252 = vmatpush1.msra.mxu0 0.0
      %253 = vmatprep.subr.mxu0 0.0
      %254 = vmatpush1.msra.mxu0 0.0
      %255 = vmatprep.subr.mxu0 0.0
      %256 = vmatpush1.msra.mxu0 0.0
      %257 = vmatprep.subr.mxu0 0.0
      %258 = vmatpush1.msra.mxu0 0.0
      %259 = vmatprep.subr.mxu0 0.0
      %260 = vmatpush1.msra.mxu0 0.0
      %261 = vmatprep.subr.mxu0 0.0
      %262 = vmatpush1.msra.mxu0 0.0
      %263 = vmatprep.subr.mxu0 0.0
      %264 = vmatpush1.msra.mxu0 0.0
      %265 = vmatprep.subr.mxu0 0.0
      %266 = vmatpush1.msra.mxu0 0.0
      %267 = vmatprep.subr.mxu0 0.0
      %268 = vmatpush1.msra.mxu0 0.0
      %269 = vmatprep.subr.mxu0 0.0
      %270 = vmatpush1.msra.mxu0 0.0
      %271 = vmatprep.subr.mxu0 0.0
      %272 = vmatpush1.msra.mxu0 0.0
      %273 = vmatprep.mubr.f32.mxu0 0.0
      %274 = vmatmul.mubr.f32.gmra.mrb[0].mxu0 %v185
      %v275 = vpop.f32.mrb[0].mxu0
      %v276 = vadd.f32 %v207, %v275
      %v277 = vpop.f32.mrb[0].mxu0
      %278 = vdwg.mxu0
      %279 = vst [vmem:[#allocation4] sm:$0xff] %v276
    $region69: #{mental_state_network.1} parent=1 // pred_fallthru
      _
    %v280 = vld [vmem:[%s0] sm:$0xff]
    %v281 = vld [vmem:[%s0 + $0x8] sm:$0xff]
    %v282 = vld [vmem:[%s0 + $0x10] sm:$0xff]
    %v283 = vld [vmem:[%s0 + $0x18] sm:$0xff]
    %v284 = vld [vmem:[%s0 + $0x20] sm:$0xff]
    %v285 = vld [vmem:[%s0 + $0x28] sm:$0xff]
    %v286 = vld [vmem:[%s0 + $0x30] sm:$0xff]
    %v287 = vld [vmem:[%s0 + $0x38] sm:$0xff]
    %v288 = vld [vmem:[#allocation6] sm:$0xff]
    %v289 = vld [vmem:[#allocation6 + $0x8] sm:$0xff]
    %v290 = vld [vmem:[#allocation6 + $0x10] sm:$0xff]
    %v291 = vld [vmem:[#allocation6 + $0x18] sm:$0xff]
    %v292 = vld [vmem:[#allocation6 + $0x20] sm:$0xff]
    %v293 = vld [vmem:[#allocation6 + $0x28] sm:$0xff]
    %v294 = vld [vmem:[#allocation6 + $0x30] sm:$0xff]
    %v295 = vld [vmem:[#allocation6 + $0x38] sm:$0xff]
    %v296 = vld [vmem:[%s3] sm:$0xf]
    %v298 = vlaneseq
    %v299 = vshrl.u32 %v298, 7
    %v300 = vsub.s32 0, %v299
    %v301 = vrot.slane %v296, %v300
    %v302 = vlaneseq
    %v303 = vshrl.u32 %v302, 7
    %v304 = vsub.s32 1, %v303
    %v305 = vrot.slane %v296, %v304
    %v306 = vlaneseq
    %v307 = vshrl.u32 %v306, 7
    %v308 = vsub.s32 2, %v307
    %v309 = vrot.slane %v296, %v308
    %v310 = vlaneseq
    %v311 = vshrl.u32 %v310, 7
    %v312 = vsub.s32 3, %v311
    %v313 = vrot.slane %v296, %v312
    %vm318 = vcmask 130048
    %v320 = vsel %vm318, %v280, 0
    %v323 = vsel %vm318, %v281, 0
    %v326 = vsel %vm318, %v282, 0
    %v329 = vsel %vm318, %v283, 0
    %v332 = vsel %vm318, %v284, 0
    %v335 = vsel %vm318, %v285, 0
    %v338 = vsel %vm318, %v286, 0
    %v341 = vsel %vm318, %v287, 0
    %343 = vmatprep.subr.mxu0 %v289
    %344 = vmatpush1.msra.mxu0 %v288
    %345 = vmatprep.subr.mxu0 %v293
    %346 = vmatpush1.msra.mxu0 %v292
    %347 = vmatprep.subr.mxu0 0.0
    %348 = vmatpush1.msra.mxu0 0.0
    %349 = vmatprep.subr.mxu0 0.0
    %350 = vmatpush1.msra.mxu0 0.0
    %351 = vmatprep.subr.mxu0 0.0
    %352 = vmatpush1.msra.mxu0 0.0
    %353 = vmatprep.subr.mxu0 0.0
    %354 = vmatpush1.msra.mxu0 0.0
    %355 = vmatprep.subr.mxu0 0.0
    %356 = vmatpush1.msra.mxu0 0.0
    %357 = vmatprep.subr.mxu0 0.0
    %358 = vmatpush1.msra.mxu0 0.0
    %359 = vmatprep.subr.mxu0 0.0
    %360 = vmatpush1.msra.mxu0 0.0
    %361 = vmatprep.subr.mxu0 0.0
    %362 = vmatpush1.msra.mxu0 0.0
    %363 = vmatprep.subr.mxu0 0.0
    %364 = vmatpush1.msra.mxu0 0.0
    %365 = vmatprep.subr.mxu0 0.0
    %366 = vmatpush1.msra.mxu0 0.0
    %367 = vmatprep.subr.mxu0 0.0
    %368 = vmatpush1.msra.mxu0 0.0
    %369 = vmatprep.subr.mxu0 0.0
    %370 = vmatpush1.msra.mxu0 0.0
    %371 = vmatprep.subr.mxu0 0.0
    %372 = vmatpush1.msra.mxu0 0.0
    %373 = vmatprep.subr.mxu0 0.0
    %374 = vmatpush1.msra.mxu0 0.0
    %375 = vmatprep.subr.mxu0 0.0
    %376 = vmatpush1.msra.mxu0 0.0
    %377 = vmatprep.subr.mxu0 0.0
    %378 = vmatpush1.msra.mxu0 0.0
    %379 = vmatprep.subr.mxu0 0.0
    %380 = vmatpush1.msra.mxu0 0.0
    %381 = vmatprep.subr.mxu0 0.0
    %382 = vmatpush1.msra.mxu0 0.0
    %383 = vmatprep.subr.mxu0 0.0
    %384 = vmatpush1.msra.mxu0 0.0
    %385 = vmatprep.subr.mxu0 0.0
    %386 = vmatpush1.msra.mxu0 0.0
    %387 = vmatprep.subr.mxu0 0.0
    %388 = vmatpush1.msra.mxu0 0.0
    %389 = vmatprep.subr.mxu0 0.0
    %390 = vmatpush1.msra.mxu0 0.0
    %391 = vmatprep.subr.mxu0 0.0
    %392 = vmatpush1.msra.mxu0 0.0
    %393 = vmatprep.subr.mxu0 0.0
    %394 = vmatpush1.msra.mxu0 0.0
    %395 = vmatprep.subr.mxu0 0.0
    %396 = vmatpush1.msra.mxu0 0.0
    %397 = vmatprep.subr.mxu0 0.0
    %398 = vmatpush1.msra.mxu0 0.0
    %399 = vmatprep.subr.mxu0 0.0
    %400 = vmatpush1.msra.mxu0 0.0
    %401 = vmatprep.subr.mxu0 0.0
    %402 = vmatpush1.msra.mxu0 0.0
    %403 = vmatprep.subr.mxu0 0.0
    %404 = vmatpush1.msra.mxu0 0.0
    %405 = vmatprep.subr.mxu0 0.0
    %406 = vmatpush1.msra.mxu0 0.0
    %407 = vmatprep.mubr.f32.mxu0 0.0
    %408 = vmatmul.mubr.f32.gmra.mrb[0].mxu0 %v320
    %v409 = vpop.f32.mrb[0].mxu0
    %v410 = vadd.f32 %v301, %v409
    %v411 = vpop.f32.mrb[0].mxu0
    %v412 = vadd.f32 %v305, %v411
    %413 = vmatprep.mubr.f32.mxu0 0.0
    %414 = vmatmul.mubr.f32.gmra.mrb[0].mxu0 %v323
    %v415 = vpop.f32.mrb[0].mxu0
    %v416 = vadd.f32 %v301, %v415
    %v417 = vpop.f32.mrb[0].mxu0
    %v418 = vadd.f32 %v305, %v417
    %419 = vmatprep.mubr.f32.mxu0 0.0
    %420 = vmatmul.mubr.f32.gmra.mrb[0].mxu0 %v326
    %v421 = vpop.f32.mrb[0].mxu0
    %v422 = vadd.f32 %v301, %v421
    %v423 = vpop.f32.mrb[0].mxu0
    %v424 = vadd.f32 %v305, %v423
    %425 = vmatprep.mubr.f32.mxu0 0.0
    %426 = vmatmul.mubr.f32.gmra.mrb[0].mxu0 %v329
    %v427 = vpop.f32.mrb[0].mxu0
    %v428 = vadd.f32 %v301, %v427
    %v429 = vpop.f32.mrb[0].mxu0
    %v430 = vadd.f32 %v305, %v429
    %431 = vmatprep.mubr.f32.mxu0 0.0
    %432 = vmatmul.mubr.f32.gmra.mrb[0].mxu0 %v332
    %v433 = vpop.f32.mrb[0].mxu0
    %v434 = vadd.f32 %v301, %v433
    %v435 = vpop.f32.mrb[0].mxu0
    %v436 = vadd.f32 %v305, %v435
    %437 = vmatprep.mubr.f32.mxu0 0.0
    %438 = vmatmul.mubr.f32.gmra.mrb[0].mxu0 %v335
    %v439 = vpop.f32.mrb[0].mxu0
    %v440 = vadd.f32 %v301, %v439
    %v441 = vpop.f32.mrb[0].mxu0
    %v442 = vadd.f32 %v305, %v441
    %443 = vmatprep.mubr.f32.mxu0 0.0
    %444 = vmatmul.mubr.f32.gmra.mrb[0].mxu0 %v338
    %v445 = vpop.f32.mrb[0].mxu0
    %v446 = vadd.f32 %v301, %v445
    %v447 = vpop.f32.mrb[0].mxu0
    %v448 = vadd.f32 %v305, %v447
    %449 = vmatprep.mubr.f32.mxu0 0.0
    %450 = vmatmul.mubr.f32.gmra.mrb[0].mxu0 %v341
    %v451 = vpop.f32.mrb[0].mxu0
    %v452 = vadd.f32 %v301, %v451
    %v453 = vpop.f32.mrb[0].mxu0
    %v454 = vadd.f32 %v305, %v453
    %455 = vdwg.mxu0
    %456 = vmatprep.subr.mxu0 %v291
    %457 = vmatpush1.msra.mxu0 %v290
    %458 = vmatprep.subr.mxu0 %v295
    %459 = vmatpush1.msra.mxu0 %v294
    %460 = vmatprep.subr.mxu0 0.0
    %461 = vmatpush1.msra.mxu0 0.0
    %462 = vmatprep.subr.mxu0 0.0
    %463 = vmatpush1.msra.mxu0 0.0
    %464 = vmatprep.subr.mxu0 0.0
    %465 = vmatpush1.msra.mxu0 0.0
    %466 = vmatprep.subr.mxu0 0.0
    %467 = vmatpush1.msra.mxu0 0.0
    %468 = vmatprep.subr.mxu0 0.0
    %469 = vmatpush1.msra.mxu0 0.0
    %470 = vmatprep.subr.mxu0 0.0
    %471 = vmatpush1.msra.mxu0 0.0
    %472 = vmatprep.subr.mxu0 0.0
    %473 = vmatpush1.msra.mxu0 0.0
    %474 = vmatprep.subr.mxu0 0.0
    %475 = vmatpush1.msra.mxu0 0.0
    %476 = vmatprep.subr.mxu0 0.0
    %477 = vmatpush1.msra.mxu0 0.0
    %478 = vmatprep.subr.mxu0 0.0
    %479 = vmatpush1.msra.mxu0 0.0
    %480 = vmatprep.subr.mxu0 0.0
    %481 = vmatpush1.msra.mxu0 0.0
    %482 = vmatprep.subr.mxu0 0.0
    %483 = vmatpush1.msra.mxu0 0.0
    %484 = vmatprep.subr.mxu0 0.0
    %485 = vmatpush1.msra.mxu0 0.0
    %486 = vmatprep.subr.mxu0 0.0
    %487 = vmatpush1.msra.mxu0 0.0
    %488 = vmatprep.subr.mxu0 0.0
    %489 = vmatpush1.msra.mxu0 0.0
    %490 = vmatprep.subr.mxu0 0.0
    %491 = vmatpush1.msra.mxu0 0.0
    %492 = vmatprep.subr.mxu0 0.0
    %493 = vmatpush1.msra.mxu0 0.0
    %494 = vmatprep.subr.mxu0 0.0
    %495 = vmatpush1.msra.mxu0 0.0
    %496 = vmatprep.subr.mxu0 0.0
    %497 = vmatpush1.msra.mxu0 0.0
    %498 = vmatprep.subr.mxu0 0.0
    %499 = vmatpush1.msra.mxu0 0.0
    %500 = vmatprep.subr.mxu0 0.0
    %501 = vmatpush1.msra.mxu0 0.0
    %502 = vmatprep.subr.mxu0 0.0
    %503 = vmatpush1.msra.mxu0 0.0
    %504 = vmatprep.subr.mxu0 0.0
    %505 = vmatpush1.msra.mxu0 0.0
    %506 = vmatprep.subr.mxu0 0.0
    %507 = vmatpush1.msra.mxu0 0.0
    %508 = vmatprep.subr.mxu0 0.0
    %509 = vmatpush1.msra.mxu0 0.0
    %510 = vmatprep.subr.mxu0 0.0
    %511 = vmatpush1.msra.mxu0 0.0
    %512 = vmatprep.subr.mxu0 0.0
    %513 = vmatpush1.msra.mxu0 0.0
    %514 = vmatprep.subr.mxu0 0.0
    %515 = vmatpush1.msra.mxu0 0.0
    %516 = vmatprep.subr.mxu0 0.0
    %517 = vmatpush1.msra.mxu0 0.0
    %518 = vmatprep.subr.mxu0 0.0
    %519 = vmatpush1.msra.mxu0 0.0
    %520 = vmatprep.mubr.f32.mxu0 0.0
    %521 = vmatmul.mubr.f32.gmra.mrb[0].mxu0 %v320
    %v522 = vpop.f32.mrb[0].mxu0
    %v523 = vadd.f32 %v309, %v522
    %v524 = vpop.f32.mrb[0].mxu0
    %v525 = vadd.f32 %v313, %v524
    %526 = vmatprep.mubr.f32.mxu0 0.0
    %527 = vmatmul.mubr.f32.gmra.mrb[0].mxu0 %v323
    %v528 = vpop.f32.mrb[0].mxu0
    %v529 = vadd.f32 %v309, %v528
    %v530 = vpop.f32.mrb[0].mxu0
    %v531 = vadd.f32 %v313, %v530
    %532 = vmatprep.mubr.f32.mxu0 0.0
    %533 = vmatmul.mubr.f32.gmra.mrb[0].mxu0 %v326
    %v534 = vpop.f32.mrb[0].mxu0
    %v535 = vadd.f32 %v309, %v534
    %v536 = vpop.f32.mrb[0].mxu0
    %v537 = vadd.f32 %v313, %v536
    %538 = vmatprep.mubr.f32.mxu0 0.0
    %539 = vmatmul.mubr.f32.gmra.mrb[0].mxu0 %v329
    %v540 = vpop.f32.mrb[0].mxu0
    %v541 = vadd.f32 %v309, %v540
    %v542 = vpop.f32.mrb[0].mxu0
    %v543 = vadd.f32 %v313, %v542
    %544 = vmatprep.mubr.f32.mxu0 0.0
    %545 = vmatmul.mubr.f32.gmra.mrb[0].mxu0 %v332
    %v546 = vpop.f32.mrb[0].mxu0
    %v547 = vadd.f32 %v309, %v546
    %v548 = vpop.f32.mrb[0].mxu0
    %v549 = vadd.f32 %v313, %v548
    %550 = vmatprep.mubr.f32.mxu0 0.0
    %551 = vmatmul.mubr.f32.gmra.mrb[0].mxu0 %v335
    %v552 = vpop.f32.mrb[0].mxu0
    %v553 = vadd.f32 %v309, %v552
    %v554 = vpop.f32.mrb[0].mxu0
    %v555 = vadd.f32 %v313, %v554
    %556 = vmatprep.mubr.f32.mxu0 0.0
    %557 = vmatmul.mubr.f32.gmra.mrb[0].mxu0 %v338
    %v558 = vpop.f32.mrb[0].mxu0
    %v559 = vadd.f32 %v309, %v558
    %v560 = vpop.f32.mrb[0].mxu0
    %v561 = vadd.f32 %v313, %v560
    %562 = vmatprep.mubr.f32.mxu0 0.0
    %563 = vmatmul.mubr.f32.gmra.mrb[0].mxu0 %v341
    %v564 = vpop.f32.mrb[0].mxu0
    %v565 = vadd.f32 %v309, %v564
    %v566 = vpop.f32.mrb[0].mxu0
    %v567 = vadd.f32 %v313, %v566
    %568 = vdwg.mxu0
    %569 = vst [vmem:[#allocation5] sm:$0xff] %v410
    %570 = vst [vmem:[#allocation5 + $0x8] sm:$0xff] %v412
    %571 = vst [vmem:[#allocation5 + $0x10] sm:$0xff] %v523
    %572 = vst [vmem:[#allocation5 + $0x18] sm:$0xff] %v525
    %573 = vst [vmem:[#allocation5 + $0x20] sm:$0xff] %v416
    %574 = vst [vmem:[#allocation5 + $0x28] sm:$0xff] %v418
    %575 = vst [vmem:[#allocation5 + $0x30] sm:$0xff] %v529
    %576 = vst [vmem:[#allocation5 + $0x38] sm:$0xff] %v531
    %577 = vst [vmem:[#allocation5 + $0x40] sm:$0xff] %v422
    %578 = vst [vmem:[#allocation5 + $0x48] sm:$0xff] %v424
    %579 = vst [vmem:[#allocation5 + $0x50] sm:$0xff] %v535
    %580 = vst [vmem:[#allocation5 + $0x58] sm:$0xff] %v537
    %581 = vst [vmem:[#allocation5 + $0x60] sm:$0xff] %v428
    %582 = vst [vmem:[#allocation5 + $0x68] sm:$0xff] %v430
    %583 = vst [vmem:[#allocation5 + $0x70] sm:$0xff] %v541
    %584 = vst [vmem:[#allocation5 + $0x78] sm:$0xff] %v543
    %585 = vst [vmem:[#allocation5 + $0x80] sm:$0xff] %v434
    %586 = vst [vmem:[#allocation5 + $0x88] sm:$0xff] %v436
    %587 = vst [vmem:[#allocation5 + $0x90] sm:$0xff] %v547
    %588 = vst [vmem:[#allocation5 + $0x98] sm:$0xff] %v549
    %589 = vst [vmem:[#allocation5 + $0xa0] sm:$0xff] %v440
    %590 = vst [vmem:[#allocation5 + $0xa8] sm:$0xff] %v442
    %591 = vst [vmem:[#allocation5 + $0xb0] sm:$0xff] %v553
    %592 = vst [vmem:[#allocation5 + $0xb8] sm:$0xff] %v555
    %593 = vst [vmem:[#allocation5 + $0xc0] sm:$0xff] %v446
    %594 = vst [vmem:[#allocation5 + $0xc8] sm:$0xff] %v448
    %595 = vst [vmem:[#allocation5 + $0xd0] sm:$0xff] %v559
    %596 = vst [vmem:[#allocation5 + $0xd8] sm:$0xff] %v561
    %597 = vst [vmem:[#allocation5 + $0xe0] sm:$0xff] %v452
    %598 = vst [vmem:[#allocation5 + $0xe8] sm:$0xff] %v454
    %599 = vst [vmem:[#allocation5 + $0xf0] sm:$0xff] %v565
    %600 = vst [vmem:[#allocation5 + $0xf8] sm:$0xff] %v567
    %s601 = smul.u32 0, 8
    %v602 = vld [vmem:[#allocation2] sm:$0xff]
    %v603 = vld [vmem:[#allocation3] sm:$0xff]
    %s604 = smul.u32 0, 4
    %s605 = smul.addr %s604, 8
    %s606 = scalar_lea.vmem [#allocation5], %s605
    %v607 = vld [vmem:[%s606] sm:$0xff]
    %v608 = vld [vmem:[%s606 + $0x8] sm:$0xff]
    %v609 = vld [vmem:[%s606 + $0x10] sm:$0xff]
    %v610 = vld [vmem:[%s606 + $0x18] sm:$0xff]
    %v611 = vld [vmem:[#allocation8] sm:$0xff]
    %v612 = vld [vmem:[#allocation8 + $0x8] sm:$0xff]
    %v613 = vld [vmem:[#allocation8 + $0x10] sm:$0xff]
    %v614 = vld [vmem:[#allocation8 + $0x18] sm:$0xff]
    %v615 = vld [vmem:[#allocation8 + $0x20] sm:$0xff]
    %v616 = vld [vmem:[#allocation8 + $0x28] sm:$0xff]
    %v617 = vld [vmem:[#allocation8 + $0x30] sm:$0xff]
    %v618 = vld [vmem:[#allocation8 + $0x38] sm:$0xff]
    %v619 = vld [vmem:[#allocation8 + $0x40] sm:$0xff]
    %v620 = vld [vmem:[#allocation8 + $0x48] sm:$0xff]
    %v621 = vld [vmem:[#allocation8 + $0x50] sm:$0xff]
    %v622 = vld [vmem:[#allocation8 + $0x58] sm:$0xff]
    %v623 = vld [vmem:[#allocation8 + $0x60] sm:$0xff]
    %v624 = vld [vmem:[#allocation8 + $0x68] sm:$0xff]
    %v625 = vld [vmem:[#allocation8 + $0x70] sm:$0xff]
    %v626 = vld [vmem:[#allocation8 + $0x78] sm:$0xff]
    %v627 = vld [vmem:[#allocation8 + $0x80] sm:$0xff]
    %v628 = vld [vmem:[#allocation8 + $0x88] sm:$0xff]
    %v629 = vld [vmem:[#allocation8 + $0x90] sm:$0xff]
    %v630 = vld [vmem:[#allocation8 + $0x98] sm:$0xff]
    %v631 = vld [vmem:[#allocation8 + $0xa0] sm:$0xff]
    %v632 = vld [vmem:[#allocation8 + $0xa8] sm:$0xff]
    %v633 = vld [vmem:[#allocation8 + $0xb0] sm:$0xff]
    %v634 = vld [vmem:[#allocation8 + $0xb8] sm:$0xff]
    %v635 = vld [vmem:[#allocation8 + $0xc0] sm:$0xff]
    %v636 = vld [vmem:[#allocation8 + $0xc8] sm:$0xff]
    %v637 = vld [vmem:[#allocation8 + $0xd0] sm:$0xff]
    %v638 = vld [vmem:[#allocation8 + $0xd8] sm:$0xff]
    %v639 = vld [vmem:[#allocation8 + $0xe0] sm:$0xff]
    %v640 = vld [vmem:[#allocation8 + $0xe8] sm:$0xff]
    %v641 = vld [vmem:[#allocation8 + $0xf0] sm:$0xff]
    %v642 = vld [vmem:[#allocation8 + $0xf8] sm:$0xff]
    %v643 = vld [vmem:[#allocation8 + $0x100] sm:$0xff]
    %v644 = vld [vmem:[#allocation8 + $0x108] sm:$0xff]
    %v645 = vld [vmem:[#allocation8 + $0x110] sm:$0xff]
    %v646 = vld [vmem:[#allocation8 + $0x118] sm:$0xff]
    %v647 = vld [vmem:[#allocation8 + $0x120] sm:$0xff]
    %v648 = vld [vmem:[#allocation8 + $0x128] sm:$0xff]
    %v649 = vld [vmem:[#allocation8 + $0x130] sm:$0xff]
    %v650 = vld [vmem:[#allocation8 + $0x138] sm:$0xff]
    %v651 = vld [vmem:[#allocation8 + $0x140] sm:$0xff]
    %v652 = vld [vmem:[#allocation8 + $0x148] sm:$0xff]
    %v653 = vld [vmem:[#allocation8 + $0x150] sm:$0xff]
    %v654 = vld [vmem:[#allocation8 + $0x158] sm:$0xff]
    %v655 = vld [vmem:[#allocation8 + $0x160] sm:$0xff]
    %v656 = vld [vmem:[#allocation8 + $0x168] sm:$0xff]
    %v657 = vld [vmem:[#allocation8 + $0x170] sm:$0xff]
    %v658 = vld [vmem:[#allocation8 + $0x178] sm:$0xff]
    %v659 = vld [vmem:[#allocation8 + $0x180] sm:$0xff]
    %v660 = vld [vmem:[#allocation8 + $0x188] sm:$0xff]
    %v661 = vld [vmem:[#allocation8 + $0x190] sm:$0xff]
    %v662 = vld [vmem:[#allocation8 + $0x198] sm:$0xff]
    %v663 = vld [vmem:[#allocation8 + $0x1a0] sm:$0xff]
    %v664 = vld [vmem:[#allocation8 + $0x1a8] sm:$0xff]
    %v665 = vld [vmem:[#allocation8 + $0x1b0] sm:$0xff]
    %v666 = vld [vmem:[#allocation8 + $0x1b8] sm:$0xff]
    %v667 = vld [vmem:[#allocation8 + $0x1c0] sm:$0xff]
    %v668 = vld [vmem:[#allocation8 + $0x1c8] sm:$0xff]
    %v669 = vld [vmem:[#allocation8 + $0x1d0] sm:$0xff]
    %v670 = vld [vmem:[#allocation8 + $0x1d8] sm:$0xff]
    %v671 = vld [vmem:[#allocation8 + $0x1e0] sm:$0xff]
    %v672 = vld [vmem:[#allocation8 + $0x1e8] sm:$0xff]
    %v673 = vld [vmem:[#allocation8 + $0x1f0] sm:$0xff]
    %v674 = vld [vmem:[#allocation8 + $0x1f8] sm:$0xff]
    %675 = vmatprep.subr.mxu0 %v612
    %676 = vmatpush1.msra.mxu0 %v611
    %677 = vmatprep.subr.mxu0 %v616
    %678 = vmatpush1.msra.mxu0 %v615
    %679 = vmatprep.subr.mxu0 %v620
    %680 = vmatpush1.msra.mxu0 %v619
    %681 = vmatprep.subr.mxu0 %v624
    %682 = vmatpush1.msra.mxu0 %v623
    %683 = vmatprep.subr.mxu0 %v628
    %684 = vmatpush1.msra.mxu0 %v627
    %685 = vmatprep.subr.mxu0 %v632
    %686 = vmatpush1.msra.mxu0 %v631
    %687 = vmatprep.subr.mxu0 %v636
    %688 = vmatpush1.msra.mxu0 %v635
    %689 = vmatprep.subr.mxu0 %v640
    %690 = vmatpush1.msra.mxu0 %v639
    %691 = vmatprep.subr.mxu0 %v644
    %692 = vmatpush1.msra.mxu0 %v643
    %693 = vmatprep.subr.mxu0 %v648
    %694 = vmatpush1.msra.mxu0 %v647
    %695 = vmatprep.subr.mxu0 %v652
    %696 = vmatpush1.msra.mxu0 %v651
    %697 = vmatprep.subr.mxu0 %v656
    %698 = vmatpush1.msra.mxu0 %v655
    %699 = vmatprep.subr.mxu0 %v660
    %700 = vmatpush1.msra.mxu0 %v659
    %701 = vmatprep.subr.mxu0 %v664
    %702 = vmatpush1.msra.mxu0 %v663
    %703 = vmatprep.subr.mxu0 %v668
    %704 = vmatpush1.msra.mxu0 %v667
    %705 = vmatprep.subr.mxu0 %v672
    %706 = vmatpush1.msra.mxu0 %v671
    %707 = vmatprep.subr.mxu0 0.0
    %708 = vmatpush1.msra.mxu0 0.0
    %709 = vmatprep.subr.mxu0 0.0
    %710 = vmatpush1.msra.mxu0 0.0
    %711 = vmatprep.subr.mxu0 0.0
    %712 = vmatpush1.msra.mxu0 0.0
    %713 = vmatprep.subr.mxu0 0.0
    %714 = vmatpush1.msra.mxu0 0.0
    %715 = vmatprep.subr.mxu0 0.0
    %716 = vmatpush1.msra.mxu0 0.0
    %717 = vmatprep.subr.mxu0 0.0
    %718 = vmatpush1.msra.mxu0 0.0
    %719 = vmatprep.subr.mxu0 0.0
    %720 = vmatpush1.msra.mxu0 0.0
    %721 = vmatprep.subr.mxu0 0.0
    %722 = vmatpush1.msra.mxu0 0.0
    %723 = vmatprep.subr.mxu0 0.0
    %724 = vmatpush1.msra.mxu0 0.0
    %725 = vmatprep.subr.mxu0 0.0
    %726 = vmatpush1.msra.mxu0 0.0
    %727 = vmatprep.subr.mxu0 0.0
    %728 = vmatpush1.msra.mxu0 0.0
    %729 = vmatprep.subr.mxu0 0.0
    %730 = vmatpush1.msra.mxu0 0.0
    %731 = vmatprep.subr.mxu0 0.0
    %732 = vmatpush1.msra.mxu0 0.0
    %733 = vmatprep.subr.mxu0 0.0
    %734 = vmatpush1.msra.mxu0 0.0
    %735 = vmatprep.subr.mxu0 0.0
    %736 = vmatpush1.msra.mxu0 0.0
    %737 = vmatprep.subr.mxu0 0.0
    %738 = vmatpush1.msra.mxu0 0.0
    %739 = vmatprep.mubr.f32.mxu0 0.0
    %740 = vmatmul.mubr.f32.gmra.mrb[0].mxu0 %v602
    %v741 = vpop.f32.mrb[0].mxu0
    %v742 = vadd.f32 0.0, %v741
    %v743 = vpop.f32.mrb[0].mxu0
    %v744 = vadd.f32 0.0, %v743
    %745 = vdwg.mxu0
    %746 = vmatprep.subr.mxu0 %v614
    %747 = vmatpush1.msra.mxu0 %v613
    %748 = vmatprep.subr.mxu0 %v618
    %749 = vmatpush1.msra.mxu0 %v617
    %750 = vmatprep.subr.mxu0 %v622
    %751 = vmatpush1.msra.mxu0 %v621
    %752 = vmatprep.subr.mxu0 %v626
    %753 = vmatpush1.msra.mxu0 %v625
    %754 = vmatprep.subr.mxu0 %v630
    %755 = vmatpush1.msra.mxu0 %v629
    %756 = vmatprep.subr.mxu0 %v634
    %757 = vmatpush1.msra.mxu0 %v633
    %758 = vmatprep.subr.mxu0 %v638
    %759 = vmatpush1.msra.mxu0 %v637
    %760 = vmatprep.subr.mxu0 %v642
    %761 = vmatpush1.msra.mxu0 %v641
    %762 = vmatprep.subr.mxu0 %v646
    %763 = vmatpush1.msra.mxu0 %v645
    %764 = vmatprep.subr.mxu0 %v650
    %765 = vmatpush1.msra.mxu0 %v649
    %766 = vmatprep.subr.mxu0 %v654
    %767 = vmatpush1.msra.mxu0 %v653
    %768 = vmatprep.subr.mxu0 %v658
    %769 = vmatpush1.msra.mxu0 %v657
    %770 = vmatprep.subr.mxu0 %v662
    %771 = vmatpush1.msra.mxu0 %v661
    %772 = vmatprep.subr.mxu0 %v666
    %773 = vmatpush1.msra.mxu0 %v665
    %774 = vmatprep.subr.mxu0 %v670
    %775 = vmatpush1.msra.mxu0 %v669
    %776 = vmatprep.subr.mxu0 %v674
    %777 = vmatpush1.msra.mxu0 %v673
    %778 = vmatprep.subr.mxu0 0.0
    %779 = vmatpush1.msra.mxu0 0.0
    %780 = vmatprep.subr.mxu0 0.0
    %781 = vmatpush1.msra.mxu0 0.0
    %782 = vmatprep.subr.mxu0 0.0
    %783 = vmatpush1.msra.mxu0 0.0
    %784 = vmatprep.subr.mxu0 0.0
    %785 = vmatpush1.msra.mxu0 0.0
    %786 = vmatprep.subr.mxu0 0.0
    %787 = vmatpush1.msra.mxu0 0.0
    %788 = vmatprep.subr.mxu0 0.0
    %789 = vmatpush1.msra.mxu0 0.0
    %790 = vmatprep.subr.mxu0 0.0
    %791 = vmatpush1.msra.mxu0 0.0
    %792 = vmatprep.subr.mxu0 0.0
    %793 = vmatpush1.msra.mxu0 0.0
    %794 = vmatprep.subr.mxu0 0.0
    %795 = vmatpush1.msra.mxu0 0.0
    %796 = vmatprep.subr.mxu0 0.0
    %797 = vmatpush1.msra.mxu0 0.0
    %798 = vmatprep.subr.mxu0 0.0
    %799 = vmatpush1.msra.mxu0 0.0
    %800 = vmatprep.subr.mxu0 0.0
    %801 = vmatpush1.msra.mxu0 0.0
    %802 = vmatprep.subr.mxu0 0.0
    %803 = vmatpush1.msra.mxu0 0.0
    %804 = vmatprep.subr.mxu0 0.0
    %805 = vmatpush1.msra.mxu0 0.0
    %806 = vmatprep.subr.mxu0 0.0
    %807 = vmatpush1.msra.mxu0 0.0
    %808 = vmatprep.subr.mxu0 0.0
    %809 = vmatpush1.msra.mxu0 0.0
    %810 = vmatprep.mubr.f32.mxu0 0.0
    %811 = vmatmul.mubr.f32.gmra.mrb[0].mxu0 %v602
    %v812 = vpop.f32.mrb[0].mxu0
    %v813 = vadd.f32 0.0, %v812
    %v814 = vpop.f32.mrb[0].mxu0
    %v815 = vadd.f32 0.0, %v814
    %816 = vdwg.mxu0
    %v817 = vadd.f32 %v607, %v742
    %v818 = vadd.f32 %v608, %v744
    %v819 = vadd.f32 %v609, %v813
    %v820 = vadd.f32 %v610, %v815
    %v821 = vmul.f32 %v817, 0.5
    %v822 = vtanh.pop %v821
    %v823 = vadd.f32 %v822, 1.0
    %v824 = vmul.f32 %v823, 0.5
    %v825 = vmul.f32 %v818, 0.5
    %v826 = vtanh.pop %v825
    %v827 = vadd.f32 %v826, 1.0
    %v828 = vmul.f32 %v827, 0.5
    %v829 = vtanh.pop %v819
    %v830 = vmul.f32 %v820, 0.5
    %v831 = vtanh.pop %v830
    %v832 = vadd.f32 %v831, 1.0
    %v833 = vmul.f32 %v832, 0.5
    %v834 = vmul.f32 %v828, %v603
    %v835 = vmul.f32 %v824, %v829
    %v836 = vadd.f32 %v834, %v835
    %v837 = vtanh.pop %v836
    %v838 = vmul.f32 %v833, %v837
    %p839 = scmp.lt.s32.totalorder %s601, 8
    %s840 = scalar_select %p839, 1, 0
    %v841 = vstv %s840
    %vm842 = vcmp.eq.s32.totalorder %v841, 1
    %v843 = vsel %vm842, %v838, %v602
    %v844 = vsel %vm842, %v836, %v603
    %s845 = smul.u32 1, 4
    %s846 = smul.addr %s845, 8
    %s847 = scalar_lea.vmem [#allocation5], %s846
    %v848 = vld [vmem:[%s847] sm:$0xff]
    %v849 = vld [vmem:[%s847 + $0x8] sm:$0xff]
    %v850 = vld [vmem:[%s847 + $0x10] sm:$0xff]
    %v851 = vld [vmem:[%s847 + $0x18] sm:$0xff]
    %852 = vmatprep.subr.mxu0 %v612
    %853 = vmatpush1.msra.mxu0 %v611
    %854 = vmatprep.subr.mxu0 %v616
    %855 = vmatpush1.msra.mxu0 %v615
    %856 = vmatprep.subr.mxu0 %v620
    %857 = vmatpush1.msra.mxu0 %v619
    %858 = vmatprep.subr.mxu0 %v624
    %859 = vmatpush1.msra.mxu0 %v623
    %860 = vmatprep.subr.mxu0 %v628
    %861 = vmatpush1.msra.mxu0 %v627
    %862 = vmatprep.subr.mxu0 %v632
    %863 = vmatpush1.msra.mxu0 %v631
    %864 = vmatprep.subr.mxu0 %v636
    %865 = vmatpush1.msra.mxu0 %v635
    %866 = vmatprep.subr.mxu0 %v640
    %867 = vmatpush1.msra.mxu0 %v639
    %868 = vmatprep.subr.mxu0 %v644
    %869 = vmatpush1.msra.mxu0 %v643
    %870 = vmatprep.subr.mxu0 %v648
    %871 = vmatpush1.msra.mxu0 %v647
    %872 = vmatprep.subr.mxu0 %v652
    %873 = vmatpush1.msra.mxu0 %v651
    %874 = vmatprep.subr.mxu0 %v656
    %875 = vmatpush1.msra.mxu0 %v655
    %876 = vmatprep.subr.mxu0 %v660
    %877 = vmatpush1.msra.mxu0 %v659
    %878 = vmatprep.subr.mxu0 %v664
    %879 = vmatpush1.msra.mxu0 %v663
    %880 = vmatprep.subr.mxu0 %v668
    %881 = vmatpush1.msra.mxu0 %v667
    %882 = vmatprep.subr.mxu0 %v672
    %883 = vmatpush1.msra.mxu0 %v671
    %884 = vmatprep.subr.mxu0 0.0
    %885 = vmatpush1.msra.mxu0 0.0
    %886 = vmatprep.subr.mxu0 0.0
    %887 = vmatpush1.msra.mxu0 0.0
    %888 = vmatprep.subr.mxu0 0.0
    %889 = vmatpush1.msra.mxu0 0.0
    %890 = vmatprep.subr.mxu0 0.0
    %891 = vmatpush1.msra.mxu0 0.0
    %892 = vmatprep.subr.mxu0 0.0
    %893 = vmatpush1.msra.mxu0 0.0
    %894 = vmatprep.subr.mxu0 0.0
    %895 = vmatpush1.msra.mxu0 0.0
    %896 = vmatprep.subr.mxu0 0.0
    %897 = vmatpush1.msra.mxu0 0.0
    %898 = vmatprep.subr.mxu0 0.0
    %899 = vmatpush1.msra.mxu0 0.0
    %900 = vmatprep.subr.mxu0 0.0
    %901 = vmatpush1.msra.mxu0 0.0
    %902 = vmatprep.subr.mxu0 0.0
    %903 = vmatpush1.msra.mxu0 0.0
    %904 = vmatprep.subr.mxu0 0.0
    %905 = vmatpush1.msra.mxu0 0.0
    %906 = vmatprep.subr.mxu0 0.0
    %907 = vmatpush1.msra.mxu0 0.0
    %908 = vmatprep.subr.mxu0 0.0
    %909 = vmatpush1.msra.mxu0 0.0
    %910 = vmatprep.subr.mxu0 0.0
    %911 = vmatpush1.msra.mxu0 0.0
    %912 = vmatprep.subr.mxu0 0.0
    %913 = vmatpush1.msra.mxu0 0.0
    %914 = vmatprep.subr.mxu0 0.0
    %915 = vmatpush1.msra.mxu0 0.0
    %916 = vmatprep.mubr.f32.mxu0 0.0
    %917 = vmatmul.mubr.f32.gmra.mrb[0].mxu0 %v843
    %v918 = vpop.f32.mrb[0].mxu0
    %v919 = vadd.f32 0.0, %v918
    %v920 = vpop.f32.mrb[0].mxu0
    %v921 = vadd.f32 0.0, %v920
    %922 = vdwg.mxu0
    %923 = vmatprep.subr.mxu0 %v614
    %924 = vmatpush1.msra.mxu0 %v613
    %925 = vmatprep.subr.mxu0 %v618
    %926 = vmatpush1.msra.mxu0 %v617
    %927 = vmatprep.subr.mxu0 %v622
    %928 = vmatpush1.msra.mxu0 %v621
    %929 = vmatprep.subr.mxu0 %v626
    %930 = vmatpush1.msra.mxu0 %v625
    %931 = vmatprep.subr.mxu0 %v630
    %932 = vmatpush1.msra.mxu0 %v629
    %933 = vmatprep.subr.mxu0 %v634
    %934 = vmatpush1.msra.mxu0 %v633
    %935 = vmatprep.subr.mxu0 %v638
    %936 = vmatpush1.msra.mxu0 %v637
    %937 = vmatprep.subr.mxu0 %v642
    %938 = vmatpush1.msra.mxu0 %v641
    %939 = vmatprep.subr.mxu0 %v646
    %940 = vmatpush1.msra.mxu0 %v645
    %941 = vmatprep.subr.mxu0 %v650
    %942 = vmatpush1.msra.mxu0 %v649
    %943 = vmatprep.subr.mxu0 %v654
    %944 = vmatpush1.msra.mxu0 %v653
    %945 = vmatprep.subr.mxu0 %v658
    %946 = vmatpush1.msra.mxu0 %v657
    %947 = vmatprep.subr.mxu0 %v662
    %948 = vmatpush1.msra.mxu0 %v661
    %949 = vmatprep.subr.mxu0 %v666
    %950 = vmatpush1.msra.mxu0 %v665
    %951 = vmatprep.subr.mxu0 %v670
    %952 = vmatpush1.msra.mxu0 %v669
    %953 = vmatprep.subr.mxu0 %v674
    %954 = vmatpush1.msra.mxu0 %v673
    %955 = vmatprep.subr.mxu0 0.0
    %956 = vmatpush1.msra.mxu0 0.0
    %957 = vmatprep.subr.mxu0 0.0
    %958 = vmatpush1.msra.mxu0 0.0
    %959 = vmatprep.subr.mxu0 0.0
    %960 = vmatpush1.msra.mxu0 0.0
    %961 = vmatprep.subr.mxu0 0.0
    %962 = vmatpush1.msra.mxu0 0.0
    %963 = vmatprep.subr.mxu0 0.0
    %964 = vmatpush1.msra.mxu0 0.0
    %965 = vmatprep.subr.mxu0 0.0
    %966 = vmatpush1.msra.mxu0 0.0
    %967 = vmatprep.subr.mxu0 0.0
    %968 = vmatpush1.msra.mxu0 0.0
    %969 = vmatprep.subr.mxu0 0.0
    %970 = vmatpush1.msra.mxu0 0.0
    %971 = vmatprep.subr.mxu0 0.0
    %972 = vmatpush1.msra.mxu0 0.0
    %973 = vmatprep.subr.mxu0 0.0
    %974 = vmatpush1.msra.mxu0 0.0
    %975 = vmatprep.subr.mxu0 0.0
    %976 = vmatpush1.msra.mxu0 0.0
    %977 = vmatprep.subr.mxu0 0.0
    %978 = vmatpush1.msra.mxu0 0.0
    %979 = vmatprep.subr.mxu0 0.0
    %980 = vmatpush1.msra.mxu0 0.0
    %981 = vmatprep.subr.mxu0 0.0
    %982 = vmatpush1.msra.mxu0 0.0
    %983 = vmatprep.subr.mxu0 0.0
    %984 = vmatpush1.msra.mxu0 0.0
    %985 = vmatprep.subr.mxu0 0.0
    %986 = vmatpush1.msra.mxu0 0.0
    %987 = vmatprep.mubr.f32.mxu0 0.0
    %988 = vmatmul.mubr.f32.gmra.mrb[0].mxu0 %v843
    %v989 = vpop.f32.mrb[0].mxu0
    %v990 = vadd.f32 0.0, %v989
    %v991 = vpop.f32.mrb[0].mxu0
    %v992 = vadd.f32 0.0, %v991
    %993 = vdwg.mxu0
    %v994 = vadd.f32 %v848, %v919
    %v995 = vadd.f32 %v849, %v921
    %v996 = vadd.f32 %v850, %v990
    %v997 = vadd.f32 %v851, %v992
    %v998 = vmul.f32 %v994, 0.5
    %v999 = vtanh.pop %v998
    %v1000 = vadd.f32 %v999, 1.0
    %v1001 = vmul.f32 %v1000, 0.5
    %v1002 = vmul.f32 %v995, 0.5
    %v1003 = vtanh.pop %v1002
    %v1004 = vadd.f32 %v1003, 1.0
    %v1005 = vmul.f32 %v1004, 0.5
    %v1006 = vtanh.pop %v996
    %v1007 = vmul.f32 %v997, 0.5
    %v1008 = vtanh.pop %v1007
    %v1009 = vadd.f32 %v1008, 1.0
    %v1010 = vmul.f32 %v1009, 0.5
    %v1011 = vmul.f32 %v1005, %v844
    %v1012 = vmul.f32 %v1001, %v1006
    %v1013 = vadd.f32 %v1011, %v1012
    %v1014 = vtanh.pop %v1013
    %v1015 = vmul.f32 %v1010, %v1014
    %s1016 = sadd.s32 %s601, 1
    %p1017 = scmp.lt.s32.totalorder %s1016, 8
    %s1018 = scalar_select %p1017, 1, 0
    %v1019 = vstv %s1018
    %vm1020 = vcmp.eq.s32.totalorder %v1019, 1
    %v1021 = vsel %vm1020, %v1015, %v843
    %v1022 = vsel %vm1020, %v1013, %v844
    %s1023 = smul.u32 2, 4
    %s1024 = smul.addr %s1023, 8
    %s1025 = scalar_lea.vmem [#allocation5], %s1024
    %v1026 = vld [vmem:[%s1025] sm:$0xff]
    %v1027 = vld [vmem:[%s1025 + $0x8] sm:$0xff]
    %v1028 = vld [vmem:[%s1025 + $0x10] sm:$0xff]
    %v1029 = vld [vmem:[%s1025 + $0x18] sm:$0xff]
    %1030 = vmatprep.subr.mxu0 %v612
    %1031 = vmatpush1.msra.mxu0 %v611
    %1032 = vmatprep.subr.mxu0 %v616
    %1033 = vmatpush1.msra.mxu0 %v615
    %1034 = vmatprep.subr.mxu0 %v620
    %1035 = vmatpush1.msra.mxu0 %v619
    %1036 = vmatprep.subr.mxu0 %v624
    %1037 = vmatpush1.msra.mxu0 %v623
    %1038 = vmatprep.subr.mxu0 %v628
    %1039 = vmatpush1.msra.mxu0 %v627
    %1040 = vmatprep.subr.mxu0 %v632
    %1041 = vmatpush1.msra.mxu0 %v631
    %1042 = vmatprep.subr.mxu0 %v636
    %1043 = vmatpush1.msra.mxu0 %v635
    %1044 = vmatprep.subr.mxu0 %v640
    %1045 = vmatpush1.msra.mxu0 %v639
    %1046 = vmatprep.subr.mxu0 %v644
    %1047 = vmatpush1.msra.mxu0 %v643
    %1048 = vmatprep.subr.mxu0 %v648
    %1049 = vmatpush1.msra.mxu0 %v647
    %1050 = vmatprep.subr.mxu0 %v652
    %1051 = vmatpush1.msra.mxu0 %v651
    %1052 = vmatprep.subr.mxu0 %v656
    %1053 = vmatpush1.msra.mxu0 %v655
    %1054 = vmatprep.subr.mxu0 %v660
    %1055 = vmatpush1.msra.mxu0 %v659
    %1056 = vmatprep.subr.mxu0 %v664
    %1057 = vmatpush1.msra.mxu0 %v663
    %1058 = vmatprep.subr.mxu0 %v668
    %1059 = vmatpush1.msra.mxu0 %v667
    %1060 = vmatprep.subr.mxu0 %v672
    %1061 = vmatpush1.msra.mxu0 %v671
    %1062 = vmatprep.subr.mxu0 0.0
    %1063 = vmatpush1.msra.mxu0 0.0
    %1064 = vmatprep.subr.mxu0 0.0
    %1065 = vmatpush1.msra.mxu0 0.0
    %1066 = vmatprep.subr.mxu0 0.0
    %1067 = vmatpush1.msra.mxu0 0.0
    %1068 = vmatprep.subr.mxu0 0.0
    %1069 = vmatpush1.msra.mxu0 0.0
    %1070 = vmatprep.subr.mxu0 0.0
    %1071 = vmatpush1.msra.mxu0 0.0
    %1072 = vmatprep.subr.mxu0 0.0
    %1073 = vmatpush1.msra.mxu0 0.0
    %1074 = vmatprep.subr.mxu0 0.0
    %1075 = vmatpush1.msra.mxu0 0.0
    %1076 = vmatprep.subr.mxu0 0.0
    %1077 = vmatpush1.msra.mxu0 0.0
    %1078 = vmatprep.subr.mxu0 0.0
    %1079 = vmatpush1.msra.mxu0 0.0
    %1080 = vmatprep.subr.mxu0 0.0
    %1081 = vmatpush1.msra.mxu0 0.0
    %1082 = vmatprep.subr.mxu0 0.0
    %1083 = vmatpush1.msra.mxu0 0.0
    %1084 = vmatprep.subr.mxu0 0.0
    %1085 = vmatpush1.msra.mxu0 0.0
    %1086 = vmatprep.subr.mxu0 0.0
    %1087 = vmatpush1.msra.mxu0 0.0
    %1088 = vmatprep.subr.mxu0 0.0
    %1089 = vmatpush1.msra.mxu0 0.0
    %1090 = vmatprep.subr.mxu0 0.0
    %1091 = vmatpush1.msra.mxu0 0.0
    %1092 = vmatprep.subr.mxu0 0.0
    %1093 = vmatpush1.msra.mxu0 0.0
    %1094 = vmatprep.mubr.f32.mxu0 0.0
    %1095 = vmatmul.mubr.f32.gmra.mrb[0].mxu0 %v1021
    %v1096 = vpop.f32.mrb[0].mxu0
    %v1097 = vadd.f32 0.0, %v1096
    %v1098 = vpop.f32.mrb[0].mxu0
    %v1099 = vadd.f32 0.0, %v1098
    %1100 = vdwg.mxu0
    %1101 = vmatprep.subr.mxu0 %v614
    %1102 = vmatpush1.msra.mxu0 %v613
    %1103 = vmatprep.subr.mxu0 %v618
    %1104 = vmatpush1.msra.mxu0 %v617
    %1105 = vmatprep.subr.mxu0 %v622
    %1106 = vmatpush1.msra.mxu0 %v621
    %1107 = vmatprep.subr.mxu0 %v626
    %1108 = vmatpush1.msra.mxu0 %v625
    %1109 = vmatprep.subr.mxu0 %v630
    %1110 = vmatpush1.msra.mxu0 %v629
    %1111 = vmatprep.subr.mxu0 %v634
    %1112 = vmatpush1.msra.mxu0 %v633
    %1113 = vmatprep.subr.mxu0 %v638
    %1114 = vmatpush1.msra.mxu0 %v637
    %1115 = vmatprep.subr.mxu0 %v642
    %1116 = vmatpush1.msra.mxu0 %v641
    %1117 = vmatprep.subr.mxu0 %v646
    %1118 = vmatpush1.msra.mxu0 %v645
    %1119 = vmatprep.subr.mxu0 %v650
    %1120 = vmatpush1.msra.mxu0 %v649
    %1121 = vmatprep.subr.mxu0 %v654
    %1122 = vmatpush1.msra.mxu0 %v653
    %1123 = vmatprep.subr.mxu0 %v658
    %1124 = vmatpush1.msra.mxu0 %v657
    %1125 = vmatprep.subr.mxu0 %v662
    %1126 = vmatpush1.msra.mxu0 %v661
    %1127 = vmatprep.subr.mxu0 %v666
    %1128 = vmatpush1.msra.mxu0 %v665
    %1129 = vmatprep.subr.mxu0 %v670
    %1130 = vmatpush1.msra.mxu0 %v669
    %1131 = vmatprep.subr.mxu0 %v674
    %1132 = vmatpush1.msra.mxu0 %v673
    %1133 = vmatprep.subr.mxu0 0.0
    %1134 = vmatpush1.msra.mxu0 0.0
    %1135 = vmatprep.subr.mxu0 0.0
    %1136 = vmatpush1.msra.mxu0 0.0
    %1137 = vmatprep.subr.mxu0 0.0
    %1138 = vmatpush1.msra.mxu0 0.0
    %1139 = vmatprep.subr.mxu0 0.0
    %1140 = vmatpush1.msra.mxu0 0.0
    %1141 = vmatprep.subr.mxu0 0.0
    %1142 = vmatpush1.msra.mxu0 0.0
    %1143 = vmatprep.subr.mxu0 0.0
    %1144 = vmatpush1.msra.mxu0 0.0
    %1145 = vmatprep.subr.mxu0 0.0
    %1146 = vmatpush1.msra.mxu0 0.0
    %1147 = vmatprep.subr.mxu0 0.0
    %1148 = vmatpush1.msra.mxu0 0.0
    %1149 = vmatprep.subr.mxu0 0.0
    %1150 = vmatpush1.msra.mxu0 0.0
    %1151 = vmatprep.subr.mxu0 0.0
    %1152 = vmatpush1.msra.mxu0 0.0
    %1153 = vmatprep.subr.mxu0 0.0
    %1154 = vmatpush1.msra.mxu0 0.0
    %1155 = vmatprep.subr.mxu0 0.0
    %1156 = vmatpush1.msra.mxu0 0.0
    %1157 = vmatprep.subr.mxu0 0.0
    %1158 = vmatpush1.msra.mxu0 0.0
    %1159 = vmatprep.subr.mxu0 0.0
    %1160 = vmatpush1.msra.mxu0 0.0
    %1161 = vmatprep.subr.mxu0 0.0
    %1162 = vmatpush1.msra.mxu0 0.0
    %1163 = vmatprep.subr.mxu0 0.0
    %1164 = vmatpush1.msra.mxu0 0.0
    %1165 = vmatprep.mubr.f32.mxu0 0.0
    %1166 = vmatmul.mubr.f32.gmra.mrb[0].mxu0 %v1021
    %v1167 = vpop.f32.mrb[0].mxu0
    %v1168 = vadd.f32 0.0, %v1167
    %v1169 = vpop.f32.mrb[0].mxu0
    %v1170 = vadd.f32 0.0, %v1169
    %1171 = vdwg.mxu0
    %v1172 = vadd.f32 %v1026, %v1097
    %v1173 = vadd.f32 %v1027, %v1099
    %v1174 = vadd.f32 %v1028, %v1168
    %v1175 = vadd.f32 %v1029, %v1170
    %v1176 = vmul.f32 %v1172, 0.5
    %v1177 = vtanh.pop %v1176
    %v1178 = vadd.f32 %v1177, 1.0
    %v1179 = vmul.f32 %v1178, 0.5
    %v1180 = vmul.f32 %v1173, 0.5
    %v1181 = vtanh.pop %v1180
    %v1182 = vadd.f32 %v1181, 1.0
    %v1183 = vmul.f32 %v1182, 0.5
    %v1184 = vtanh.pop %v1174
    %v1185 = vmul.f32 %v1175, 0.5
    %v1186 = vtanh.pop %v1185
    %v1187 = vadd.f32 %v1186, 1.0
    %v1188 = vmul.f32 %v1187, 0.5
    %v1189 = vmul.f32 %v1183, %v1022
    %v1190 = vmul.f32 %v1179, %v1184
    %v1191 = vadd.f32 %v1189, %v1190
    %v1192 = vtanh.pop %v1191
    %v1193 = vmul.f32 %v1188, %v1192
    %s1194 = sadd.s32 %s601, 2
    %p1195 = scmp.lt.s32.totalorder %s1194, 8
    %s1196 = scalar_select %p1195, 1, 0
    %v1197 = vstv %s1196
    %vm1198 = vcmp.eq.s32.totalorder %v1197, 1
    %v1199 = vsel %vm1198, %v1193, %v1021
    %v1200 = vsel %vm1198, %v1191, %v1022
    %s1201 = smul.u32 3, 4
    %s1202 = smul.addr %s1201, 8
    %s1203 = scalar_lea.vmem [#allocation5], %s1202
    %v1204 = vld [vmem:[%s1203] sm:$0xff]
    %v1205 = vld [vmem:[%s1203 + $0x8] sm:$0xff]
    %v1206 = vld [vmem:[%s1203 + $0x10] sm:$0xff]
    %v1207 = vld [vmem:[%s1203 + $0x18] sm:$0xff]
    %1208 = vmatprep.subr.mxu0 %v612
    %1209 = vmatpush1.msra.mxu0 %v611
    %1210 = vmatprep.subr.mxu0 %v616
    %1211 = vmatpush1.msra.mxu0 %v615
    %1212 = vmatprep.subr.mxu0 %v620
    %1213 = vmatpush1.msra.mxu0 %v619
    %1214 = vmatprep.subr.mxu0 %v624
    %1215 = vmatpush1.msra.mxu0 %v623
    %1216 = vmatprep.subr.mxu0 %v628
    %1217 = vmatpush1.msra.mxu0 %v627
    %1218 = vmatprep.subr.mxu0 %v632
    %1219 = vmatpush1.msra.mxu0 %v631
    %1220 = vmatprep.subr.mxu0 %v636
    %1221 = vmatpush1.msra.mxu0 %v635
    %1222 = vmatprep.subr.mxu0 %v640
    %1223 = vmatpush1.msra.mxu0 %v639
    %1224 = vmatprep.subr.mxu0 %v644
    %1225 = vmatpush1.msra.mxu0 %v643
    %1226 = vmatprep.subr.mxu0 %v648
    %1227 = vmatpush1.msra.mxu0 %v647
    %1228 = vmatprep.subr.mxu0 %v652
    %1229 = vmatpush1.msra.mxu0 %v651
    %1230 = vmatprep.subr.mxu0 %v656
    %1231 = vmatpush1.msra.mxu0 %v655
    %1232 = vmatprep.subr.mxu0 %v660
    %1233 = vmatpush1.msra.mxu0 %v659
    %1234 = vmatprep.subr.mxu0 %v664
    %1235 = vmatpush1.msra.mxu0 %v663
    %1236 = vmatprep.subr.mxu0 %v668
    %1237 = vmatpush1.msra.mxu0 %v667
    %1238 = vmatprep.subr.mxu0 %v672
    %1239 = vmatpush1.msra.mxu0 %v671
    %1240 = vmatprep.subr.mxu0 0.0
    %1241 = vmatpush1.msra.mxu0 0.0
    %1242 = vmatprep.subr.mxu0 0.0
    %1243 = vmatpush1.msra.mxu0 0.0
    %1244 = vmatprep.subr.mxu0 0.0
    %1245 = vmatpush1.msra.mxu0 0.0
    %1246 = vmatprep.subr.mxu0 0.0
    %1247 = vmatpush1.msra.mxu0 0.0
    %1248 = vmatprep.subr.mxu0 0.0
    %1249 = vmatpush1.msra.mxu0 0.0
    %1250 = vmatprep.subr.mxu0 0.0
    %1251 = vmatpush1.msra.mxu0 0.0
    %1252 = vmatprep.subr.mxu0 0.0
    %1253 = vmatpush1.msra.mxu0 0.0
    %1254 = vmatprep.subr.mxu0 0.0
    %1255 = vmatpush1.msra.mxu0 0.0
    %1256 = vmatprep.subr.mxu0 0.0
    %1257 = vmatpush1.msra.mxu0 0.0
    %1258 = vmatprep.subr.mxu0 0.0
    %1259 = vmatpush1.msra.mxu0 0.0
    %1260 = vmatprep.subr.mxu0 0.0
    %1261 = vmatpush1.msra.mxu0 0.0
    %1262 = vmatprep.subr.mxu0 0.0
    %1263 = vmatpush1.msra.mxu0 0.0
    %1264 = vmatprep.subr.mxu0 0.0
    %1265 = vmatpush1.msra.mxu0 0.0
    %1266 = vmatprep.subr.mxu0 0.0
    %1267 = vmatpush1.msra.mxu0 0.0
    %1268 = vmatprep.subr.mxu0 0.0
    %1269 = vmatpush1.msra.mxu0 0.0
    %1270 = vmatprep.subr.mxu0 0.0
    %1271 = vmatpush1.msra.mxu0 0.0
    %1272 = vmatprep.mubr.f32.mxu0 0.0
    %1273 = vmatmul.mubr.f32.gmra.mrb[0].mxu0 %v1199
    %v1274 = vpop.f32.mrb[0].mxu0
    %v1275 = vadd.f32 0.0, %v1274
    %v1276 = vpop.f32.mrb[0].mxu0
    %v1277 = vadd.f32 0.0, %v1276
    %1278 = vdwg.mxu0
    %1279 = vmatprep.subr.mxu0 %v614
    %1280 = vmatpush1.msra.mxu0 %v613
    %1281 = vmatprep.subr.mxu0 %v618
    %1282 = vmatpush1.msra.mxu0 %v617
    %1283 = vmatprep.subr.mxu0 %v622
    %1284 = vmatpush1.msra.mxu0 %v621
    %1285 = vmatprep.subr.mxu0 %v626
    %1286 = vmatpush1.msra.mxu0 %v625
    %1287 = vmatprep.subr.mxu0 %v630
    %1288 = vmatpush1.msra.mxu0 %v629
    %1289 = vmatprep.subr.mxu0 %v634
    %1290 = vmatpush1.msra.mxu0 %v633
    %1291 = vmatprep.subr.mxu0 %v638
    %1292 = vmatpush1.msra.mxu0 %v637
    %1293 = vmatprep.subr.mxu0 %v642
    %1294 = vmatpush1.msra.mxu0 %v641
    %1295 = vmatprep.subr.mxu0 %v646
    %1296 = vmatpush1.msra.mxu0 %v645
    %1297 = vmatprep.subr.mxu0 %v650
    %1298 = vmatpush1.msra.mxu0 %v649
    %1299 = vmatprep.subr.mxu0 %v654
    %1300 = vmatpush1.msra.mxu0 %v653
    %1301 = vmatprep.subr.mxu0 %v658
    %1302 = vmatpush1.msra.mxu0 %v657
    %1303 = vmatprep.subr.mxu0 %v662
    %1304 = vmatpush1.msra.mxu0 %v661
    %1305 = vmatprep.subr.mxu0 %v666
    %1306 = vmatpush1.msra.mxu0 %v665
    %1307 = vmatprep.subr.mxu0 %v670
    %1308 = vmatpush1.msra.mxu0 %v669
    %1309 = vmatprep.subr.mxu0 %v674
    %1310 = vmatpush1.msra.mxu0 %v673
    %1311 = vmatprep.subr.mxu0 0.0
    %1312 = vmatpush1.msra.mxu0 0.0
    %1313 = vmatprep.subr.mxu0 0.0
    %1314 = vmatpush1.msra.mxu0 0.0
    %1315 = vmatprep.subr.mxu0 0.0
    %1316 = vmatpush1.msra.mxu0 0.0
    %1317 = vmatprep.subr.mxu0 0.0
    %1318 = vmatpush1.msra.mxu0 0.0
    %1319 = vmatprep.subr.mxu0 0.0
    %1320 = vmatpush1.msra.mxu0 0.0
    %1321 = vmatprep.subr.mxu0 0.0
    %1322 = vmatpush1.msra.mxu0 0.0
    %1323 = vmatprep.subr.mxu0 0.0
    %1324 = vmatpush1.msra.mxu0 0.0
    %1325 = vmatprep.subr.mxu0 0.0
    %1326 = vmatpush1.msra.mxu0 0.0
    %1327 = vmatprep.subr.mxu0 0.0
    %1328 = vmatpush1.msra.mxu0 0.0
    %1329 = vmatprep.subr.mxu0 0.0
    %1330 = vmatpush1.msra.mxu0 0.0
    %1331 = vmatprep.subr.mxu0 0.0
    %1332 = vmatpush1.msra.mxu0 0.0
    %1333 = vmatprep.subr.mxu0 0.0
    %1334 = vmatpush1.msra.mxu0 0.0
    %1335 = vmatprep.subr.mxu0 0.0
    %1336 = vmatpush1.msra.mxu0 0.0
    %1337 = vmatprep.subr.mxu0 0.0
    %1338 = vmatpush1.msra.mxu0 0.0
    %1339 = vmatprep.subr.mxu0 0.0
    %1340 = vmatpush1.msra.mxu0 0.0
    %1341 = vmatprep.subr.mxu0 0.0
    %1342 = vmatpush1.msra.mxu0 0.0
    %1343 = vmatprep.mubr.f32.mxu0 0.0
    %1344 = vmatmul.mubr.f32.gmra.mrb[0].mxu0 %v1199
    %v1345 = vpop.f32.mrb[0].mxu0
    %v1346 = vadd.f32 0.0, %v1345
    %v1347 = vpop.f32.mrb[0].mxu0
    %v1348 = vadd.f32 0.0, %v1347
    %1349 = vdwg.mxu0
    %v1350 = vadd.f32 %v1204, %v1275
    %v1351 = vadd.f32 %v1205, %v1277
    %v1352 = vadd.f32 %v1206, %v1346
    %v1353 = vadd.f32 %v1207, %v1348
    %v1354 = vmul.f32 %v1350, 0.5
    %v1355 = vtanh.pop %v1354
    %v1356 = vadd.f32 %v1355, 1.0
    %v1357 = vmul.f32 %v1356, 0.5
    %v1358 = vmul.f32 %v1351, 0.5
    %v1359 = vtanh.pop %v1358
    %v1360 = vadd.f32 %v1359, 1.0
    %v1361 = vmul.f32 %v1360, 0.5
    %v1362 = vtanh.pop %v1352
    %v1363 = vmul.f32 %v1353, 0.5
    %v1364 = vtanh.pop %v1363
    %v1365 = vadd.f32 %v1364, 1.0
    %v1366 = vmul.f32 %v1365, 0.5
    %v1367 = vmul.f32 %v1361, %v1200
    %v1368 = vmul.f32 %v1357, %v1362
    %v1369 = vadd.f32 %v1367, %v1368
    %v1370 = vtanh.pop %v1369
    %v1371 = vmul.f32 %v1366, %v1370
    %s1372 = sadd.s32 %s601, 3
    %p1373 = scmp.lt.s32.totalorder %s1372, 8
    %s1374 = scalar_select %p1373, 1, 0
    %v1375 = vstv %s1374
    %vm1376 = vcmp.eq.s32.totalorder %v1375, 1
    %v1377 = vsel %vm1376, %v1371, %v1199
    %v1378 = vsel %vm1376, %v1369, %v1200
    %s1379 = smul.u32 4, 4
    %s1380 = smul.addr %s1379, 8
    %s1381 = scalar_lea.vmem [#allocation5], %s1380
    %v1382 = vld [vmem:[%s1381] sm:$0xff]
    %v1383 = vld [vmem:[%s1381 + $0x8] sm:$0xff]
    %v1384 = vld [vmem:[%s1381 + $0x10] sm:$0xff]
    %v1385 = vld [vmem:[%s1381 + $0x18] sm:$0xff]
    %1386 = vmatprep.subr.mxu0 %v612
    %1387 = vmatpush1.msra.mxu0 %v611
    %1388 = vmatprep.subr.mxu0 %v616
    %1389 = vmatpush1.msra.mxu0 %v615
    %1390 = vmatprep.subr.mxu0 %v620
    %1391 = vmatpush1.msra.mxu0 %v619
    %1392 = vmatprep.subr.mxu0 %v624
    %1393 = vmatpush1.msra.mxu0 %v623
    %1394 = vmatprep.subr.mxu0 %v628
    %1395 = vmatpush1.msra.mxu0 %v627
    %1396 = vmatprep.subr.mxu0 %v632
    %1397 = vmatpush1.msra.mxu0 %v631
    %1398 = vmatprep.subr.mxu0 %v636
    %1399 = vmatpush1.msra.mxu0 %v635
    %1400 = vmatprep.subr.mxu0 %v640
    %1401 = vmatpush1.msra.mxu0 %v639
    %1402 = vmatprep.subr.mxu0 %v644
    %1403 = vmatpush1.msra.mxu0 %v643
    %1404 = vmatprep.subr.mxu0 %v648
    %1405 = vmatpush1.msra.mxu0 %v647
    %1406 = vmatprep.subr.mxu0 %v652
    %1407 = vmatpush1.msra.mxu0 %v651
    %1408 = vmatprep.subr.mxu0 %v656
    %1409 = vmatpush1.msra.mxu0 %v655
    %1410 = vmatprep.subr.mxu0 %v660
    %1411 = vmatpush1.msra.mxu0 %v659
    %1412 = vmatprep.subr.mxu0 %v664
    %1413 = vmatpush1.msra.mxu0 %v663
    %1414 = vmatprep.subr.mxu0 %v668
    %1415 = vmatpush1.msra.mxu0 %v667
    %1416 = vmatprep.subr.mxu0 %v672
    %1417 = vmatpush1.msra.mxu0 %v671
    %1418 = vmatprep.subr.mxu0 0.0
    %1419 = vmatpush1.msra.mxu0 0.0
    %1420 = vmatprep.subr.mxu0 0.0
    %1421 = vmatpush1.msra.mxu0 0.0
    %1422 = vmatprep.subr.mxu0 0.0
    %1423 = vmatpush1.msra.mxu0 0.0
    %1424 = vmatprep.subr.mxu0 0.0
    %1425 = vmatpush1.msra.mxu0 0.0
    %1426 = vmatprep.subr.mxu0 0.0
    %1427 = vmatpush1.msra.mxu0 0.0
    %1428 = vmatprep.subr.mxu0 0.0
    %1429 = vmatpush1.msra.mxu0 0.0
    %1430 = vmatprep.subr.mxu0 0.0
    %1431 = vmatpush1.msra.mxu0 0.0
    %1432 = vmatprep.subr.mxu0 0.0
    %1433 = vmatpush1.msra.mxu0 0.0
    %1434 = vmatprep.subr.mxu0 0.0
    %1435 = vmatpush1.msra.mxu0 0.0
    %1436 = vmatprep.subr.mxu0 0.0
    %1437 = vmatpush1.msra.mxu0 0.0
    %1438 = vmatprep.subr.mxu0 0.0
    %1439 = vmatpush1.msra.mxu0 0.0
    %1440 = vmatprep.subr.mxu0 0.0
    %1441 = vmatpush1.msra.mxu0 0.0
    %1442 = vmatprep.subr.mxu0 0.0
    %1443 = vmatpush1.msra.mxu0 0.0
    %1444 = vmatprep.subr.mxu0 0.0
    %1445 = vmatpush1.msra.mxu0 0.0
    %1446 = vmatprep.subr.mxu0 0.0
    %1447 = vmatpush1.msra.mxu0 0.0
    %1448 = vmatprep.subr.mxu0 0.0
    %1449 = vmatpush1.msra.mxu0 0.0
    %1450 = vmatprep.mubr.f32.mxu0 0.0
    %1451 = vmatmul.mubr.f32.gmra.mrb[0].mxu0 %v1377
    %v1452 = vpop.f32.mrb[0].mxu0
    %v1453 = vadd.f32 0.0, %v1452
    %v1454 = vpop.f32.mrb[0].mxu0
    %v1455 = vadd.f32 0.0, %v1454
    %1456 = vdwg.mxu0
    %1457 = vmatprep.subr.mxu0 %v614
    %1458 = vmatpush1.msra.mxu0 %v613
    %1459 = vmatprep.subr.mxu0 %v618
    %1460 = vmatpush1.msra.mxu0 %v617
    %1461 = vmatprep.subr.mxu0 %v622
    %1462 = vmatpush1.msra.mxu0 %v621
    %1463 = vmatprep.subr.mxu0 %v626
    %1464 = vmatpush1.msra.mxu0 %v625
    %1465 = vmatprep.subr.mxu0 %v630
    %1466 = vmatpush1.msra.mxu0 %v629
    %1467 = vmatprep.subr.mxu0 %v634
    %1468 = vmatpush1.msra.mxu0 %v633
    %1469 = vmatprep.subr.mxu0 %v638
    %1470 = vmatpush1.msra.mxu0 %v637
    %1471 = vmatprep.subr.mxu0 %v642
    %1472 = vmatpush1.msra.mxu0 %v641
    %1473 = vmatprep.subr.mxu0 %v646
    %1474 = vmatpush1.msra.mxu0 %v645
    %1475 = vmatprep.subr.mxu0 %v650
    %1476 = vmatpush1.msra.mxu0 %v649
    %1477 = vmatprep.subr.mxu0 %v654
    %1478 = vmatpush1.msra.mxu0 %v653
    %1479 = vmatprep.subr.mxu0 %v658
    %1480 = vmatpush1.msra.mxu0 %v657
    %1481 = vmatprep.subr.mxu0 %v662
    %1482 = vmatpush1.msra.mxu0 %v661
    %1483 = vmatprep.subr.mxu0 %v666
    %1484 = vmatpush1.msra.mxu0 %v665
    %1485 = vmatprep.subr.mxu0 %v670
    %1486 = vmatpush1.msra.mxu0 %v669
    %1487 = vmatprep.subr.mxu0 %v674
    %1488 = vmatpush1.msra.mxu0 %v673
    %1489 = vmatprep.subr.mxu0 0.0
    %1490 = vmatpush1.msra.mxu0 0.0
    %1491 = vmatprep.subr.mxu0 0.0
    %1492 = vmatpush1.msra.mxu0 0.0
    %1493 = vmatprep.subr.mxu0 0.0
    %1494 = vmatpush1.msra.mxu0 0.0
    %1495 = vmatprep.subr.mxu0 0.0
    %1496 = vmatpush1.msra.mxu0 0.0
    %1497 = vmatprep.subr.mxu0 0.0
    %1498 = vmatpush1.msra.mxu0 0.0
    %1499 = vmatprep.subr.mxu0 0.0
    %1500 = vmatpush1.msra.mxu0 0.0
    %1501 = vmatprep.subr.mxu0 0.0
    %1502 = vmatpush1.msra.mxu0 0.0
    %1503 = vmatprep.subr.mxu0 0.0
    %1504 = vmatpush1.msra.mxu0 0.0
    %1505 = vmatprep.subr.mxu0 0.0
    %1506 = vmatpush1.msra.mxu0 0.0
    %1507 = vmatprep.subr.mxu0 0.0
    %1508 = vmatpush1.msra.mxu0 0.0
    %1509 = vmatprep.subr.mxu0 0.0
    %1510 = vmatpush1.msra.mxu0 0.0
    %1511 = vmatprep.subr.mxu0 0.0
    %1512 = vmatpush1.msra.mxu0 0.0
    %1513 = vmatprep.subr.mxu0 0.0
    %1514 = vmatpush1.msra.mxu0 0.0
    %1515 = vmatprep.subr.mxu0 0.0
    %1516 = vmatpush1.msra.mxu0 0.0
    %1517 = vmatprep.subr.mxu0 0.0
    %1518 = vmatpush1.msra.mxu0 0.0
    %1519 = vmatprep.subr.mxu0 0.0
    %1520 = vmatpush1.msra.mxu0 0.0
    %1521 = vmatprep.mubr.f32.mxu0 0.0
    %1522 = vmatmul.mubr.f32.gmra.mrb[0].mxu0 %v1377
    %v1523 = vpop.f32.mrb[0].mxu0
    %v1524 = vadd.f32 0.0, %v1523
    %v1525 = vpop.f32.mrb[0].mxu0
    %v1526 = vadd.f32 0.0, %v1525
    %1527 = vdwg.mxu0
    %v1528 = vadd.f32 %v1382, %v1453
    %v1529 = vadd.f32 %v1383, %v1455
    %v1530 = vadd.f32 %v1384, %v1524
    %v1531 = vadd.f32 %v1385, %v1526
    %v1532 = vmul.f32 %v1528, 0.5
    %v1533 = vtanh.pop %v1532
    %v1534 = vadd.f32 %v1533, 1.0
    %v1535 = vmul.f32 %v1534, 0.5
    %v1536 = vmul.f32 %v1529, 0.5
    %v1537 = vtanh.pop %v1536
    %v1538 = vadd.f32 %v1537, 1.0
    %v1539 = vmul.f32 %v1538, 0.5
    %v1540 = vtanh.pop %v1530
    %v1541 = vmul.f32 %v1531, 0.5
    %v1542 = vtanh.pop %v1541
    %v1543 = vadd.f32 %v1542, 1.0
    %v1544 = vmul.f32 %v1543, 0.5
    %v1545 = vmul.f32 %v1539, %v1378
    %v1546 = vmul.f32 %v1535, %v1540
    %v1547 = vadd.f32 %v1545, %v1546
    %v1548 = vtanh.pop %v1547
    %v1549 = vmul.f32 %v1544, %v1548
    %s1550 = sadd.s32 %s601, 4
    %p1551 = scmp.lt.s32.totalorder %s1550, 8
    %s1552 = scalar_select %p1551, 1, 0
    %v1553 = vstv %s1552
    %vm1554 = vcmp.eq.s32.totalorder %v1553, 1
    %v1555 = vsel %vm1554, %v1549, %v1377
    %v1556 = vsel %vm1554, %v1547, %v1378
    %s1557 = smul.u32 5, 4
    %s1558 = smul.addr %s1557, 8
    %s1559 = scalar_lea.vmem [#allocation5], %s1558
    %v1560 = vld [vmem:[%s1559] sm:$0xff]
    %v1561 = vld [vmem:[%s1559 + $0x8] sm:$0xff]
    %v1562 = vld [vmem:[%s1559 + $0x10] sm:$0xff]
    %v1563 = vld [vmem:[%s1559 + $0x18] sm:$0xff]
    %1564 = vmatprep.subr.mxu0 %v612
    %1565 = vmatpush1.msra.mxu0 %v611
    %1566 = vmatprep.subr.mxu0 %v616
    %1567 = vmatpush1.msra.mxu0 %v615
    %1568 = vmatprep.subr.mxu0 %v620
    %1569 = vmatpush1.msra.mxu0 %v619
    %1570 = vmatprep.subr.mxu0 %v624
    %1571 = vmatpush1.msra.mxu0 %v623
    %1572 = vmatprep.subr.mxu0 %v628
    %1573 = vmatpush1.msra.mxu0 %v627
    %1574 = vmatprep.subr.mxu0 %v632
    %1575 = vmatpush1.msra.mxu0 %v631
    %1576 = vmatprep.subr.mxu0 %v636
    %1577 = vmatpush1.msra.mxu0 %v635
    %1578 = vmatprep.subr.mxu0 %v640
    %1579 = vmatpush1.msra.mxu0 %v639
    %1580 = vmatprep.subr.mxu0 %v644
    %1581 = vmatpush1.msra.mxu0 %v643
    %1582 = vmatprep.subr.mxu0 %v648
    %1583 = vmatpush1.msra.mxu0 %v647
    %1584 = vmatprep.subr.mxu0 %v652
    %1585 = vmatpush1.msra.mxu0 %v651
    %1586 = vmatprep.subr.mxu0 %v656
    %1587 = vmatpush1.msra.mxu0 %v655
    %1588 = vmatprep.subr.mxu0 %v660
    %1589 = vmatpush1.msra.mxu0 %v659
    %1590 = vmatprep.subr.mxu0 %v664
    %1591 = vmatpush1.msra.mxu0 %v663
    %1592 = vmatprep.subr.mxu0 %v668
    %1593 = vmatpush1.msra.mxu0 %v667
    %1594 = vmatprep.subr.mxu0 %v672
    %1595 = vmatpush1.msra.mxu0 %v671
    %1596 = vmatprep.subr.mxu0 0.0
    %1597 = vmatpush1.msra.mxu0 0.0
    %1598 = vmatprep.subr.mxu0 0.0
    %1599 = vmatpush1.msra.mxu0 0.0
    %1600 = vmatprep.subr.mxu0 0.0
    %1601 = vmatpush1.msra.mxu0 0.0
    %1602 = vmatprep.subr.mxu0 0.0
    %1603 = vmatpush1.msra.mxu0 0.0
    %1604 = vmatprep.subr.mxu0 0.0
    %1605 = vmatpush1.msra.mxu0 0.0
    %1606 = vmatprep.subr.mxu0 0.0
    %1607 = vmatpush1.msra.mxu0 0.0
    %1608 = vmatprep.subr.mxu0 0.0
    %1609 = vmatpush1.msra.mxu0 0.0
    %1610 = vmatprep.subr.mxu0 0.0
    %1611 = vmatpush1.msra.mxu0 0.0
    %1612 = vmatprep.subr.mxu0 0.0
    %1613 = vmatpush1.msra.mxu0 0.0
    %1614 = vmatprep.subr.mxu0 0.0
    %1615 = vmatpush1.msra.mxu0 0.0
    %1616 = vmatprep.subr.mxu0 0.0
    %1617 = vmatpush1.msra.mxu0 0.0
    %1618 = vmatprep.subr.mxu0 0.0
    %1619 = vmatpush1.msra.mxu0 0.0
    %1620 = vmatprep.subr.mxu0 0.0
    %1621 = vmatpush1.msra.mxu0 0.0
    %1622 = vmatprep.subr.mxu0 0.0
    %1623 = vmatpush1.msra.mxu0 0.0
    %1624 = vmatprep.subr.mxu0 0.0
    %1625 = vmatpush1.msra.mxu0 0.0
    %1626 = vmatprep.subr.mxu0 0.0
    %1627 = vmatpush1.msra.mxu0 0.0
    %1628 = vmatprep.mubr.f32.mxu0 0.0
    %1629 = vmatmul.mubr.f32.gmra.mrb[0].mxu0 %v1555
    %v1630 = vpop.f32.mrb[0].mxu0
    %v1631 = vadd.f32 0.0, %v1630
    %v1632 = vpop.f32.mrb[0].mxu0
    %v1633 = vadd.f32 0.0, %v1632
    %1634 = vdwg.mxu0
    %1635 = vmatprep.subr.mxu0 %v614
    %1636 = vmatpush1.msra.mxu0 %v613
    %1637 = vmatprep.subr.mxu0 %v618
    %1638 = vmatpush1.msra.mxu0 %v617
    %1639 = vmatprep.subr.mxu0 %v622
    %1640 = vmatpush1.msra.mxu0 %v621
    %1641 = vmatprep.subr.mxu0 %v626
    %1642 = vmatpush1.msra.mxu0 %v625
    %1643 = vmatprep.subr.mxu0 %v630
    %1644 = vmatpush1.msra.mxu0 %v629
    %1645 = vmatprep.subr.mxu0 %v634
    %1646 = vmatpush1.msra.mxu0 %v633
    %1647 = vmatprep.subr.mxu0 %v638
    %1648 = vmatpush1.msra.mxu0 %v637
    %1649 = vmatprep.subr.mxu0 %v642
    %1650 = vmatpush1.msra.mxu0 %v641
    %1651 = vmatprep.subr.mxu0 %v646
    %1652 = vmatpush1.msra.mxu0 %v645
    %1653 = vmatprep.subr.mxu0 %v650
    %1654 = vmatpush1.msra.mxu0 %v649
    %1655 = vmatprep.subr.mxu0 %v654
    %1656 = vmatpush1.msra.mxu0 %v653
    %1657 = vmatprep.subr.mxu0 %v658
    %1658 = vmatpush1.msra.mxu0 %v657
    %1659 = vmatprep.subr.mxu0 %v662
    %1660 = vmatpush1.msra.mxu0 %v661
    %1661 = vmatprep.subr.mxu0 %v666
    %1662 = vmatpush1.msra.mxu0 %v665
    %1663 = vmatprep.subr.mxu0 %v670
    %1664 = vmatpush1.msra.mxu0 %v669
    %1665 = vmatprep.subr.mxu0 %v674
    %1666 = vmatpush1.msra.mxu0 %v673
    %1667 = vmatprep.subr.mxu0 0.0
    %1668 = vmatpush1.msra.mxu0 0.0
    %1669 = vmatprep.subr.mxu0 0.0
    %1670 = vmatpush1.msra.mxu0 0.0
    %1671 = vmatprep.subr.mxu0 0.0
    %1672 = vmatpush1.msra.mxu0 0.0
    %1673 = vmatprep.subr.mxu0 0.0
    %1674 = vmatpush1.msra.mxu0 0.0
    %1675 = vmatprep.subr.mxu0 0.0
    %1676 = vmatpush1.msra.mxu0 0.0
    %1677 = vmatprep.subr.mxu0 0.0
    %1678 = vmatpush1.msra.mxu0 0.0
    %1679 = vmatprep.subr.mxu0 0.0
    %1680 = vmatpush1.msra.mxu0 0.0
    %1681 = vmatprep.subr.mxu0 0.0
    %1682 = vmatpush1.msra.mxu0 0.0
    %1683 = vmatprep.subr.mxu0 0.0
    %1684 = vmatpush1.msra.mxu0 0.0
    %1685 = vmatprep.subr.mxu0 0.0
    %1686 = vmatpush1.msra.mxu0 0.0
    %1687 = vmatprep.subr.mxu0 0.0
    %1688 = vmatpush1.msra.mxu0 0.0
    %1689 = vmatprep.subr.mxu0 0.0
    %1690 = vmatpush1.msra.mxu0 0.0
    %1691 = vmatprep.subr.mxu0 0.0
    %1692 = vmatpush1.msra.mxu0 0.0
    %1693 = vmatprep.subr.mxu0 0.0
    %1694 = vmatpush1.msra.mxu0 0.0
    %1695 = vmatprep.subr.mxu0 0.0
    %1696 = vmatpush1.msra.mxu0 0.0
    %1697 = vmatprep.subr.mxu0 0.0
    %1698 = vmatpush1.msra.mxu0 0.0
    %1699 = vmatprep.mubr.f32.mxu0 0.0
    %1700 = vmatmul.mubr.f32.gmra.mrb[0].mxu0 %v1555
    %v1701 = vpop.f32.mrb[0].mxu0
    %v1702 = vadd.f32 0.0, %v1701
    %v1703 = vpop.f32.mrb[0].mxu0
    %v1704 = vadd.f32 0.0, %v1703
    %1705 = vdwg.mxu0
    %v1706 = vadd.f32 %v1560, %v1631
    %v1707 = vadd.f32 %v1561, %v1633
    %v1708 = vadd.f32 %v1562, %v1702
    %v1709 = vadd.f32 %v1563, %v1704
    %v1710 = vmul.f32 %v1706, 0.5
    %v1711 = vtanh.pop %v1710
    %v1712 = vadd.f32 %v1711, 1.0
    %v1713 = vmul.f32 %v1712, 0.5
    %v1714 = vmul.f32 %v1707, 0.5
    %v1715 = vtanh.pop %v1714
    %v1716 = vadd.f32 %v1715, 1.0
    %v1717 = vmul.f32 %v1716, 0.5
    %v1718 = vtanh.pop %v1708
    %v1719 = vmul.f32 %v1709, 0.5
    %v1720 = vtanh.pop %v1719
    %v1721 = vadd.f32 %v1720, 1.0
    %v1722 = vmul.f32 %v1721, 0.5
    %v1723 = vmul.f32 %v1717, %v1556
    %v1724 = vmul.f32 %v1713, %v1718
    %v1725 = vadd.f32 %v1723, %v1724
    %v1726 = vtanh.pop %v1725
    %v1727 = vmul.f32 %v1722, %v1726
    %s1728 = sadd.s32 %s601, 5
    %p1729 = scmp.lt.s32.totalorder %s1728, 8
    %s1730 = scalar_select %p1729, 1, 0
    %v1731 = vstv %s1730
    %vm1732 = vcmp.eq.s32.totalorder %v1731, 1
    %v1733 = vsel %vm1732, %v1727, %v1555
    %v1734 = vsel %vm1732, %v1725, %v1556
    %s1735 = smul.u32 6, 4
    %s1736 = smul.addr %s1735, 8
    %s1737 = scalar_lea.vmem [#allocation5], %s1736
    %v1738 = vld [vmem:[%s1737] sm:$0xff]
    %v1739 = vld [vmem:[%s1737 + $0x8] sm:$0xff]
    %v1740 = vld [vmem:[%s1737 + $0x10] sm:$0xff]
    %v1741 = vld [vmem:[%s1737 + $0x18] sm:$0xff]
    %1742 = vmatprep.subr.mxu0 %v612
    %1743 = vmatpush1.msra.mxu0 %v611
    %1744 = vmatprep.subr.mxu0 %v616
    %1745 = vmatpush1.msra.mxu0 %v615
    %1746 = vmatprep.subr.mxu0 %v620
    %1747 = vmatpush1.msra.mxu0 %v619
    %1748 = vmatprep.subr.mxu0 %v624
    %1749 = vmatpush1.msra.mxu0 %v623
    %1750 = vmatprep.subr.mxu0 %v628
    %1751 = vmatpush1.msra.mxu0 %v627
    %1752 = vmatprep.subr.mxu0 %v632
    %1753 = vmatpush1.msra.mxu0 %v631
    %1754 = vmatprep.subr.mxu0 %v636
    %1755 = vmatpush1.msra.mxu0 %v635
    %1756 = vmatprep.subr.mxu0 %v640
    %1757 = vmatpush1.msra.mxu0 %v639
    %1758 = vmatprep.subr.mxu0 %v644
    %1759 = vmatpush1.msra.mxu0 %v643
    %1760 = vmatprep.subr.mxu0 %v648
    %1761 = vmatpush1.msra.mxu0 %v647
    %1762 = vmatprep.subr.mxu0 %v652
    %1763 = vmatpush1.msra.mxu0 %v651
    %1764 = vmatprep.subr.mxu0 %v656
    %1765 = vmatpush1.msra.mxu0 %v655
    %1766 = vmatprep.subr.mxu0 %v660
    %1767 = vmatpush1.msra.mxu0 %v659
    %1768 = vmatprep.subr.mxu0 %v664
    %1769 = vmatpush1.msra.mxu0 %v663
    %1770 = vmatprep.subr.mxu0 %v668
    %1771 = vmatpush1.msra.mxu0 %v667
    %1772 = vmatprep.subr.mxu0 %v672
    %1773 = vmatpush1.msra.mxu0 %v671
    %1774 = vmatprep.subr.mxu0 0.0
    %1775 = vmatpush1.msra.mxu0 0.0
    %1776 = vmatprep.subr.mxu0 0.0
    %1777 = vmatpush1.msra.mxu0 0.0
    %1778 = vmatprep.subr.mxu0 0.0
    %1779 = vmatpush1.msra.mxu0 0.0
    %1780 = vmatprep.subr.mxu0 0.0
    %1781 = vmatpush1.msra.mxu0 0.0
    %1782 = vmatprep.subr.mxu0 0.0
    %1783 = vmatpush1.msra.mxu0 0.0
    %1784 = vmatprep.subr.mxu0 0.0
    %1785 = vmatpush1.msra.mxu0 0.0
    %1786 = vmatprep.subr.mxu0 0.0
    %1787 = vmatpush1.msra.mxu0 0.0
    %1788 = vmatprep.subr.mxu0 0.0
    %1789 = vmatpush1.msra.mxu0 0.0
    %1790 = vmatprep.subr.mxu0 0.0
    %1791 = vmatpush1.msra.mxu0 0.0
    %1792 = vmatprep.subr.mxu0 0.0
    %1793 = vmatpush1.msra.mxu0 0.0
    %1794 = vmatprep.subr.mxu0 0.0
    %1795 = vmatpush1.msra.mxu0 0.0
    %1796 = vmatprep.subr.mxu0 0.0
    %1797 = vmatpush1.msra.mxu0 0.0
    %1798 = vmatprep.subr.mxu0 0.0
    %1799 = vmatpush1.msra.mxu0 0.0
    %1800 = vmatprep.subr.mxu0 0.0
    %1801 = vmatpush1.msra.mxu0 0.0
    %1802 = vmatprep.subr.mxu0 0.0
    %1803 = vmatpush1.msra.mxu0 0.0
    %1804 = vmatprep.subr.mxu0 0.0
    %1805 = vmatpush1.msra.mxu0 0.0
    %1806 = vmatprep.mubr.f32.mxu0 0.0
    %1807 = vmatmul.mubr.f32.gmra.mrb[0].mxu0 %v1733
    %v1808 = vpop.f32.mrb[0].mxu0
    %v1809 = vadd.f32 0.0, %v1808
    %v1810 = vpop.f32.mrb[0].mxu0
    %v1811 = vadd.f32 0.0, %v1810
    %1812 = vdwg.mxu0
    %1813 = vmatprep.subr.mxu0 %v614
    %1814 = vmatpush1.msra.mxu0 %v613
    %1815 = vmatprep.subr.mxu0 %v618
    %1816 = vmatpush1.msra.mxu0 %v617
    %1817 = vmatprep.subr.mxu0 %v622
    %1818 = vmatpush1.msra.mxu0 %v621
    %1819 = vmatprep.subr.mxu0 %v626
    %1820 = vmatpush1.msra.mxu0 %v625
    %1821 = vmatprep.subr.mxu0 %v630
    %1822 = vmatpush1.msra.mxu0 %v629
    %1823 = vmatprep.subr.mxu0 %v634
    %1824 = vmatpush1.msra.mxu0 %v633
    %1825 = vmatprep.subr.mxu0 %v638
    %1826 = vmatpush1.msra.mxu0 %v637
    %1827 = vmatprep.subr.mxu0 %v642
    %1828 = vmatpush1.msra.mxu0 %v641
    %1829 = vmatprep.subr.mxu0 %v646
    %1830 = vmatpush1.msra.mxu0 %v645
    %1831 = vmatprep.subr.mxu0 %v650
    %1832 = vmatpush1.msra.mxu0 %v649
    %1833 = vmatprep.subr.mxu0 %v654
    %1834 = vmatpush1.msra.mxu0 %v653
    %1835 = vmatprep.subr.mxu0 %v658
    %1836 = vmatpush1.msra.mxu0 %v657
    %1837 = vmatprep.subr.mxu0 %v662
    %1838 = vmatpush1.msra.mxu0 %v661
    %1839 = vmatprep.subr.mxu0 %v666
    %1840 = vmatpush1.msra.mxu0 %v665
    %1841 = vmatprep.subr.mxu0 %v670
    %1842 = vmatpush1.msra.mxu0 %v669
    %1843 = vmatprep.subr.mxu0 %v674
    %1844 = vmatpush1.msra.mxu0 %v673
    %1845 = vmatprep.subr.mxu0 0.0
    %1846 = vmatpush1.msra.mxu0 0.0
    %1847 = vmatprep.subr.mxu0 0.0
    %1848 = vmatpush1.msra.mxu0 0.0
    %1849 = vmatprep.subr.mxu0 0.0
    %1850 = vmatpush1.msra.mxu0 0.0
    %1851 = vmatprep.subr.mxu0 0.0
    %1852 = vmatpush1.msra.mxu0 0.0
    %1853 = vmatprep.subr.mxu0 0.0
    %1854 = vmatpush1.msra.mxu0 0.0
    %1855 = vmatprep.subr.mxu0 0.0
    %1856 = vmatpush1.msra.mxu0 0.0
    %1857 = vmatprep.subr.mxu0 0.0
    %1858 = vmatpush1.msra.mxu0 0.0
    %1859 = vmatprep.subr.mxu0 0.0
    %1860 = vmatpush1.msra.mxu0 0.0
    %1861 = vmatprep.subr.mxu0 0.0
    %1862 = vmatpush1.msra.mxu0 0.0
    %1863 = vmatprep.subr.mxu0 0.0
    %1864 = vmatpush1.msra.mxu0 0.0
    %1865 = vmatprep.subr.mxu0 0.0
    %1866 = vmatpush1.msra.mxu0 0.0
    %1867 = vmatprep.subr.mxu0 0.0
    %1868 = vmatpush1.msra.mxu0 0.0
    %1869 = vmatprep.subr.mxu0 0.0
    %1870 = vmatpush1.msra.mxu0 0.0
    %1871 = vmatprep.subr.mxu0 0.0
    %1872 = vmatpush1.msra.mxu0 0.0
    %1873 = vmatprep.subr.mxu0 0.0
    %1874 = vmatpush1.msra.mxu0 0.0
    %1875 = vmatprep.subr.mxu0 0.0
    %1876 = vmatpush1.msra.mxu0 0.0
    %1877 = vmatprep.mubr.f32.mxu0 0.0
    %1878 = vmatmul.mubr.f32.gmra.mrb[0].mxu0 %v1733
    %v1879 = vpop.f32.mrb[0].mxu0
    %v1880 = vadd.f32 0.0, %v1879
    %v1881 = vpop.f32.mrb[0].mxu0
    %v1882 = vadd.f32 0.0, %v1881
    %1883 = vdwg.mxu0
    %v1884 = vadd.f32 %v1738, %v1809
    %v1885 = vadd.f32 %v1739, %v1811
    %v1886 = vadd.f32 %v1740, %v1880
    %v1887 = vadd.f32 %v1741, %v1882
    %v1888 = vmul.f32 %v1884, 0.5
    %v1889 = vtanh.pop %v1888
    %v1890 = vadd.f32 %v1889, 1.0
    %v1891 = vmul.f32 %v1890, 0.5
    %v1892 = vmul.f32 %v1885, 0.5
    %v1893 = vtanh.pop %v1892
    %v1894 = vadd.f32 %v1893, 1.0
    %v1895 = vmul.f32 %v1894, 0.5
    %v1896 = vtanh.pop %v1886
    %v1897 = vmul.f32 %v1887, 0.5
    %v1898 = vtanh.pop %v1897
    %v1899 = vadd.f32 %v1898, 1.0
    %v1900 = vmul.f32 %v1899, 0.5
    %v1901 = vmul.f32 %v1895, %v1734
    %v1902 = vmul.f32 %v1891, %v1896
    %v1903 = vadd.f32 %v1901, %v1902
    %v1904 = vtanh.pop %v1903
    %v1905 = vmul.f32 %v1900, %v1904
    %s1906 = sadd.s32 %s601, 6
    %p1907 = scmp.lt.s32.totalorder %s1906, 8
    %s1908 = scalar_select %p1907, 1, 0
    %v1909 = vstv %s1908
    %vm1910 = vcmp.eq.s32.totalorder %v1909, 1
    %v1911 = vsel %vm1910, %v1905, %v1733
    %v1912 = vsel %vm1910, %v1903, %v1734
    %s1913 = smul.u32 7, 4
    %s1914 = smul.addr %s1913, 8
    %s1915 = scalar_lea.vmem [#allocation5], %s1914
    %v1916 = vld [vmem:[%s1915] sm:$0xff]
    %v1917 = vld [vmem:[%s1915 + $0x8] sm:$0xff]
    %v1918 = vld [vmem:[%s1915 + $0x10] sm:$0xff]
    %v1919 = vld [vmem:[%s1915 + $0x18] sm:$0xff]
    %1920 = vmatprep.subr.mxu0 %v612
    %1921 = vmatpush1.msra.mxu0 %v611
    %1922 = vmatprep.subr.mxu0 %v616
    %1923 = vmatpush1.msra.mxu0 %v615
    %1924 = vmatprep.subr.mxu0 %v620
    %1925 = vmatpush1.msra.mxu0 %v619
    %1926 = vmatprep.subr.mxu0 %v624
    %1927 = vmatpush1.msra.mxu0 %v623
    %1928 = vmatprep.subr.mxu0 %v628
    %1929 = vmatpush1.msra.mxu0 %v627
    %1930 = vmatprep.subr.mxu0 %v632
    %1931 = vmatpush1.msra.mxu0 %v631
    %1932 = vmatprep.subr.mxu0 %v636
    %1933 = vmatpush1.msra.mxu0 %v635
    %1934 = vmatprep.subr.mxu0 %v640
    %1935 = vmatpush1.msra.mxu0 %v639
    %1936 = vmatprep.subr.mxu0 %v644
    %1937 = vmatpush1.msra.mxu0 %v643
    %1938 = vmatprep.subr.mxu0 %v648
    %1939 = vmatpush1.msra.mxu0 %v647
    %1940 = vmatprep.subr.mxu0 %v652
    %1941 = vmatpush1.msra.mxu0 %v651
    %1942 = vmatprep.subr.mxu0 %v656
    %1943 = vmatpush1.msra.mxu0 %v655
    %1944 = vmatprep.subr.mxu0 %v660
    %1945 = vmatpush1.msra.mxu0 %v659
    %1946 = vmatprep.subr.mxu0 %v664
    %1947 = vmatpush1.msra.mxu0 %v663
    %1948 = vmatprep.subr.mxu0 %v668
    %1949 = vmatpush1.msra.mxu0 %v667
    %1950 = vmatprep.subr.mxu0 %v672
    %1951 = vmatpush1.msra.mxu0 %v671
    %1952 = vmatprep.subr.mxu0 0.0
    %1953 = vmatpush1.msra.mxu0 0.0
    %1954 = vmatprep.subr.mxu0 0.0
    %1955 = vmatpush1.msra.mxu0 0.0
    %1956 = vmatprep.subr.mxu0 0.0
    %1957 = vmatpush1.msra.mxu0 0.0
    %1958 = vmatprep.subr.mxu0 0.0
    %1959 = vmatpush1.msra.mxu0 0.0
    %1960 = vmatprep.subr.mxu0 0.0
    %1961 = vmatpush1.msra.mxu0 0.0
    %1962 = vmatprep.subr.mxu0 0.0
    %1963 = vmatpush1.msra.mxu0 0.0
    %1964 = vmatprep.subr.mxu0 0.0
    %1965 = vmatpush1.msra.mxu0 0.0
    %1966 = vmatprep.subr.mxu0 0.0
    %1967 = vmatpush1.msra.mxu0 0.0
    %1968 = vmatprep.subr.mxu0 0.0
    %1969 = vmatpush1.msra.mxu0 0.0
    %1970 = vmatprep.subr.mxu0 0.0
    %1971 = vmatpush1.msra.mxu0 0.0
    %1972 = vmatprep.subr.mxu0 0.0
    %1973 = vmatpush1.msra.mxu0 0.0
    %1974 = vmatprep.subr.mxu0 0.0
    %1975 = vmatpush1.msra.mxu0 0.0
    %1976 = vmatprep.subr.mxu0 0.0
    %1977 = vmatpush1.msra.mxu0 0.0
    %1978 = vmatprep.subr.mxu0 0.0
    %1979 = vmatpush1.msra.mxu0 0.0
    %1980 = vmatprep.subr.mxu0 0.0
    %1981 = vmatpush1.msra.mxu0 0.0
    %1982 = vmatprep.subr.mxu0 0.0
    %1983 = vmatpush1.msra.mxu0 0.0
    %1984 = vmatprep.mubr.f32.mxu0 0.0
    %1985 = vmatmul.mubr.f32.gmra.mrb[0].mxu0 %v1911
    %v1986 = vpop.f32.mrb[0].mxu0
    %v1987 = vadd.f32 0.0, %v1986
    %v1988 = vpop.f32.mrb[0].mxu0
    %v1989 = vadd.f32 0.0, %v1988
    %1990 = vdwg.mxu0
    %1991 = vmatprep.subr.mxu0 %v614
    %1992 = vmatpush1.msra.mxu0 %v613
    %1993 = vmatprep.subr.mxu0 %v618
    %1994 = vmatpush1.msra.mxu0 %v617
    %1995 = vmatprep.subr.mxu0 %v622
    %1996 = vmatpush1.msra.mxu0 %v621
    %1997 = vmatprep.subr.mxu0 %v626
    %1998 = vmatpush1.msra.mxu0 %v625
    %1999 = vmatprep.subr.mxu0 %v630
    %2000 = vmatpush1.msra.mxu0 %v629
    %2001 = vmatprep.subr.mxu0 %v634
    %2002 = vmatpush1.msra.mxu0 %v633
    %2003 = vmatprep.subr.mxu0 %v638
    %2004 = vmatpush1.msra.mxu0 %v637
    %2005 = vmatprep.subr.mxu0 %v642
    %2006 = vmatpush1.msra.mxu0 %v641
    %2007 = vmatprep.subr.mxu0 %v646
    %2008 = vmatpush1.msra.mxu0 %v645
    %2009 = vmatprep.subr.mxu0 %v650
    %2010 = vmatpush1.msra.mxu0 %v649
    %2011 = vmatprep.subr.mxu0 %v654
    %2012 = vmatpush1.msra.mxu0 %v653
    %2013 = vmatprep.subr.mxu0 %v658
    %2014 = vmatpush1.msra.mxu0 %v657
    %2015 = vmatprep.subr.mxu0 %v662
    %2016 = vmatpush1.msra.mxu0 %v661
    %2017 = vmatprep.subr.mxu0 %v666
    %2018 = vmatpush1.msra.mxu0 %v665
    %2019 = vmatprep.subr.mxu0 %v670
    %2020 = vmatpush1.msra.mxu0 %v669
    %2021 = vmatprep.subr.mxu0 %v674
    %2022 = vmatpush1.msra.mxu0 %v673
    %2023 = vmatprep.subr.mxu0 0.0
    %2024 = vmatpush1.msra.mxu0 0.0
    %2025 = vmatprep.subr.mxu0 0.0
    %2026 = vmatpush1.msra.mxu0 0.0
    %2027 = vmatprep.subr.mxu0 0.0
    %2028 = vmatpush1.msra.mxu0 0.0
    %2029 = vmatprep.subr.mxu0 0.0
    %2030 = vmatpush1.msra.mxu0 0.0
    %2031 = vmatprep.subr.mxu0 0.0
    %2032 = vmatpush1.msra.mxu0 0.0
    %2033 = vmatprep.subr.mxu0 0.0
    %2034 = vmatpush1.msra.mxu0 0.0
    %2035 = vmatprep.subr.mxu0 0.0
    %2036 = vmatpush1.msra.mxu0 0.0
    %2037 = vmatprep.subr.mxu0 0.0
    %2038 = vmatpush1.msra.mxu0 0.0
    %2039 = vmatprep.subr.mxu0 0.0
    %2040 = vmatpush1.msra.mxu0 0.0
    %2041 = vmatprep.subr.mxu0 0.0
    %2042 = vmatpush1.msra.mxu0 0.0
    %2043 = vmatprep.subr.mxu0 0.0
    %2044 = vmatpush1.msra.mxu0 0.0
    %2045 = vmatprep.subr.mxu0 0.0
    %2046 = vmatpush1.msra.mxu0 0.0
    %2047 = vmatprep.subr.mxu0 0.0
    %2048 = vmatpush1.msra.mxu0 0.0
    %2049 = vmatprep.subr.mxu0 0.0
    %2050 = vmatpush1.msra.mxu0 0.0
    %2051 = vmatprep.subr.mxu0 0.0
    %2052 = vmatpush1.msra.mxu0 0.0
    %2053 = vmatprep.subr.mxu0 0.0
    %2054 = vmatpush1.msra.mxu0 0.0
    %2055 = vmatprep.mubr.f32.mxu0 0.0
    %2056 = vmatmul.mubr.f32.gmra.mrb[0].mxu0 %v1911
    %v2057 = vpop.f32.mrb[0].mxu0
    %v2058 = vadd.f32 0.0, %v2057
    %v2059 = vpop.f32.mrb[0].mxu0
    %v2060 = vadd.f32 0.0, %v2059
    %2061 = vdwg.mxu0
    %v2062 = vadd.f32 %v1916, %v1987
    %v2063 = vadd.f32 %v1917, %v1989
    %v2064 = vadd.f32 %v1918, %v2058
    %v2065 = vadd.f32 %v1919, %v2060
    %v2066 = vmul.f32 %v2062, 0.5
    %v2067 = vtanh.pop %v2066
    %v2068 = vadd.f32 %v2067, 1.0
    %v2069 = vmul.f32 %v2068, 0.5
    %v2070 = vmul.f32 %v2063, 0.5
    %v2071 = vtanh.pop %v2070
    %v2072 = vadd.f32 %v2071, 1.0
    %v2073 = vmul.f32 %v2072, 0.5
    %v2074 = vtanh.pop %v2064
    %v2075 = vmul.f32 %v2065, 0.5
    %v2076 = vtanh.pop %v2075
    %v2077 = vadd.f32 %v2076, 1.0
    %v2078 = vmul.f32 %v2077, 0.5
    %v2079 = vmul.f32 %v2073, %v1912
    %v2080 = vmul.f32 %v2069, %v2074
    %v2081 = vadd.f32 %v2079, %v2080
    %v2082 = vtanh.pop %v2081
    %v2083 = vmul.f32 %v2078, %v2082
    %s2084 = sadd.s32 %s601, 7
    %p2085 = scmp.lt.s32.totalorder %s2084, 8
    %s2086 = scalar_select %p2085, 1, 0
    %v2087 = vstv %s2086
    %vm2088 = vcmp.eq.s32.totalorder %v2087, 1
    %v2089 = vsel %vm2088, %v2083, %v1911
    %v2090 = vsel %vm2088, %v2081, %v1912
    %2091 = vst [vmem:[#allocation2] sm:$0xff] %v2089
    %2092 = vst [vmem:[#allocation3] sm:$0xff] %v2090
    // Predicated region
    $region70: #{mental_state_network.1} parent=1 // pred_check
      %p2093 = pneg %p96
    $region71: #{mental_state_network.1} parent=1 // pred_check_branch
      %2095 = sbr.rel (%p2093) target = $region73
    $region72: #{mental_state_network.1} parent=1 // pred_region
      %v2096 = vld [vmem:[%s7] sm:$0xff]
      %v2097 = vld [vmem:[%s7 + $0x8] sm:$0xff]
      %v2098 = vld [vmem:[%s7 + $0x10] sm:$0xff]
      %v2099 = vld [vmem:[%s7 + $0x18] sm:$0xff]
      %v2100 = vld [vmem:[%s7 + $0x20] sm:$0xff]
      %v2101 = vld [vmem:[%s7 + $0x28] sm:$0xff]
      %v2102 = vld [vmem:[%s7 + $0x30] sm:$0xff]
      %v2103 = vld [vmem:[%s7 + $0x38] sm:$0xff]
      %v2104 = vld [vmem:[%s7 + $0x40] sm:$0xff]
      %v2105 = vld [vmem:[%s7 + $0x48] sm:$0xff]
      %v2106 = vld [vmem:[%s7 + $0x50] sm:$0xff]
      %v2107 = vld [vmem:[%s7 + $0x58] sm:$0xff]
      %v2108 = vld [vmem:[%s7 + $0x60] sm:$0xff]
      %v2109 = vld [vmem:[%s7 + $0x68] sm:$0xff]
      %v2110 = vld [vmem:[%s7 + $0x70] sm:$0xff]
      %v2111 = vld [vmem:[%s7 + $0x78] sm:$0xff]
      %v2112 = vld [vmem:[#allocation4] sm:$0xff]
      %2113 = vmatprep.subr.mxu0 0.0
      %2114 = vmatpush1.msra.mxu0 %v2096
      %2115 = vmatprep.subr.mxu0 0.0
      %2116 = vmatpush1.msra.mxu0 %v2097
      %2117 = vmatprep.subr.mxu0 0.0
      %2118 = vmatpush1.msra.mxu0 %v2098
      %2119 = vmatprep.subr.mxu0 0.0
      %2120 = vmatpush1.msra.mxu0 %v2099
      %2121 = vmatprep.subr.mxu0 0.0
      %2122 = vmatpush1.msra.mxu0 %v2100
      %2123 = vmatprep.subr.mxu0 0.0
      %2124 = vmatpush1.msra.mxu0 %v2101
      %2125 = vmatprep.subr.mxu0 0.0
      %2126 = vmatpush1.msra.mxu0 %v2102
      %2127 = vmatprep.subr.mxu0 0.0
      %2128 = vmatpush1.msra.mxu0 %v2103
      %2129 = vmatprep.subr.mxu0 0.0
      %2130 = vmatpush1.msra.mxu0 %v2104
      %2131 = vmatprep.subr.mxu0 0.0
      %2132 = vmatpush1.msra.mxu0 %v2105
      %2133 = vmatprep.subr.mxu0 0.0
      %2134 = vmatpush1.msra.mxu0 %v2106
      %2135 = vmatprep.subr.mxu0 0.0
      %2136 = vmatpush1.msra.mxu0 %v2107
      %2137 = vmatprep.subr.mxu0 0.0
      %2138 = vmatpush1.msra.mxu0 %v2108
      %2139 = vmatprep.subr.mxu0 0.0
      %2140 = vmatpush1.msra.mxu0 %v2109
      %2141 = vmatprep.subr.mxu0 0.0
      %2142 = vmatpush1.msra.mxu0 %v2110
      %2143 = vmatprep.subr.mxu0 0.0
      %2144 = vmatpush1.msra.mxu0 %v2111
      %2145 = vmatprep.subr.mxu0 0.0
      %2146 = vmatpush1.msra.mxu0 0.0
      %2147 = vmatprep.subr.mxu0 0.0
      %2148 = vmatpush1.msra.mxu0 0.0
      %2149 = vmatprep.subr.mxu0 0.0
      %2150 = vmatpush1.msra.mxu0 0.0
      %2151 = vmatprep.subr.mxu0 0.0
      %2152 = vmatpush1.msra.mxu0 0.0
      %2153 = vmatprep.subr.mxu0 0.0
      %2154 = vmatpush1.msra.mxu0 0.0
      %2155 = vmatprep.subr.mxu0 0.0
      %2156 = vmatpush1.msra.mxu0 0.0
      %2157 = vmatprep.subr.mxu0 0.0
      %2158 = vmatpush1.msra.mxu0 0.0
      %2159 = vmatprep.subr.mxu0 0.0
      %2160 = vmatpush1.msra.mxu0 0.0
      %2161 = vmatprep.subr.mxu0 0.0
      %2162 = vmatpush1.msra.mxu0 0.0
      %2163 = vmatprep.subr.mxu0 0.0
      %2164 = vmatpush1.msra.mxu0 0.0
      %2165 = vmatprep.subr.mxu0 0.0
      %2166 = vmatpush1.msra.mxu0 0.0
      %2167 = vmatprep.subr.mxu0 0.0
      %2168 = vmatpush1.msra.mxu0 0.0
      %2169 = vmatprep.subr.mxu0 0.0
      %2170 = vmatpush1.msra.mxu0 0.0
      %2171 = vmatprep.subr.mxu0 0.0
      %2172 = vmatpush1.msra.mxu0 0.0
      %2173 = vmatprep.subr.mxu0 0.0
      %2174 = vmatpush1.msra.mxu0 0.0
      %2175 = vmatprep.subr.mxu0 0.0
      %2176 = vmatpush1.msra.mxu0 0.0
      %2177 = vmatprep.mubr.f32.mxu0 0.0
      %2178 = vmatmul.mubr.f32.gmra.mrb[0].mxu0 %v2089
      %v2179 = vpop.f32.mrb[0].mxu0
      %v2180 = vadd.f32 %v2112, %v2179
      %v2181 = vpop.f32.mrb[0].mxu0
      %2182 = vdwg.mxu0
      %v2183 = vmax.f32 %v2180, 0.0
      %v2184 = vld [vmem:[#allocation11] sm:$0xff]
      %v2185 = vld [vmem:[#allocation11 + $0x8] sm:$0xff]
      %v2186 = vld [vmem:[#allocation11 + $0x10] sm:$0xff]
      %v2187 = vld [vmem:[#allocation11 + $0x18] sm:$0xff]
      %v2188 = vld [vmem:[#allocation11 + $0x20] sm:$0xff]
      %v2189 = vld [vmem:[#allocation11 + $0x28] sm:$0xff]
      %v2190 = vld [vmem:[#allocation11 + $0x30] sm:$0xff]
      %v2191 = vld [vmem:[#allocation11 + $0x38] sm:$0xff]
      %v2192 = vld [vmem:[#allocation11 + $0x40] sm:$0xff]
      %v2193 = vld [vmem:[#allocation11 + $0x48] sm:$0xff]
      %v2194 = vld [vmem:[#allocation11 + $0x50] sm:$0xff]
      %v2195 = vld [vmem:[#allocation11 + $0x58] sm:$0xff]
      %v2196 = vld [vmem:[#allocation11 + $0x60] sm:$0xff]
      %v2197 = vld [vmem:[#allocation11 + $0x68] sm:$0xff]
      %v2198 = vld [vmem:[#allocation11 + $0x70] sm:$0xff]
      %v2199 = vld [vmem:[#allocation11 + $0x78] sm:$0xff]
      %v2200 = vld [vmem:[%s11] sm:$0x1]
      %v2202 = vlaneseq
      %v2203 = vshrl.u32 %v2202, 7
      %v2204 = vsub.s32 0, %v2203
      %v2205 = vrot.slane %v2200, %v2204
      %2207 = vmatprep.subr.mxu0 0.0
      %2208 = vmatpush1.msra.mxu0 %v2184
      %2209 = vmatprep.subr.mxu0 0.0
      %2210 = vmatpush1.msra.mxu0 %v2185
      %2211 = vmatprep.subr.mxu0 0.0
      %2212 = vmatpush1.msra.mxu0 %v2186
      %2213 = vmatprep.subr.mxu0 0.0
      %2214 = vmatpush1.msra.mxu0 %v2187
      %2215 = vmatprep.subr.mxu0 0.0
      %2216 = vmatpush1.msra.mxu0 %v2188
      %2217 = vmatprep.subr.mxu0 0.0
      %2218 = vmatpush1.msra.mxu0 %v2189
      %2219 = vmatprep.subr.mxu0 0.0
      %2220 = vmatpush1.msra.mxu0 %v2190
      %2221 = vmatprep.subr.mxu0 0.0
      %2222 = vmatpush1.msra.mxu0 %v2191
      %2223 = vmatprep.subr.mxu0 0.0
      %2224 = vmatpush1.msra.mxu0 %v2192
      %2225 = vmatprep.subr.mxu0 0.0
      %2226 = vmatpush1.msra.mxu0 %v2193
      %2227 = vmatprep.subr.mxu0 0.0
      %2228 = vmatpush1.msra.mxu0 %v2194
      %2229 = vmatprep.subr.mxu0 0.0
      %2230 = vmatpush1.msra.mxu0 %v2195
      %2231 = vmatprep.subr.mxu0 0.0
      %2232 = vmatpush1.msra.mxu0 %v2196
      %2233 = vmatprep.subr.mxu0 0.0
      %2234 = vmatpush1.msra.mxu0 %v2197
      %2235 = vmatprep.subr.mxu0 0.0
      %2236 = vmatpush1.msra.mxu0 %v2198
      %2237 = vmatprep.subr.mxu0 0.0
      %2238 = vmatpush1.msra.mxu0 %v2199
      %2239 = vmatprep.subr.mxu0 0.0
      %2240 = vmatpush1.msra.mxu0 0.0
      %2241 = vmatprep.subr.mxu0 0.0
      %2242 = vmatpush1.msra.mxu0 0.0
      %2243 = vmatprep.subr.mxu0 0.0
      %2244 = vmatpush1.msra.mxu0 0.0
      %2245 = vmatprep.subr.mxu0 0.0
      %2246 = vmatpush1.msra.mxu0 0.0
      %2247 = vmatprep.subr.mxu0 0.0
      %2248 = vmatpush1.msra.mxu0 0.0
      %2249 = vmatprep.subr.mxu0 0.0
      %2250 = vmatpush1.msra.mxu0 0.0
      %2251 = vmatprep.subr.mxu0 0.0
      %2252 = vmatpush1.msra.mxu0 0.0
      %2253 = vmatprep.subr.mxu0 0.0
      %2254 = vmatpush1.msra.mxu0 0.0
      %2255 = vmatprep.subr.mxu0 0.0
      %2256 = vmatpush1.msra.mxu0 0.0
      %2257 = vmatprep.subr.mxu0 0.0
      %2258 = vmatpush1.msra.mxu0 0.0
      %2259 = vmatprep.subr.mxu0 0.0
      %2260 = vmatpush1.msra.mxu0 0.0
      %2261 = vmatprep.subr.mxu0 0.0
      %2262 = vmatpush1.msra.mxu0 0.0
      %2263 = vmatprep.subr.mxu0 0.0
      %2264 = vmatpush1.msra.mxu0 0.0
      %2265 = vmatprep.subr.mxu0 0.0
      %2266 = vmatpush1.msra.mxu0 0.0
      %2267 = vmatprep.subr.mxu0 0.0
      %2268 = vmatpush1.msra.mxu0 0.0
      %2269 = vmatprep.subr.mxu0 0.0
      %2270 = vmatpush1.msra.mxu0 0.0
      %2271 = vmatprep.mubr.f32.mxu0 0.0
      %2272 = vmatmul.mubr.f32.gmra.mrb[0].mxu0 %v2183
      %v2273 = vpop.f32.mrb[0].mxu0
      %v2274 = vadd.f32 %v2205, %v2273
      %v2275 = vpop.f32.mrb[0].mxu0
      %2276 = vdwg.mxu0
      %2277 = vst [vmem:[%s12] sm:$0xff] %v2274
    $region73: #{mental_state_network.1} parent=1 // pred_fallthru
      _
    // Predicated region
    $region74: #{mental_state_network.1} parent=1 // pred_check
      _
    $region75: #{mental_state_network.1} parent=1 // pred_check_branch
      %2279 = sbr.rel (0) target = $region77
    $region76: #{mental_state_network.1} parent=1 // pred_region
      _
    $region77: #{mental_state_network.1} parent=1 // pred_fallthru
      _
    // Predicated region
    $region78: #{mental_state_network.1} parent=1 // pred_check
      _
    $region79: #{mental_state_network.1} parent=1 // pred_check_branch
      %2281 = sbr.rel (0) target = $region81
    $region80: #{mental_state_network.1} parent=1 // pred_region
      _
    $region81: #{mental_state_network.1} parent=1 // pred_fallthru
      _
    %2282 = vsyncpa [#allocation7], 1
    %2283 = vsyncpa [#allocation9], 1
    %2284 = vsyncpa [#allocation12], 1

</llo_original>
